<compile_context>
chip_gen: v6e
topology: v6e:2x2x1
jax: 0.10.0
libtpu: 0.0.40
codegen_flags: <defaults>
</compile_context>

<pallas_src>
import jax
import jax.numpy as jnp
from jax.experimental import pallas as pl
from jax.experimental.pallas import tpu as pltpu


# ----------------------------------------------------------------------------
# In-kernel building blocks (plain functions on arrays; traced inside kernel)
# ----------------------------------------------------------------------------
def _softmax_dim1(S):
    """Softmax over axis=1 of (bb, N, N); exp + reciprocal go to the EUP."""
    m = jnp.max(S, axis=1, keepdims=True)
    e = jnp.exp(S - m)
    return e * pl.reciprocal(jnp.sum(e, axis=1, keepdims=True), approx=True)


def _stblock(X3, A, vec1, attNN, theta, convM, vec2):
    """One STBlock, batched over the leading dim.

    X3: (bb, N, T1) -> returns (bb*N, T2) (flattened, ready for the next matmul).
      vec1  = [W1 ; W2*W3]            (2, T1)
      attNN = [Vs ; bs]               (2, N, N)
      theta = ChebConv weights        (3, T1, T2)
      convM = tridiag Conv1d matrix   (T2, T2)
      vec2  = [gcn bias ; conv bias]  (2, T2)
    """
    bb, N, T1 = X3.shape
    T2 = theta.shape[2]
    W1, W2f = vec1[0:1, :], vec1[1:2, :]
    Vs, bs = attNN[0], attNN[1]
    gb, cb = vec2[0:1, :], vec2[1:2, :]

    # ---- SpatialAtt (C == 1; W3 folded into W2f host-side) ----
    W1x = jnp.sum(X3 * W1, axis=2, keepdims=True)                 # (bb, N, 1)
    q = W1x * W2f                                                 # (bb, N, T1)
    S = jax.lax.dot_general(q, X3, (((2,), (2,)), ((0,), (0,))),
                            preferred_element_type=jnp.float32)   # (bb, N, N)
    S = _softmax_dim1(S + bs)
    S = jax.lax.dot_general(jnp.broadcast_to(Vs, (bb, N, N)), S,
                            (((2,), (1,)), ((0,), (0,))),
                            preferred_element_type=jnp.float32)
    S = _softmax_dim1(S)

    # ---- dense ChebConv (K=3) on A_hat = A * S ----
    # TODO(synk): `getGCNParams` is undefined in the reference source; we use
    # the standard dense equivalent of PyG ChebConv with lambda_max = 2:
    # L_hat = -D^{-1/2} A_hat D^{-1/2}, deg = row sums of A_hat.
    A_hat = A * S                                                 # (bb, N, N)
    deg = jnp.sum(A_hat, axis=2, keepdims=True)                   # (bb, N, 1)
    dinv = jnp.where(deg > 0.0, jax.lax.rsqrt(deg), 0.0)

    def lhat(v):                                                  # L_hat @ v
        return -(dinv * jax.lax.dot_general(
            A_hat, dinv * v, (((2,), (1,)), ((0,), (0,))),
            preferred_element_type=jnp.float32))

    Tx0 = X3
    Tx1 = lhat(Tx0)
    Tx2 = 2.0 * lhat(Tx1) - Tx0
    # Flatten to (bb*N, T1): merging outer dims into sublanes (N % 8 == 0) is a
    # free reindexing reshape and doubles MXU row occupancy.  Three accumulated
    # dots instead of a lane-axis concat (3*T1 may exceed 128 lanes).
    f0, f1, f2 = (t.reshape(bb * N, T1) for t in (Tx0, Tx1, Tx2))
    g = (jnp.dot(f0, theta[0], preferred_element_type=jnp.float32)
         + jnp.dot(f1, theta[1], preferred_element_type=jnp.float32)
         + jnp.dot(f2, theta[2], preferred_element_type=jnp.float32)
         + gb)
    g = jnp.maximum(g, 0.0)                                       # relu

    # ---- Conv1d(1,1,K=3,pad=1) as one matmul vs. a tridiagonal matrix ----
    h = jnp.dot(g, convM, preferred_element_type=jnp.float32) + cb
    return jnp.maximum(h, 0.0)                                    # (bb*N, T2)


def _fused_kernel(x_ref, a_ref,
                  vec1_a, att_a, th_a, cm_a, vec2_a,
                  vec1_b, att_b, th_b, cm_b, vec2_b,
                  wdt_ref, head_ref,
                  out_ref):
    X = x_ref[...]                                                # (bb, N, Tw)
    A = a_ref[...]                                                # (N, N)
    bb, N = X.shape[0], X.shape[1]

    y = _stblock(X, A, vec1_a[...], att_a[...], th_a[...], cm_a[...],
                 vec2_a[...])                                     # (bb*N, 64)
    y = _stblock(y.reshape(bb, N, y.shape[1]), A,
                 vec1_b[...], att_b[...], th_b[...], cm_b[...],
                 vec2_b[...])                                     # (bb*N, 32)

    head = head_ref[...]                                          # [bd ; 2*fw]
    yw = jnp.maximum(
        jnp.dot(y, wdt_ref[...], preferred_element_type=jnp.float32)
        + head[0:1, :], 0.0)
    # Fusion2(Y1, Y2) = fw*Y2 + fw*Y2  -> single multiply by pre-doubled fw.
    # TODO(synk): at production N/Tp re-tile this store lane-dense
    # ((bb, N*Tp)); at N*Tp = 64 elements it is a single masked vst.
    out_ref[...] = head[1:2, :] * yw                              # (bb*N, Tp)


# ----------------------------------------------------------------------------
# Host-side packing / scalar folding + pallas_call plumbing
# ----------------------------------------------------------------------------
def _const_spec(shape):
    n = len(shape)
    return pl.BlockSpec(shape, lambda g, _n=n: (0,) * _n)


def _stblock_specs(N, T1, T2, K=3):
    return [_const_spec((2, T1)),        # [W1 ; W2*W3]
            _const_spec((2, N, N)),      # [Vs ; bs]
            _const_spec((K, T1, T2)),    # theta
            _const_spec((T2, T2)),       # tridiagonal Conv1d matrix
            _const_spec((2, T2))]        # [gcn bias ; conv bias]


def _pack_stblock(p):
    """Pack one STBlock's parameters into 5 slabs; fold scalars host-side."""
    _, _, T2 = p["theta"].shape
    vec1 = jnp.concatenate([p["W1"], p["W2"] * p["W3"][0, 0]], axis=0)
    attNN = jnp.stack([p["Vs"], p["bs"]], axis=0)
    convM = (p["tcw"][0, 1] * jnp.eye(T2, dtype=jnp.float32)
             + p["tcw"][0, 0] * jnp.eye(T2, k=1, dtype=jnp.float32)
             + p["tcw"][0, 2] * jnp.eye(T2, k=-1, dtype=jnp.float32))
    vec2 = jnp.concatenate(
        [p["gb"], jnp.full((1, T2), p["tcb"][0, 0], jnp.float32)], axis=0)
    return vec1, attNN, p["theta"], convM, vec2


def astgcn_nodaily(Xh, Xw, A, params, *, batch_block=None):
    """Xh: (B,N,1,Th), Xw: (B,N,1,Tw), A: (N,N) -> (B,N,1,Tp).

    Fusion2 ignores its first argument (fw*Y2 + fw*Y2), so the entire Yh
    branch is dead code w.r.t. the output and is not computed.  If the
    reference Fusion2 is ever fixed to use Y1, re-enable the H branch.

    batch_block: batch elements per grid step (default B -> one grid step,
    best on single-TC chips).  On v7x use batch_block = B // 2 so the
    "parallel" grid gives one half-batch to each TensorCore.
    """
    del Xh
    B, N, _, Tw = Xw.shape
    bb = B if batch_block is None else batch_block
    assert B % bb == 0, (B, bb)
    pA, pB, ph = params["sptW1"], params["sptW2"], params["head"]
    K, _, T2a = pA["theta"].shape                  # (3, Tw, 64)
    _, T1b, T2b = pB["theta"].shape                # (3, 64, 32)
    Tp = ph["WdT"].shape[1]
    headvec = jnp.concatenate([ph["bd"], 2.0 * ph["fw"]], axis=0)  # (2, Tp)

    out = pl.pallas_call(
        _fused_kernel,
        out_shape=jax.ShapeDtypeStruct((B * N, Tp), jnp.float32),
        grid=(B // bb,),
        in_specs=(
            [pl.BlockSpec((bb, N, Tw), lambda g: (g, 0, 0)),   # Xw
             _const_spec((N, N))]                              # A
            + _stblock_specs(N, Tw, T2a, K)                    # sptW1 (packed)
            + _stblock_specs(N, T1b, T2b, K)                   # sptW2 (packed)
            + [_const_spec((T2b, Tp)),                         # LinearD weight.T
               _const_spec((2, Tp))]                           # [bd ; 2*fw]
        ),
        out_specs=pl.BlockSpec((bb * N, Tp), lambda g: (g, 0)),
        compiler_params=pltpu.CompilerParams(dimension_semantics=("parallel",)),
    )(Xw.reshape(B, N, Tw), A,
      *_pack_stblock(pA), *_pack_stblock(pB),
      ph["WdT"], headvec)
    return out.reshape(B, N, 1, Tp)


# ----------------------------------------------------------------------------
# Deterministic parameter init (shapes follow the PyTorch module __init__)
# ----------------------------------------------------------------------------
def _uniform(key, shape, lo=0.0, hi=1.0):
    return jax.random.uniform(key, shape, jnp.float32, lo, hi)


def _xavier(key, shape):
    fan_out, fan_in = shape[-2], shape[-1]
    lim = (6.0 / (fan_in + fan_out)) ** 0.5
    return jax.random.uniform(key, shape, jnp.float32, -lim, lim)


def init_stblock(key, N, T1, T2, K=3):
    k = jax.random.split(key, 9)
    return dict(
        Vs=_xavier(k[0], (N, N)),
        bs=_xavier(k[1], (N, N)),
        W1=_uniform(k[2], (1, T1)),
        W2=_xavier(k[3], (1, T1)),
        W3=_uniform(k[4], (1, 1)),
        theta=_xavier(k[5], (K, T1, T2)),
        gb=_uniform(k[6], (1, T2), -0.1, 0.1),
        tcw=_uniform(k[7], (1, K), -0.5, 0.5),
        tcb=_uniform(k[8], (1, 1), -0.5, 0.5),
    )


def init_params(key, N, Th, Tw, Tp):
    k = jax.random.split(key, 7)
    lim = (1.0 / 32.0) ** 0.5
    head_p = dict(
        WdT=_uniform(k[4], (32, Tp), -lim, lim),   # nn.Linear(32, Tp).weight.T
        bd=_uniform(k[5], (1, Tp), -lim, lim),
        fw=_uniform(k[6], (1, Tp)),                # Fusion2 W1
    )
    return dict(
        sptH1=init_stblock(k[0], N, Th, 64),   # kept for interface fidelity
        sptH2=init_stblock(k[1], N, 64, 32),   # (unused: Fusion2 drops Yh)
        sptW1=init_stblock(k[2], N, Tw, 64),
        sptW2=init_stblock(k[3], N, 64, 32),
        head=head_p,
    )


# ----------------------------------------------------------------------------
# Pure-JAX reference (faithful to the PyTorch forward incl. the Yh branch)
# ----------------------------------------------------------------------------
_HP = jax.lax.Precision.HIGHEST


def _stblock_ref(X, A, p):
    Xf = X[:, :, 0, :]                                         # (B, N, T1)
    W1x = jnp.sum(Xf * p["W1"], axis=-1, keepdims=True)        # (B, N, 1)
    W1xW2 = W1x * p["W2"]                                      # (B, N, T1)
    S = jnp.einsum("bnt,bmt->bnm", W1xW2 * p["W3"][0, 0], Xf, precision=_HP)
    S = S + p["bs"][None]
    S = jax.nn.softmax(S, axis=1)
    S = jnp.einsum("nk,bkm->bnm", p["Vs"], S, precision=_HP)
    S = jax.nn.softmax(S, axis=1)
    A_hat = A[None] * S
    deg = jnp.sum(A_hat, axis=-1, keepdims=True)
    dinv = jnp.where(deg > 0.0, 1.0 / jnp.sqrt(deg), 0.0)
    lhat = lambda v: -(dinv * jnp.einsum("bnm,bmt->bnt", A_hat, dinv * v,
                                         precision=_HP))
    Tx0, Tx1 = Xf, lhat(Xf)
    Tx2 = 2.0 * lhat(Tx1) - Tx0
    g = (jnp.einsum("bnt,to->bno", Tx0, p["theta"][0], precision=_HP)
         + jnp.einsum("bnt,to->bno", Tx1, p["theta"][1], precision=_HP)
         + jnp.einsum("bnt,to->bno", Tx2, p["theta"][2], precision=_HP)
         + p["gb"][None])
    g = jax.nn.relu(g)
    left = jnp.pad(g[..., :-1], ((0, 0), (0, 0), (1, 0)))
    right = jnp.pad(g[..., 1:], ((0, 0), (0, 0), (0, 1)))
    conv = (p["tcw"][0, 0] * left + p["tcw"][0, 1] * g + p["tcw"][0, 2] * right
            + p["tcb"][0, 0])
    return jax.nn.relu(conv)[:, :, None, :]


def _model_ref(Xh, Xw, A, params):
    Yh = _stblock_ref(Xh, A, params["sptH1"])
    Yh = _stblock_ref(Yh, A, params["sptH2"])
    Yw = _stblock_ref(Xw, A, params["sptW1"])
    Yw = _stblock_ref(Yw, A, params["sptW2"])
    hp = params["head"]
    lin = lambda y: jax.nn.relu(
        jnp.einsum("bnco,op->bncp", y, hp["WdT"], precision=_HP) + hp["bd"])
    _ = lin(Yh)                      # computed in the reference, unused by Fusion2
    yw = lin(Yw)
    return hp["fw"] * yw + hp["fw"] * yw


# ----------------------------------------------------------------------------
if __name__ == "__main__":
    B, N, Th, Tw, Tp = 2, 16, 8, 12, 4
    key = jax.random.PRNGKey(0)
    kx, kw, ka, kp = jax.random.split(key, 4)
    Xh = jax.random.normal(kx, (B, N, 1, Th), jnp.float32)
    Xw = jax.random.normal(kw, (B, N, 1, Tw), jnp.float32)
    A = jax.random.uniform(ka, (N, N), jnp.float32)
    params = init_params(kp, N, Th, Tw, Tp)

    y = jax.jit(astgcn_nodaily)(Xh, Xw, A, params)
    y = jax.block_until_ready(y)

    y_ref = _model_ref(Xh, Xw, A, params)
    assert y.shape == (B, N, 1, Tp), y.shape
    err = float(jnp.max(jnp.abs(y - y_ref)))
    # Tolerance has headroom for the approximate EUP reciprocal used in the
    # four in-kernel softmaxes (exact path matches at ~1e-5).
    assert jnp.allclose(y, y_ref, rtol=5e-3, atol=5e-3), f"max abs err = {err}"
    print("KERNEL_OK")
</pallas_src>

<mosaic_0001>
module attributes {stable_mosaic.version = 11 : i64} {
  func.func @_fused_kernel(%arg0: i32, %arg1: memref<2x16x12xf32, #tpu.memory_space<vmem>>, %arg2: memref<16x16xf32, #tpu.memory_space<vmem>>, %arg3: memref<2x12xf32, #tpu.memory_space<vmem>>, %arg4: memref<2x16x16xf32, #tpu.memory_space<vmem>>, %arg5: memref<3x12x64xf32, #tpu.memory_space<vmem>>, %arg6: memref<64x64xf32, #tpu.memory_space<vmem>>, %arg7: memref<2x64xf32, #tpu.memory_space<vmem>>, %arg8: memref<2x64xf32, #tpu.memory_space<vmem>>, %arg9: memref<2x16x16xf32, #tpu.memory_space<vmem>>, %arg10: memref<3x64x32xf32, #tpu.memory_space<vmem>>, %arg11: memref<32x32xf32, #tpu.memory_space<vmem>>, %arg12: memref<2x32xf32, #tpu.memory_space<vmem>>, %arg13: memref<32x4xf32, #tpu.memory_space<vmem>>, %arg14: memref<2x4xf32, #tpu.memory_space<vmem>>, %arg15: memref<32x4xf32, #tpu.memory_space<vmem>>) attributes {dimension_semantics = [#tpu.dimension_semantics<parallel>], iteration_bounds = array<i64: 1>, scalar_prefetch = 0 : i64, scratch_operands = 0 : i64, tpu.core_type = #tpu.core_type<tc>, window_params = [{transform_indices = @transform_0, window_bounds = array<i64: 2, 16, 12>}, {pipeline_mode = #tpu.pipeline_mode<synchronous>, transform_indices = @transform_1, window_bounds = array<i64: 16, 16>}, {pipeline_mode = #tpu.pipeline_mode<synchronous>, transform_indices = @transform_2, window_bounds = array<i64: 2, 12>}, {pipeline_mode = #tpu.pipeline_mode<synchronous>, transform_indices = @transform_3, window_bounds = array<i64: 2, 16, 16>}, {pipeline_mode = #tpu.pipeline_mode<synchronous>, transform_indices = @transform_4, window_bounds = array<i64: 3, 12, 64>}, {pipeline_mode = #tpu.pipeline_mode<synchronous>, transform_indices = @transform_5, window_bounds = array<i64: 64, 64>}, {pipeline_mode = #tpu.pipeline_mode<synchronous>, transform_indices = @transform_6, window_bounds = array<i64: 2, 64>}, {pipeline_mode = #tpu.pipeline_mode<synchronous>, transform_indices = @transform_7, window_bounds = array<i64: 2, 64>}, {pipeline_mode = #tpu.pipeline_mode<synchronous>, transform_indices = @transform_8, window_bounds = array<i64: 2, 16, 16>}, {pipeline_mode = #tpu.pipeline_mode<synchronous>, transform_indices = @transform_9, window_bounds = array<i64: 3, 64, 32>}, {pipeline_mode = #tpu.pipeline_mode<synchronous>, transform_indices = @transform_10, window_bounds = array<i64: 32, 32>}, {pipeline_mode = #tpu.pipeline_mode<synchronous>, transform_indices = @transform_11, window_bounds = array<i64: 2, 32>}, {pipeline_mode = #tpu.pipeline_mode<synchronous>, transform_indices = @transform_12, window_bounds = array<i64: 32, 4>}, {pipeline_mode = #tpu.pipeline_mode<synchronous>, transform_indices = @transform_13, window_bounds = array<i64: 2, 4>}, {transform_indices = @transform_14, window_bounds = array<i64: 32, 4>}]} {
    %c0 = arith.constant 0 : index
    %c0_0 = arith.constant 0 : index
    %c0_1 = arith.constant 0 : index
    %0 = vector.load %arg1[%c0, %c0_0, %c0_1] : memref<2x16x12xf32, #tpu.memory_space<vmem>>, vector<2x16x12xf32>
    %c0_2 = arith.constant 0 : index
    %c0_3 = arith.constant 0 : index
    %1 = vector.load %arg2[%c0_2, %c0_3] : memref<16x16xf32, #tpu.memory_space<vmem>>, vector<16x16xf32>
    %c0_4 = arith.constant 0 : index
    %c0_5 = arith.constant 0 : index
    %2 = vector.load %arg3[%c0_4, %c0_5] : memref<2x12xf32, #tpu.memory_space<vmem>>, vector<2x12xf32>
    %c0_6 = arith.constant 0 : index
    %c0_7 = arith.constant 0 : index
    %c0_8 = arith.constant 0 : index
    %3 = vector.load %arg4[%c0_6, %c0_7, %c0_8] : memref<2x16x16xf32, #tpu.memory_space<vmem>>, vector<2x16x16xf32>
    %c0_9 = arith.constant 0 : index
    %c0_10 = arith.constant 0 : index
    %c0_11 = arith.constant 0 : index
    %4 = vector.load %arg5[%c0_9, %c0_10, %c0_11] : memref<3x12x64xf32, #tpu.memory_space<vmem>>, vector<3x12x64xf32>
    %c0_12 = arith.constant 0 : index
    %c0_13 = arith.constant 0 : index
    %5 = vector.load %arg6[%c0_12, %c0_13] : memref<64x64xf32, #tpu.memory_space<vmem>>, vector<64x64xf32>
    %c0_14 = arith.constant 0 : index
    %c0_15 = arith.constant 0 : index
    %6 = vector.load %arg7[%c0_14, %c0_15] : memref<2x64xf32, #tpu.memory_space<vmem>>, vector<2x64xf32>
    %7 = vector.extract_strided_slice %2 {offsets = [0, 0], sizes = [1, 12], strides = [1, 1]} : vector<2x12xf32> to vector<1x12xf32>
    %8 = vector.extract_strided_slice %2 {offsets = [1, 0], sizes = [1, 12], strides = [1, 1]} : vector<2x12xf32> to vector<1x12xf32>
    %9 = vector.extract_strided_slice %3 {offsets = [0, 0, 0], sizes = [1, 16, 16], strides = [1, 1, 1]} : vector<2x16x16xf32> to vector<1x16x16xf32>
    %10 = vector.shape_cast %9 : vector<1x16x16xf32> to vector<16x16xf32>
    %11 = vector.extract_strided_slice %3 {offsets = [1, 0, 0], sizes = [1, 16, 16], strides = [1, 1, 1]} : vector<2x16x16xf32> to vector<1x16x16xf32>
    %12 = vector.shape_cast %11 : vector<1x16x16xf32> to vector<16x16xf32>
    %13 = vector.extract_strided_slice %6 {offsets = [0, 0], sizes = [1, 64], strides = [1, 1]} : vector<2x64xf32> to vector<1x64xf32>
    %14 = vector.extract_strided_slice %6 {offsets = [1, 0], sizes = [1, 64], strides = [1, 1]} : vector<2x64xf32> to vector<1x64xf32>
    %15 = vector.shape_cast %7 : vector<1x12xf32> to vector<1x1x12xf32>
    %16 = vector.broadcast %15 : vector<1x1x12xf32> to vector<2x16x12xf32>
    %17 = arith.mulf %0, %16 : vector<2x16x12xf32>
    %cst = arith.constant dense<0.000000e+00> : vector<2x16xf32>
    %18 = vector.multi_reduction <add>, %17, %cst [2] : vector<2x16x12xf32> to vector<2x16xf32>
    %19 = vector.shape_cast %18 : vector<2x16xf32> to vector<2x16x1xf32>
    %20 = vector.shape_cast %8 : vector<1x12xf32> to vector<1x1x12xf32>
    %21 = vector.broadcast %19 : vector<2x16x1xf32> to vector<2x16x12xf32>
    %22 = vector.broadcast %20 : vector<1x1x12xf32> to vector<2x16x12xf32>
    %23 = arith.mulf %21, %22 : vector<2x16x12xf32>
    %cst_16 = arith.constant dense<0.000000e+00> : vector<2x16x16xf32>
    %24 = tpu.matmul %23, %0, %cst_16 {dimension_numbers = #tpu.dot_dimension_numbers<[2], [2], [1], [1], [0, 0, 0, 1, 1, 1], [0], [0]>} : vector<2x16x12xf32>, vector<2x16x12xf32>, vector<2x16x16xf32> -> vector<2x16x16xf32>
    %25 = vector.shape_cast %12 : vector<16x16xf32> to vector<1x16x16xf32>
    %26 = vector.broadcast %25 : vector<1x16x16xf32> to vector<2x16x16xf32>
    %27 = arith.addf %24, %26 : vector<2x16x16xf32>
    %cst_17 = arith.constant dense<0xFF800000> : vector<2x16xf32>
    %28 = vector.multi_reduction <maximumf>, %27, %cst_17 [1] : vector<2x16x16xf32> to vector<2x16xf32>
    %29 = vector.shape_cast %28 : vector<2x16xf32> to vector<2x1x16xf32>
    %30 = vector.broadcast %29 : vector<2x1x16xf32> to vector<2x16x16xf32>
    %31 = arith.subf %27, %30 : vector<2x16x16xf32>
    %32 = math.exp %31 : vector<2x16x16xf32>
    %cst_18 = arith.constant dense<0.000000e+00> : vector<2x16xf32>
    %33 = vector.multi_reduction <add>, %32, %cst_18 [1] : vector<2x16x16xf32> to vector<2x16xf32>
    %34 = vector.shape_cast %33 : vector<2x16xf32> to vector<2x1x16xf32>
    %35 = tpu.reciprocal %34 {approx = true} : vector<2x1x16xf32> -> vector<2x1x16xf32>
    %36 = vector.broadcast %35 : vector<2x1x16xf32> to vector<2x16x16xf32>
    %37 = arith.mulf %32, %36 : vector<2x16x16xf32>
    %38 = vector.shape_cast %10 : vector<16x16xf32> to vector<1x16x16xf32>
    %39 = vector.broadcast %38 : vector<1x16x16xf32> to vector<2x16x16xf32>
    %cst_19 = arith.constant dense<0.000000e+00> : vector<2x16x16xf32>
    %40 = tpu.matmul %39, %37, %cst_19 {dimension_numbers = #tpu.dot_dimension_numbers<[2], [1], [1], [2], [0, 0, 0, 1, 1, 2], [0], [0]>} : vector<2x16x16xf32>, vector<2x16x16xf32>, vector<2x16x16xf32> -> vector<2x16x16xf32>
    %cst_20 = arith.constant dense<0xFF800000> : vector<2x16xf32>
    %41 = vector.multi_reduction <maximumf>, %40, %cst_20 [1] : vector<2x16x16xf32> to vector<2x16xf32>
    %42 = vector.shape_cast %41 : vector<2x16xf32> to vector<2x1x16xf32>
    %43 = vector.broadcast %42 : vector<2x1x16xf32> to vector<2x16x16xf32>
    %44 = arith.subf %40, %43 : vector<2x16x16xf32>
    %45 = math.exp %44 : vector<2x16x16xf32>
    %cst_21 = arith.constant dense<0.000000e+00> : vector<2x16xf32>
    %46 = vector.multi_reduction <add>, %45, %cst_21 [1] : vector<2x16x16xf32> to vector<2x16xf32>
    %47 = vector.shape_cast %46 : vector<2x16xf32> to vector<2x1x16xf32>
    %48 = tpu.reciprocal %47 {approx = true} : vector<2x1x16xf32> -> vector<2x1x16xf32>
    %49 = vector.broadcast %48 : vector<2x1x16xf32> to vector<2x16x16xf32>
    %50 = arith.mulf %45, %49 : vector<2x16x16xf32>
    %51 = vector.shape_cast %1 : vector<16x16xf32> to vector<1x16x16xf32>
    %52 = vector.broadcast %51 : vector<1x16x16xf32> to vector<2x16x16xf32>
    %53 = arith.mulf %52, %50 : vector<2x16x16xf32>
    %cst_22 = arith.constant dense<0.000000e+00> : vector<2x16xf32>
    %54 = vector.multi_reduction <add>, %53, %cst_22 [2] : vector<2x16x16xf32> to vector<2x16xf32>
    %55 = vector.shape_cast %54 : vector<2x16xf32> to vector<2x16x1xf32>
    %cst_23 = arith.constant 0.000000e+00 : f32
    %56 = vector.broadcast %cst_23 : f32 to vector<2x16x1xf32>
    %57 = arith.cmpf ogt, %55, %56 : vector<2x16x1xf32>
    %58 = math.rsqrt %55 : vector<2x16x1xf32>
    %cst_24 = arith.constant 0.000000e+00 : f32
    %59 = vector.broadcast %cst_24 : f32 to vector<2x16x1xf32>
    %60 = arith.select %57, %58, %59 : vector<2x16x1xi1>, vector<2x16x1xf32>
    %61 = vector.broadcast %60 : vector<2x16x1xf32> to vector<2x16x12xf32>
    %62 = arith.mulf %61, %0 : vector<2x16x12xf32>
    %cst_25 = arith.constant dense<0.000000e+00> : vector<2x16x12xf32>
    %63 = tpu.matmul %53, %62, %cst_25 {dimension_numbers = #tpu.dot_dimension_numbers<[2], [1], [1], [2], [0, 0, 0, 1, 1, 2], [0], [0]>} : vector<2x16x16xf32>, vector<2x16x12xf32>, vector<2x16x12xf32> -> vector<2x16x12xf32>
    %64 = vector.broadcast %60 : vector<2x16x1xf32> to vector<2x16x12xf32>
    %65 = arith.mulf %64, %63 : vector<2x16x12xf32>
    %cst_26 = arith.constant 0.000000e+00 : f32
    %66 = vector.broadcast %cst_26 : f32 to vector<2x16x12xf32>
    %67 = arith.subf %66, %65 : vector<2x16x12xf32>
    %68 = vector.broadcast %60 : vector<2x16x1xf32> to vector<2x16x12xf32>
    %69 = arith.mulf %68, %67 : vector<2x16x12xf32>
    %cst_27 = arith.constant dense<0.000000e+00> : vector<2x16x12xf32>
    %70 = tpu.matmul %53, %69, %cst_27 {dimension_numbers = #tpu.dot_dimension_numbers<[2], [1], [1], [2], [0, 0, 0, 1, 1, 2], [0], [0]>} : vector<2x16x16xf32>, vector<2x16x12xf32>, vector<2x16x12xf32> -> vector<2x16x12xf32>
    %71 = vector.broadcast %60 : vector<2x16x1xf32> to vector<2x16x12xf32>
    %72 = arith.mulf %71, %70 : vector<2x16x12xf32>
    %cst_28 = arith.constant 0.000000e+00 : f32
    %73 = vector.broadcast %cst_28 : f32 to vector<2x16x12xf32>
    %74 = arith.subf %73, %72 : vector<2x16x12xf32>
    %cst_29 = arith.constant 2.000000e+00 : f32
    %75 = vector.broadcast %cst_29 : f32 to vector<2x16x12xf32>
    %76 = arith.mulf %75, %74 : vector<2x16x12xf32>
    %77 = arith.subf %76, %0 : vector<2x16x12xf32>
    %78 = vector.shape_cast %0 : vector<2x16x12xf32> to vector<32x12xf32>
    %79 = vector.shape_cast %67 : vector<2x16x12xf32> to vector<32x12xf32>
    %80 = vector.shape_cast %77 : vector<2x16x12xf32> to vector<32x12xf32>
    %81 = vector.extract_strided_slice %4 {offsets = [0, 0, 0], sizes = [1, 12, 64], strides = [1, 1, 1]} : vector<3x12x64xf32> to vector<1x12x64xf32>
    %82 = vector.shape_cast %81 : vector<1x12x64xf32> to vector<12x64xf32>
    %cst_30 = arith.constant dense<0.000000e+00> : vector<32x64xf32>
    %83 = tpu.matmul %78, %82, %cst_30 {dimension_numbers = #tpu.dot_dimension_numbers<[1], [0], [0], [1], [0, 0, 1, 1], [], []>} : vector<32x12xf32>, vector<12x64xf32>, vector<32x64xf32> -> vector<32x64xf32>
    %84 = vector.extract_strided_slice %4 {offsets = [1, 0, 0], sizes = [1, 12, 64], strides = [1, 1, 1]} : vector<3x12x64xf32> to vector<1x12x64xf32>
    %85 = vector.shape_cast %84 : vector<1x12x64xf32> to vector<12x64xf32>
    %cst_31 = arith.constant dense<0.000000e+00> : vector<32x64xf32>
    %86 = tpu.matmul %79, %85, %cst_31 {dimension_numbers = #tpu.dot_dimension_numbers<[1], [0], [0], [1], [0, 0, 1, 1], [], []>} : vector<32x12xf32>, vector<12x64xf32>, vector<32x64xf32> -> vector<32x64xf32>
    %87 = arith.addf %83, %86 : vector<32x64xf32>
    %88 = vector.extract_strided_slice %4 {offsets = [2, 0, 0], sizes = [1, 12, 64], strides = [1, 1, 1]} : vector<3x12x64xf32> to vector<1x12x64xf32>
    %89 = vector.shape_cast %88 : vector<1x12x64xf32> to vector<12x64xf32>
    %cst_32 = arith.constant dense<0.000000e+00> : vector<32x64xf32>
    %90 = tpu.matmul %80, %89, %cst_32 {dimension_numbers = #tpu.dot_dimension_numbers<[1], [0], [0], [1], [0, 0, 1, 1], [], []>} : vector<32x12xf32>, vector<12x64xf32>, vector<32x64xf32> -> vector<32x64xf32>
    %91 = arith.addf %87, %90 : vector<32x64xf32>
    %92 = vector.broadcast %13 : vector<1x64xf32> to vector<32x64xf32>
    %93 = arith.addf %91, %92 : vector<32x64xf32>
    %cst_33 = arith.constant 0.000000e+00 : f32
    %94 = vector.broadcast %cst_33 : f32 to vector<32x64xf32>
    %95 = arith.maximumf %93, %94 : vector<32x64xf32>
    %cst_34 = arith.constant dense<0.000000e+00> : vector<32x64xf32>
    %96 = tpu.matmul %95, %5, %cst_34 {dimension_numbers = #tpu.dot_dimension_numbers<[1], [0], [0], [1], [0, 0, 1, 1], [], []>} : vector<32x64xf32>, vector<64x64xf32>, vector<32x64xf32> -> vector<32x64xf32>
    %97 = vector.broadcast %14 : vector<1x64xf32> to vector<32x64xf32>
    %98 = arith.addf %96, %97 : vector<32x64xf32>
    %cst_35 = arith.constant 0.000000e+00 : f32
    %99 = vector.broadcast %cst_35 : f32 to vector<32x64xf32>
    %100 = arith.maximumf %98, %99 : vector<32x64xf32>
    %101 = vector.shape_cast %100 : vector<32x64xf32> to vector<2x16x64xf32>
    %c0_36 = arith.constant 0 : index
    %c0_37 = arith.constant 0 : index
    %102 = vector.load %arg8[%c0_36, %c0_37] : memref<2x64xf32, #tpu.memory_space<vmem>>, vector<2x64xf32>
    %c0_38 = arith.constant 0 : index
    %c0_39 = arith.constant 0 : index
    %c0_40 = arith.constant 0 : index
    %103 = vector.load %arg9[%c0_38, %c0_39, %c0_40] : memref<2x16x16xf32, #tpu.memory_space<vmem>>, vector<2x16x16xf32>
    %c0_41 = arith.constant 0 : index
    %c0_42 = arith.constant 0 : index
    %c0_43 = arith.constant 0 : index
    %104 = vector.load %arg10[%c0_41, %c0_42, %c0_43] : memref<3x64x32xf32, #tpu.memory_space<vmem>>, vector<3x64x32xf32>
    %c0_44 = arith.constant 0 : index
    %c0_45 = arith.constant 0 : index
    %105 = vector.load %arg11[%c0_44, %c0_45] : memref<32x32xf32, #tpu.memory_space<vmem>>, vector<32x32xf32>
    %c0_46 = arith.constant 0 : index
    %c0_47 = arith.constant 0 : index
    %106 = vector.load %arg12[%c0_46, %c0_47] : memref<2x32xf32, #tpu.memory_space<vmem>>, vector<2x32xf32>
    %107 = vector.extract_strided_slice %102 {offsets = [0, 0], sizes = [1, 64], strides = [1, 1]} : vector<2x64xf32> to vector<1x64xf32>
    %108 = vector.extract_strided_slice %102 {offsets = [1, 0], sizes = [1, 64], strides = [1, 1]} : vector<2x64xf32> to vector<1x64xf32>
    %109 = vector.extract_strided_slice %103 {offsets = [0, 0, 0], sizes = [1, 16, 16], strides = [1, 1, 1]} : vector<2x16x16xf32> to vector<1x16x16xf32>
    %110 = vector.shape_cast %109 : vector<1x16x16xf32> to vector<16x16xf32>
    %111 = vector.extract_strided_slice %103 {offsets = [1, 0, 0], sizes = [1, 16, 16], strides = [1, 1, 1]} : vector<2x16x16xf32> to vector<1x16x16xf32>
    %112 = vector.shape_cast %111 : vector<1x16x16xf32> to vector<16x16xf32>
    %113 = vector.extract_strided_slice %106 {offsets = [0, 0], sizes = [1, 32], strides = [1, 1]} : vector<2x32xf32> to vector<1x32xf32>
    %114 = vector.extract_strided_slice %106 {offsets = [1, 0], sizes = [1, 32], strides = [1, 1]} : vector<2x32xf32> to vector<1x32xf32>
    %115 = vector.shape_cast %107 : vector<1x64xf32> to vector<1x1x64xf32>
    %116 = vector.broadcast %115 : vector<1x1x64xf32> to vector<2x16x64xf32>
    %117 = arith.mulf %101, %116 : vector<2x16x64xf32>
    %cst_48 = arith.constant dense<0.000000e+00> : vector<2x16xf32>
    %118 = vector.multi_reduction <add>, %117, %cst_48 [2] : vector<2x16x64xf32> to vector<2x16xf32>
    %119 = vector.shape_cast %118 : vector<2x16xf32> to vector<2x16x1xf32>
    %120 = vector.shape_cast %108 : vector<1x64xf32> to vector<1x1x64xf32>
    %121 = vector.broadcast %119 : vector<2x16x1xf32> to vector<2x16x64xf32>
    %122 = vector.broadcast %120 : vector<1x1x64xf32> to vector<2x16x64xf32>
    %123 = arith.mulf %121, %122 : vector<2x16x64xf32>
    %cst_49 = arith.constant dense<0.000000e+00> : vector<2x16x16xf32>
    %124 = tpu.matmul %123, %101, %cst_49 {dimension_numbers = #tpu.dot_dimension_numbers<[2], [2], [1], [1], [0, 0, 0, 1, 1, 1], [0], [0]>} : vector<2x16x64xf32>, vector<2x16x64xf32>, vector<2x16x16xf32> -> vector<2x16x16xf32>
    %125 = vector.shape_cast %112 : vector<16x16xf32> to vector<1x16x16xf32>
    %126 = vector.broadcast %125 : vector<1x16x16xf32> to vector<2x16x16xf32>
    %127 = arith.addf %124, %126 : vector<2x16x16xf32>
    %cst_50 = arith.constant dense<0xFF800000> : vector<2x16xf32>
    %128 = vector.multi_reduction <maximumf>, %127, %cst_50 [1] : vector<2x16x16xf32> to vector<2x16xf32>
    %129 = vector.shape_cast %128 : vector<2x16xf32> to vector<2x1x16xf32>
    %130 = vector.broadcast %129 : vector<2x1x16xf32> to vector<2x16x16xf32>
    %131 = arith.subf %127, %130 : vector<2x16x16xf32>
    %132 = math.exp %131 : vector<2x16x16xf32>
    %cst_51 = arith.constant dense<0.000000e+00> : vector<2x16xf32>
    %133 = vector.multi_reduction <add>, %132, %cst_51 [1] : vector<2x16x16xf32> to vector<2x16xf32>
    %134 = vector.shape_cast %133 : vector<2x16xf32> to vector<2x1x16xf32>
    %135 = tpu.reciprocal %134 {approx = true} : vector<2x1x16xf32> -> vector<2x1x16xf32>
    %136 = vector.broadcast %135 : vector<2x1x16xf32> to vector<2x16x16xf32>
    %137 = arith.mulf %132, %136 : vector<2x16x16xf32>
    %138 = vector.shape_cast %110 : vector<16x16xf32> to vector<1x16x16xf32>
    %139 = vector.broadcast %138 : vector<1x16x16xf32> to vector<2x16x16xf32>
    %cst_52 = arith.constant dense<0.000000e+00> : vector<2x16x16xf32>
    %140 = tpu.matmul %139, %137, %cst_52 {dimension_numbers = #tpu.dot_dimension_numbers<[2], [1], [1], [2], [0, 0, 0, 1, 1, 2], [0], [0]>} : vector<2x16x16xf32>, vector<2x16x16xf32>, vector<2x16x16xf32> -> vector<2x16x16xf32>
    %cst_53 = arith.constant dense<0xFF800000> : vector<2x16xf32>
    %141 = vector.multi_reduction <maximumf>, %140, %cst_53 [1] : vector<2x16x16xf32> to vector<2x16xf32>
    %142 = vector.shape_cast %141 : vector<2x16xf32> to vector<2x1x16xf32>
    %143 = vector.broadcast %142 : vector<2x1x16xf32> to vector<2x16x16xf32>
    %144 = arith.subf %140, %143 : vector<2x16x16xf32>
    %145 = math.exp %144 : vector<2x16x16xf32>
    %cst_54 = arith.constant dense<0.000000e+00> : vector<2x16xf32>
    %146 = vector.multi_reduction <add>, %145, %cst_54 [1] : vector<2x16x16xf32> to vector<2x16xf32>
    %147 = vector.shape_cast %146 : vector<2x16xf32> to vector<2x1x16xf32>
    %148 = tpu.reciprocal %147 {approx = true} : vector<2x1x16xf32> -> vector<2x1x16xf32>
    %149 = vector.broadcast %148 : vector<2x1x16xf32> to vector<2x16x16xf32>
    %150 = arith.mulf %145, %149 : vector<2x16x16xf32>
    %151 = vector.shape_cast %1 : vector<16x16xf32> to vector<1x16x16xf32>
    %152 = vector.broadcast %151 : vector<1x16x16xf32> to vector<2x16x16xf32>
    %153 = arith.mulf %152, %150 : vector<2x16x16xf32>
    %cst_55 = arith.constant dense<0.000000e+00> : vector<2x16xf32>
    %154 = vector.multi_reduction <add>, %153, %cst_55 [2] : vector<2x16x16xf32> to vector<2x16xf32>
    %155 = vector.shape_cast %154 : vector<2x16xf32> to vector<2x16x1xf32>
    %cst_56 = arith.constant 0.000000e+00 : f32
    %156 = vector.broadcast %cst_56 : f32 to vector<2x16x1xf32>
    %157 = arith.cmpf ogt, %155, %156 : vector<2x16x1xf32>
    %158 = math.rsqrt %155 : vector<2x16x1xf32>
    %cst_57 = arith.constant 0.000000e+00 : f32
    %159 = vector.broadcast %cst_57 : f32 to vector<2x16x1xf32>
    %160 = arith.select %157, %158, %159 : vector<2x16x1xi1>, vector<2x16x1xf32>
    %161 = vector.broadcast %160 : vector<2x16x1xf32> to vector<2x16x64xf32>
    %162 = arith.mulf %161, %101 : vector<2x16x64xf32>
    %cst_58 = arith.constant dense<0.000000e+00> : vector<2x16x64xf32>
    %163 = tpu.matmul %153, %162, %cst_58 {dimension_numbers = #tpu.dot_dimension_numbers<[2], [1], [1], [2], [0, 0, 0, 1, 1, 2], [0], [0]>} : vector<2x16x16xf32>, vector<2x16x64xf32>, vector<2x16x64xf32> -> vector<2x16x64xf32>
    %164 = vector.broadcast %160 : vector<2x16x1xf32> to vector<2x16x64xf32>
    %165 = arith.mulf %164, %163 : vector<2x16x64xf32>
    %cst_59 = arith.constant 0.000000e+00 : f32
    %166 = vector.broadcast %cst_59 : f32 to vector<2x16x64xf32>
    %167 = arith.subf %166, %165 : vector<2x16x64xf32>
    %168 = vector.broadcast %160 : vector<2x16x1xf32> to vector<2x16x64xf32>
    %169 = arith.mulf %168, %167 : vector<2x16x64xf32>
    %cst_60 = arith.constant dense<0.000000e+00> : vector<2x16x64xf32>
    %170 = tpu.matmul %153, %169, %cst_60 {dimension_numbers = #tpu.dot_dimension_numbers<[2], [1], [1], [2], [0, 0, 0, 1, 1, 2], [0], [0]>} : vector<2x16x16xf32>, vector<2x16x64xf32>, vector<2x16x64xf32> -> vector<2x16x64xf32>
    %171 = vector.broadcast %160 : vector<2x16x1xf32> to vector<2x16x64xf32>
    %172 = arith.mulf %171, %170 : vector<2x16x64xf32>
    %cst_61 = arith.constant 0.000000e+00 : f32
    %173 = vector.broadcast %cst_61 : f32 to vector<2x16x64xf32>
    %174 = arith.subf %173, %172 : vector<2x16x64xf32>
    %cst_62 = arith.constant 2.000000e+00 : f32
    %175 = vector.broadcast %cst_62 : f32 to vector<2x16x64xf32>
    %176 = arith.mulf %175, %174 : vector<2x16x64xf32>
    %177 = arith.subf %176, %101 : vector<2x16x64xf32>
    %178 = vector.shape_cast %101 : vector<2x16x64xf32> to vector<32x64xf32>
    %179 = vector.shape_cast %167 : vector<2x16x64xf32> to vector<32x64xf32>
    %180 = vector.shape_cast %177 : vector<2x16x64xf32> to vector<32x64xf32>
    %181 = vector.extract_strided_slice %104 {offsets = [0, 0, 0], sizes = [1, 64, 32], strides = [1, 1, 1]} : vector<3x64x32xf32> to vector<1x64x32xf32>
    %182 = vector.shape_cast %181 : vector<1x64x32xf32> to vector<64x32xf32>
    %cst_63 = arith.constant dense<0.000000e+00> : vector<32x32xf32>
    %183 = tpu.matmul %178, %182, %cst_63 {dimension_numbers = #tpu.dot_dimension_numbers<[1], [0], [0], [1], [0, 0, 1, 1], [], []>} : vector<32x64xf32>, vector<64x32xf32>, vector<32x32xf32> -> vector<32x32xf32>
    %184 = vector.extract_strided_slice %104 {offsets = [1, 0, 0], sizes = [1, 64, 32], strides = [1, 1, 1]} : vector<3x64x32xf32> to vector<1x64x32xf32>
    %185 = vector.shape_cast %184 : vector<1x64x32xf32> to vector<64x32xf32>
    %cst_64 = arith.constant dense<0.000000e+00> : vector<32x32xf32>
    %186 = tpu.matmul %179, %185, %cst_64 {dimension_numbers = #tpu.dot_dimension_numbers<[1], [0], [0], [1], [0, 0, 1, 1], [], []>} : vector<32x64xf32>, vector<64x32xf32>, vector<32x32xf32> -> vector<32x32xf32>
    %187 = arith.addf %183, %186 : vector<32x32xf32>
    %188 = vector.extract_strided_slice %104 {offsets = [2, 0, 0], sizes = [1, 64, 32], strides = [1, 1, 1]} : vector<3x64x32xf32> to vector<1x64x32xf32>
    %189 = vector.shape_cast %188 : vector<1x64x32xf32> to vector<64x32xf32>
    %cst_65 = arith.constant dense<0.000000e+00> : vector<32x32xf32>
    %190 = tpu.matmul %180, %189, %cst_65 {dimension_numbers = #tpu.dot_dimension_numbers<[1], [0], [0], [1], [0, 0, 1, 1], [], []>} : vector<32x64xf32>, vector<64x32xf32>, vector<32x32xf32> -> vector<32x32xf32>
    %191 = arith.addf %187, %190 : vector<32x32xf32>
    %192 = vector.broadcast %113 : vector<1x32xf32> to vector<32x32xf32>
    %193 = arith.addf %191, %192 : vector<32x32xf32>
    %cst_66 = arith.constant 0.000000e+00 : f32
    %194 = vector.broadcast %cst_66 : f32 to vector<32x32xf32>
    %195 = arith.maximumf %193, %194 : vector<32x32xf32>
    %cst_67 = arith.constant dense<0.000000e+00> : vector<32x32xf32>
    %196 = tpu.matmul %195, %105, %cst_67 {dimension_numbers = #tpu.dot_dimension_numbers<[1], [0], [0], [1], [0, 0, 1, 1], [], []>} : vector<32x32xf32>, vector<32x32xf32>, vector<32x32xf32> -> vector<32x32xf32>
    %197 = vector.broadcast %114 : vector<1x32xf32> to vector<32x32xf32>
    %198 = arith.addf %196, %197 : vector<32x32xf32>
    %cst_68 = arith.constant 0.000000e+00 : f32
    %199 = vector.broadcast %cst_68 : f32 to vector<32x32xf32>
    %200 = arith.maximumf %198, %199 : vector<32x32xf32>
    %c0_69 = arith.constant 0 : index
    %c0_70 = arith.constant 0 : index
    %201 = vector.load %arg14[%c0_69, %c0_70] : memref<2x4xf32, #tpu.memory_space<vmem>>, vector<2x4xf32>
    %c0_71 = arith.constant 0 : index
    %c0_72 = arith.constant 0 : index
    %202 = vector.load %arg13[%c0_71, %c0_72] : memref<32x4xf32, #tpu.memory_space<vmem>>, vector<32x4xf32>
    %cst_73 = arith.constant dense<0.000000e+00> : vector<32x4xf32>
    %203 = tpu.matmul %200, %202, %cst_73 {dimension_numbers = #tpu.dot_dimension_numbers<[1], [0], [0], [1], [0, 0, 1, 1], [], []>} : vector<32x32xf32>, vector<32x4xf32>, vector<32x4xf32> -> vector<32x4xf32>
    %204 = vector.extract_strided_slice %201 {offsets = [0, 0], sizes = [1, 4], strides = [1, 1]} : vector<2x4xf32> to vector<1x4xf32>
    %205 = vector.broadcast %204 : vector<1x4xf32> to vector<32x4xf32>
    %206 = arith.addf %203, %205 : vector<32x4xf32>
    %cst_74 = arith.constant 0.000000e+00 : f32
    %207 = vector.broadcast %cst_74 : f32 to vector<32x4xf32>
    %208 = arith.maximumf %206, %207 : vector<32x4xf32>
    %209 = vector.extract_strided_slice %201 {offsets = [1, 0], sizes = [1, 4], strides = [1, 1]} : vector<2x4xf32> to vector<1x4xf32>
    %210 = vector.broadcast %209 : vector<1x4xf32> to vector<32x4xf32>
    %211 = arith.mulf %210, %208 : vector<32x4xf32>
    %c0_75 = arith.constant 0 : index
    %c0_76 = arith.constant 0 : index
    %212 = vector.load %arg15[%c0_75, %c0_76] : memref<32x4xf32, #tpu.memory_space<vmem>>, vector<32x4xf32>
    tpu.vector_store %arg15[%c0_75, %c0_76], %211 {strides = array<i32>} : memref<32x4xf32, #tpu.memory_space<vmem>>, vector<32x4xf32>,
    return
  }
  func.func @transform_0(%arg0: i32) -> (i32, i32, i32) {
    %c0_i32 = arith.constant 0 : i32
    %c0_i32_0 = arith.constant 0 : i32
    %c0_i32_1 = arith.constant 0 : i32
    return %arg0, %c0_i32, %c0_i32_0 : i32, i32, i32
  }
  func.func @transform_1(%arg0: i32) -> (i32, i32) {
    %c0_i32 = arith.constant 0 : i32
    %c0_i32_0 = arith.constant 0 : i32
    %c0_i32_1 = arith.constant 0 : i32
    return %c0_i32, %c0_i32_0 : i32, i32
  }
  func.func @transform_2(%arg0: i32) -> (i32, i32) {
    %c0_i32 = arith.constant 0 : i32
    %c0_i32_0 = arith.constant 0 : i32
    %c0_i32_1 = arith.constant 0 : i32
    return %c0_i32, %c0_i32_0 : i32, i32
  }
  func.func @transform_3(%arg0: i32) -> (i32, i32, i32) {
    %c0_i32 = arith.constant 0 : i32
    %c0_i32_0 = arith.constant 0 : i32
    %c0_i32_1 = arith.constant 0 : i32
    %c0_i32_2 = arith.constant 0 : i32
    return %c0_i32, %c0_i32_0, %c0_i32_1 : i32, i32, i32
  }
  func.func @transform_4(%arg0: i32) -> (i32, i32, i32) {
    %c0_i32 = arith.constant 0 : i32
    %c0_i32_0 = arith.constant 0 : i32
    %c0_i32_1 = arith.constant 0 : i32
    %c0_i32_2 = arith.constant 0 : i32
    return %c0_i32, %c0_i32_0, %c0_i32_1 : i32, i32, i32
  }
  func.func @transform_5(%arg0: i32) -> (i32, i32) {
    %c0_i32 = arith.constant 0 : i32
    %c0_i32_0 = arith.constant 0 : i32
    %c0_i32_1 = arith.constant 0 : i32
    return %c0_i32, %c0_i32_0 : i32, i32
  }
  func.func @transform_6(%arg0: i32) -> (i32, i32) {
    %c0_i32 = arith.constant 0 : i32
    %c0_i32_0 = arith.constant 0 : i32
    %c0_i32_1 = arith.constant 0 : i32
    return %c0_i32, %c0_i32_0 : i32, i32
  }
  func.func @transform_7(%arg0: i32) -> (i32, i32) {
    %c0_i32 = arith.constant 0 : i32
    %c0_i32_0 = arith.constant 0 : i32
    %c0_i32_1 = arith.constant 0 : i32
    return %c0_i32, %c0_i32_0 : i32, i32
  }
  func.func @transform_8(%arg0: i32) -> (i32, i32, i32) {
    %c0_i32 = arith.constant 0 : i32
    %c0_i32_0 = arith.constant 0 : i32
    %c0_i32_1 = arith.constant 0 : i32
    %c0_i32_2 = arith.constant 0 : i32
    return %c0_i32, %c0_i32_0, %c0_i32_1 : i32, i32, i32
  }
  func.func @transform_9(%arg0: i32) -> (i32, i32, i32) {
    %c0_i32 = arith.constant 0 : i32
    %c0_i32_0 = arith.constant 0 : i32
    %c0_i32_1 = arith.constant 0 : i32
    %c0_i32_2 = arith.constant 0 : i32
    return %c0_i32, %c0_i32_0, %c0_i32_1 : i32, i32, i32
  }
  func.func @transform_10(%arg0: i32) -> (i32, i32) {
    %c0_i32 = arith.constant 0 : i32
    %c0_i32_0 = arith.constant 0 : i32
    %c0_i32_1 = arith.constant 0 : i32
    return %c0_i32, %c0_i32_0 : i32, i32
  }
  func.func @transform_11(%arg0: i32) -> (i32, i32) {
    %c0_i32 = arith.constant 0 : i32
    %c0_i32_0 = arith.constant 0 : i32
    %c0_i32_1 = arith.constant 0 : i32
    return %c0_i32, %c0_i32_0 : i32, i32
  }
  func.func @transform_12(%arg0: i32) -> (i32, i32) {
    %c0_i32 = arith.constant 0 : i32
    %c0_i32_0 = arith.constant 0 : i32
    %c0_i32_1 = arith.constant 0 : i32
    return %c0_i32, %c0_i32_0 : i32, i32
  }
  func.func @transform_13(%arg0: i32) -> (i32, i32) {
    %c0_i32 = arith.constant 0 : i32
    %c0_i32_0 = arith.constant 0 : i32
    %c0_i32_1 = arith.constant 0 : i32
    return %c0_i32, %c0_i32_0 : i32, i32
  }
  func.func @transform_14(%arg0: i32) -> (i32, i32) {
    %c0_i32 = arith.constant 0 : i32
    %c0_i32_0 = arith.constant 0 : i32
    return %arg0, %c0_i32 : i32, i32
  }
}

</mosaic_0001>

<llo_original>
// kernel: astgcn_nodaily.1
$region0: #{astgcn_nodaily.1}
  #allocation0 [shape = 'u32[]', space=smem, size = 0x4, offset = 0x4, fixed_abs, tag = 'smem constant byte address 0x4 - core index']
  #allocation1 [shape = 'u32[144,128]{1,0:T(1,128)}', space=vmem, size = 0x12000, scoped, tag = 'internal scratch']
  %s0 = inlined_call_operand.vmem [shape: f32[2,16,12], index: 0, kind: input, shape index: {}]
  %s1 = inlined_call_operand.vmem [shape: f32[16,16], index: 1, kind: input, shape index: {}]
  %s2 = inlined_call_operand.vmem [shape: f32[2,12], index: 2, kind: input, shape index: {}]
  %s3 = inlined_call_operand.vmem [shape: f32[2,16,16], index: 3, kind: input, shape index: {}]
  %s4 = inlined_call_operand.vmem [shape: f32[3,12,64], index: 4, kind: input, shape index: {}]
  %s5 = inlined_call_operand.vmem [shape: f32[64,64], index: 5, kind: input, shape index: {}]
  %s6 = inlined_call_operand.vmem [shape: f32[2,64], index: 6, kind: input, shape index: {}]
  %s7 = inlined_call_operand.vmem [shape: f32[2,64], index: 7, kind: input, shape index: {}]
  %s8 = inlined_call_operand.vmem [shape: f32[2,16,16], index: 8, kind: input, shape index: {}]
  %s9 = inlined_call_operand.vmem [shape: f32[3,64,32], index: 9, kind: input, shape index: {}]
  %s10 = inlined_call_operand.vmem [shape: f32[32,32], index: 10, kind: input, shape index: {}]
  %s11 = inlined_call_operand.vmem [shape: f32[2,32], index: 11, kind: input, shape index: {}]
  %s12 = inlined_call_operand.vmem [shape: f32[32,4], index: 12, kind: input, shape index: {}]
  %s13 = inlined_call_operand.vmem [shape: f32[2,4], index: 13, kind: input, shape index: {}]
  %s14 = inlined_call_operand.vmem [shape: f32[32,4], index: 14, kind: output, shape index: {}]
  %s15 = sld [smem:[#allocation0]]
  $region66: #{astgcn_nodaily.1} parent=0
    _
  %s17 = ssub.s32 1, %s15
  %s18 = scalar_select 0, %s17, %s15
  // Predicated region
  $region2: #{astgcn_nodaily.1} parent=0 // pred_check
    _
  $region3: #{astgcn_nodaily.1} parent=0 // pred_check_branch
    %20 = sbr.rel (0) target = $region5
  $region4: #{astgcn_nodaily.1} parent=0 // pred_region
    _
  $region5: #{astgcn_nodaily.1} parent=0 // pred_fallthru
    _
  // Predicated region
  $region6: #{astgcn_nodaily.1} parent=0 // pred_check
    _
  $region7: #{astgcn_nodaily.1} parent=0 // pred_check_branch
    %22 = sbr.rel (0) target = $region9
  $region8: #{astgcn_nodaily.1} parent=0 // pred_region
    _
  $region9: #{astgcn_nodaily.1} parent=0 // pred_fallthru
    _
  // Predicated region
  $region10: #{astgcn_nodaily.1} parent=0 // pred_check
    _
  $region11: #{astgcn_nodaily.1} parent=0 // pred_check_branch
    %24 = sbr.rel (0) target = $region13
  $region12: #{astgcn_nodaily.1} parent=0 // pred_region
    _
  $region13: #{astgcn_nodaily.1} parent=0 // pred_fallthru
    _
  // Predicated region
  $region14: #{astgcn_nodaily.1} parent=0 // pred_check
    _
  $region15: #{astgcn_nodaily.1} parent=0 // pred_check_branch
    %26 = sbr.rel (0) target = $region17
  $region16: #{astgcn_nodaily.1} parent=0 // pred_region
    _
  $region17: #{astgcn_nodaily.1} parent=0 // pred_fallthru
    _
  // Predicated region
  $region18: #{astgcn_nodaily.1} parent=0 // pred_check
    _
  $region19: #{astgcn_nodaily.1} parent=0 // pred_check_branch
    %28 = sbr.rel (0) target = $region21
  $region20: #{astgcn_nodaily.1} parent=0 // pred_region
    _
  $region21: #{astgcn_nodaily.1} parent=0 // pred_fallthru
    _
  // Predicated region
  $region22: #{astgcn_nodaily.1} parent=0 // pred_check
    _
  $region23: #{astgcn_nodaily.1} parent=0 // pred_check_branch
    %30 = sbr.rel (0) target = $region25
  $region24: #{astgcn_nodaily.1} parent=0 // pred_region
    _
  $region25: #{astgcn_nodaily.1} parent=0 // pred_fallthru
    _
  // Predicated region
  $region26: #{astgcn_nodaily.1} parent=0 // pred_check
    _
  $region27: #{astgcn_nodaily.1} parent=0 // pred_check_branch
    %32 = sbr.rel (0) target = $region29
  $region28: #{astgcn_nodaily.1} parent=0 // pred_region
    _
  $region29: #{astgcn_nodaily.1} parent=0 // pred_fallthru
    _
  // Predicated region
  $region30: #{astgcn_nodaily.1} parent=0 // pred_check
    _
  $region31: #{astgcn_nodaily.1} parent=0 // pred_check_branch
    %34 = sbr.rel (0) target = $region33
  $region32: #{astgcn_nodaily.1} parent=0 // pred_region
    _
  $region33: #{astgcn_nodaily.1} parent=0 // pred_fallthru
    _
  // Predicated region
  $region34: #{astgcn_nodaily.1} parent=0 // pred_check
    _
  $region35: #{astgcn_nodaily.1} parent=0 // pred_check_branch
    %36 = sbr.rel (0) target = $region37
  $region36: #{astgcn_nodaily.1} parent=0 // pred_region
    _
  $region37: #{astgcn_nodaily.1} parent=0 // pred_fallthru
    _
  // Predicated region
  $region38: #{astgcn_nodaily.1} parent=0 // pred_check
    _
  $region39: #{astgcn_nodaily.1} parent=0 // pred_check_branch
    %38 = sbr.rel (0) target = $region41
  $region40: #{astgcn_nodaily.1} parent=0 // pred_region
    _
  $region41: #{astgcn_nodaily.1} parent=0 // pred_fallthru
    _
  // Predicated region
  $region42: #{astgcn_nodaily.1} parent=0 // pred_check
    _
  $region43: #{astgcn_nodaily.1} parent=0 // pred_check_branch
    %40 = sbr.rel (0) target = $region45
  $region44: #{astgcn_nodaily.1} parent=0 // pred_region
    _
  $region45: #{astgcn_nodaily.1} parent=0 // pred_fallthru
    _
  // Predicated region
  $region46: #{astgcn_nodaily.1} parent=0 // pred_check
    _
  $region47: #{astgcn_nodaily.1} parent=0 // pred_check_branch
    %42 = sbr.rel (0) target = $region49
  $region48: #{astgcn_nodaily.1} parent=0 // pred_region
    _
  $region49: #{astgcn_nodaily.1} parent=0 // pred_fallthru
    _
  // Predicated region
  $region50: #{astgcn_nodaily.1} parent=0 // pred_check
    _
  $region51: #{astgcn_nodaily.1} parent=0 // pred_check_branch
    %44 = sbr.rel (0) target = $region53
  $region52: #{astgcn_nodaily.1} parent=0 // pred_region
    _
  $region53: #{astgcn_nodaily.1} parent=0 // pred_fallthru
    _
  // Predicated region
  $region54: #{astgcn_nodaily.1} parent=0 // pred_check
    _
  $region55: #{astgcn_nodaily.1} parent=0 // pred_check_branch
    %46 = sbr.rel (0) target = $region57
  $region56: #{astgcn_nodaily.1} parent=0 // pred_region
    _
  $region57: #{astgcn_nodaily.1} parent=0 // pred_fallthru
    _
  %v47 = vld [vmem:[%s0] sm:$0xff]
  %v48 = vld [vmem:[%s0 + $0x8] sm:$0xff]
  %v49 = vld [vmem:[%s0 + $0x10] sm:$0xff]
  %v50 = vld [vmem:[%s0 + $0x18] sm:$0xff]
  %v51 = vld [vmem:[%s1] sm:$0xff]
  %v52 = vld [vmem:[%s1 + $0x8] sm:$0xff]
  %v53 = vld [vmem:[%s2] sm:$0x3]
  %v54 = vld [vmem:[%s3] sm:$0xff]
  %v55 = vld [vmem:[%s3 + $0x8] sm:$0xff]
  %v56 = vld [vmem:[%s3 + $0x10] sm:$0xff]
  %v57 = vld [vmem:[%s3 + $0x18] sm:$0xff]
  %v58 = vld [vmem:[%s4] sm:$0xff]
  %v59 = vld [vmem:[%s4 + $0x8] sm:$0xf]
  %v60 = vld [vmem:[%s4 + $0x10] sm:$0xff]
  %v61 = vld [vmem:[%s4 + $0x18] sm:$0xf]
  %v62 = vld [vmem:[%s4 + $0x20] sm:$0xff]
  %v63 = vld [vmem:[%s4 + $0x28] sm:$0xf]
  %v64 = vld [vmem:[%s5] sm:$0xff]
  %v65 = vld [vmem:[%s5 + $0x8] sm:$0xff]
  %v66 = vld [vmem:[%s5 + $0x10] sm:$0xff]
  %v67 = vld [vmem:[%s5 + $0x18] sm:$0xff]
  %v68 = vld [vmem:[%s5 + $0x20] sm:$0xff]
  %v69 = vld [vmem:[%s5 + $0x28] sm:$0xff]
  %v70 = vld [vmem:[%s5 + $0x30] sm:$0xff]
  %v71 = vld [vmem:[%s5 + $0x38] sm:$0xff]
  %v72 = vld [vmem:[%s6] sm:$0x3]
  %v73 = vlaneseq
  %v74 = vshrl.u32 %v73, 7
  %v75 = vsub.s32 0, %v74
  %v76 = vrot.slane %v53, %v75
  %v77 = vmul.f32 %v47, %v76
  %v78 = vmul.f32 %v48, %v76
  %v79 = vmul.f32 %v49, %v76
  %v80 = vmul.f32 %v50, %v76
  %vm81 = vcmask 97280
  %v82 = vsel %vm81, %v77, 0.0
  %83 = vadd.xlane.f32.xlu0 %v82
  %v84 = vpop.xlane.xlu0 %83
  %v85 = vsel %vm81, %v78, 0.0
  %86 = vadd.xlane.f32.xlu0 %v85
  %v87 = vpop.xlane.xlu0 %86
  %v88 = vsel %vm81, %v79, 0.0
  %89 = vadd.xlane.f32.xlu0 %v88
  %v90 = vpop.xlane.xlu0 %89
  %v91 = vsel %vm81, %v80, 0.0
  %92 = vadd.xlane.f32.xlu0 %v91
  %v93 = vpop.xlane.xlu0 %92
  %v94 = vlaneseq
  %v95 = vshrl.u32 %v94, 7
  %v96 = vsub.s32 1, %v95
  %v97 = vrot.slane %v53, %v96
  %v98 = vmul.f32 %v84, %v97
  %v99 = vmul.f32 %v87, %v97
  %v100 = vmul.f32 %v90, %v97
  %v101 = vmul.f32 %v93, %v97
  %v103 = vsel %vm81, %v98, 0
  %v106 = vsel %vm81, %v99, 0
  %v109 = vsel %vm81, %v47, 0
  %v112 = vsel %vm81, %v48, 0
  %114 = vmatprep.subr.mxu0 0.0
  %115 = vmatpush1.xpose.msra.mxu0 0.0
  %116 = vmatprep.subr.mxu0 0.0
  %117 = vmatpush1.xpose.msra.mxu0 0.0
  %118 = vmatprep.subr.mxu0 0.0
  %119 = vmatpush1.xpose.msra.mxu0 0.0
  %120 = vmatprep.subr.mxu0 0.0
  %121 = vmatpush1.xpose.msra.mxu0 0.0
  %122 = vmatprep.subr.mxu0 0.0
  %123 = vmatpush1.xpose.msra.mxu0 0.0
  %124 = vmatprep.subr.mxu0 0.0
  %125 = vmatpush1.xpose.msra.mxu0 0.0
  %126 = vmatprep.subr.mxu0 0.0
  %127 = vmatpush1.xpose.msra.mxu0 0.0
  %128 = vmatprep.subr.mxu0 0.0
  %129 = vmatpush1.xpose.msra.mxu0 0.0
  %130 = vmatprep.subr.mxu0 0.0
  %131 = vmatpush1.xpose.msra.mxu0 0.0
  %132 = vmatprep.subr.mxu0 0.0
  %133 = vmatpush1.xpose.msra.mxu0 0.0
  %134 = vmatprep.subr.mxu0 0.0
  %135 = vmatpush1.xpose.msra.mxu0 0.0
  %136 = vmatprep.subr.mxu0 0.0
  %137 = vmatpush1.xpose.msra.mxu0 0.0
  %138 = vmatprep.subr.mxu0 0.0
  %139 = vmatpush1.xpose.msra.mxu0 0.0
  %140 = vmatprep.subr.mxu0 0.0
  %141 = vmatpush1.xpose.msra.mxu0 0.0
  %142 = vmatprep.subr.mxu0 0.0
  %143 = vmatpush1.xpose.msra.mxu0 %v112
  %144 = vmatprep.subr.mxu0 0.0
  %145 = vmatpush1.xpose.msra.mxu0 %v109
  %146 = vmatprep.subr.mxu0 0.0
  %147 = vmatpush2.xpose.msra.mxu0 0.0
  %148 = vmatprep.subr.mxu0 0.0
  %149 = vmatpush2.xpose.msra.mxu0 0.0
  %150 = vmatprep.subr.mxu0 0.0
  %151 = vmatpush2.xpose.msra.mxu0 0.0
  %152 = vmatprep.subr.mxu0 0.0
  %153 = vmatpush2.xpose.msra.mxu0 0.0
  %154 = vmatprep.subr.mxu0 0.0
  %155 = vmatpush2.xpose.msra.mxu0 0.0
  %156 = vmatprep.subr.mxu0 0.0
  %157 = vmatpush2.xpose.msra.mxu0 0.0
  %158 = vmatprep.subr.mxu0 0.0
  %159 = vmatpush2.xpose.msra.mxu0 0.0
  %160 = vmatprep.subr.mxu0 0.0
  %161 = vmatpush2.xpose.msra.mxu0 0.0
  %162 = vmatprep.subr.mxu0 0.0
  %163 = vmatpush2.xpose.msra.mxu0 0.0
  %164 = vmatprep.subr.mxu0 0.0
  %165 = vmatpush2.xpose.msra.mxu0 0.0
  %166 = vmatprep.subr.mxu0 0.0
  %167 = vmatpush2.xpose.msra.mxu0 0.0
  %168 = vmatprep.subr.mxu0 0.0
  %169 = vmatpush2.xpose.msra.mxu0 0.0
  %170 = vmatprep.subr.mxu0 0.0
  %171 = vmatpush2.xpose.msra.mxu0 0.0
  %172 = vmatprep.subr.mxu0 0.0
  %173 = vmatpush2.xpose.msra.mxu0 0.0
  %174 = vmatprep.subr.mxu0 0.0
  %175 = vmatpush2.xpose.msra.mxu0 0.0
  %176 = vmatprep.subr.mxu0 0.0
  %177 = vmatpush2.xpose.msra.mxu0 0.0
  %178 = vmatprep.mubr.f32.mxu0 0.0
  %179 = vmatmul.mubr.f32.gmra.mxu0 %v103
  %v180 = vpop.f32.mrf.mxu0
  %v181 = vadd.f32 %v56, %v180
  %v182 = vpop.f32.mrf.mxu0
  %183 = vmatprep.mubr.f32.mxu0 0.0
  %184 = vmatmul.mubr.f32.gmra.mxu0 %v106
  %v185 = vpop.f32.mrf.mxu0
  %v186 = vadd.f32 %v57, %v185
  %v187 = vpop.f32.mrf.mxu0
  %188 = vdwg.mxu0
  %v190 = vsel %vm81, %v100, 0
  %v193 = vsel %vm81, %v101, 0
  %v196 = vsel %vm81, %v49, 0
  %v199 = vsel %vm81, %v50, 0
  %201 = vmatprep.subr.mxu0 0.0
  %202 = vmatpush1.xpose.msra.mxu0 0.0
  %203 = vmatprep.subr.mxu0 0.0
  %204 = vmatpush1.xpose.msra.mxu0 0.0
  %205 = vmatprep.subr.mxu0 0.0
  %206 = vmatpush1.xpose.msra.mxu0 0.0
  %207 = vmatprep.subr.mxu0 0.0
  %208 = vmatpush1.xpose.msra.mxu0 0.0
  %209 = vmatprep.subr.mxu0 0.0
  %210 = vmatpush1.xpose.msra.mxu0 0.0
  %211 = vmatprep.subr.mxu0 0.0
  %212 = vmatpush1.xpose.msra.mxu0 0.0
  %213 = vmatprep.subr.mxu0 0.0
  %214 = vmatpush1.xpose.msra.mxu0 0.0
  %215 = vmatprep.subr.mxu0 0.0
  %216 = vmatpush1.xpose.msra.mxu0 0.0
  %217 = vmatprep.subr.mxu0 0.0
  %218 = vmatpush1.xpose.msra.mxu0 0.0
  %219 = vmatprep.subr.mxu0 0.0
  %220 = vmatpush1.xpose.msra.mxu0 0.0
  %221 = vmatprep.subr.mxu0 0.0
  %222 = vmatpush1.xpose.msra.mxu0 0.0
  %223 = vmatprep.subr.mxu0 0.0
  %224 = vmatpush1.xpose.msra.mxu0 0.0
  %225 = vmatprep.subr.mxu0 0.0
  %226 = vmatpush1.xpose.msra.mxu0 0.0
  %227 = vmatprep.subr.mxu0 0.0
  %228 = vmatpush1.xpose.msra.mxu0 0.0
  %229 = vmatprep.subr.mxu0 0.0
  %230 = vmatpush1.xpose.msra.mxu0 %v199
  %231 = vmatprep.subr.mxu0 0.0
  %232 = vmatpush1.xpose.msra.mxu0 %v196
  %233 = vmatprep.subr.mxu0 0.0
  %234 = vmatpush2.xpose.msra.mxu0 0.0
  %235 = vmatprep.subr.mxu0 0.0
  %236 = vmatpush2.xpose.msra.mxu0 0.0
  %237 = vmatprep.subr.mxu0 0.0
  %238 = vmatpush2.xpose.msra.mxu0 0.0
  %239 = vmatprep.subr.mxu0 0.0
  %240 = vmatpush2.xpose.msra.mxu0 0.0
  %241 = vmatprep.subr.mxu0 0.0
  %242 = vmatpush2.xpose.msra.mxu0 0.0
  %243 = vmatprep.subr.mxu0 0.0
  %244 = vmatpush2.xpose.msra.mxu0 0.0
  %245 = vmatprep.subr.mxu0 0.0
  %246 = vmatpush2.xpose.msra.mxu0 0.0
  %247 = vmatprep.subr.mxu0 0.0
  %248 = vmatpush2.xpose.msra.mxu0 0.0
  %249 = vmatprep.subr.mxu0 0.0
  %250 = vmatpush2.xpose.msra.mxu0 0.0
  %251 = vmatprep.subr.mxu0 0.0
  %252 = vmatpush2.xpose.msra.mxu0 0.0
  %253 = vmatprep.subr.mxu0 0.0
  %254 = vmatpush2.xpose.msra.mxu0 0.0
  %255 = vmatprep.subr.mxu0 0.0
  %256 = vmatpush2.xpose.msra.mxu0 0.0
  %257 = vmatprep.subr.mxu0 0.0
  %258 = vmatpush2.xpose.msra.mxu0 0.0
  %259 = vmatprep.subr.mxu0 0.0
  %260 = vmatpush2.xpose.msra.mxu0 0.0
  %261 = vmatprep.subr.mxu0 0.0
  %262 = vmatpush2.xpose.msra.mxu0 0.0
  %263 = vmatprep.subr.mxu0 0.0
  %264 = vmatpush2.xpose.msra.mxu0 0.0
  %265 = vmatprep.mubr.f32.mxu0 0.0
  %266 = vmatmul.mubr.f32.gmra.mxu0 %v190
  %v267 = vpop.f32.mrf.mxu0
  %v268 = vadd.f32 %v56, %v267
  %v269 = vpop.f32.mrf.mxu0
  %270 = vmatprep.mubr.f32.mxu0 0.0
  %271 = vmatmul.mubr.f32.gmra.mxu0 %v193
  %v272 = vpop.f32.mrf.mxu0
  %v273 = vadd.f32 %v57, %v272
  %v274 = vpop.f32.mrf.mxu0
  %275 = vdwg.mxu0
  %vm276 = vcmask 130048
  %v277 = vsel %vm276, %v181, -inf
  %v278 = vsel %vm276, %v186, -inf
  %v279 = vmax.f32 %v277, %v278
  %v280 = vrot.slane %v279, 4
  %v281 = vmax.f32 %v279, %v280
  %v282 = vrot.slane %v281, 2
  %v283 = vmax.f32 %v281, %v282
  %v284 = vrot.slane %v283, 1
  %v285 = vmax.f32 %v283, %v284
  %v286 = vsel %vm276, %v268, -inf
  %v287 = vsel %vm276, %v273, -inf
  %v288 = vmax.f32 %v286, %v287
  %v289 = vrot.slane %v288, 4
  %v290 = vmax.f32 %v288, %v289
  %v291 = vrot.slane %v290, 2
  %v292 = vmax.f32 %v290, %v291
  %v293 = vrot.slane %v292, 1
  %v294 = vmax.f32 %v292, %v293
  %v295 = vsub.f32 %v181, %v285
  %v296 = vsub.f32 %v186, %v285
  %v297 = vsub.f32 %v268, %v294
  %v298 = vsub.f32 %v273, %v294
  %v299 = vmul.f32 %v295, 1.442695
  %v300 = vpow.pop %v299
  %v301 = vmul.f32 %v296, 1.442695
  %v302 = vpow.pop %v301
  %v303 = vmul.f32 %v297, 1.442695
  %v304 = vpow.pop %v303
  %v305 = vmul.f32 %v298, 1.442695
  %v306 = vpow.pop %v305
  %v307 = vsel %vm276, %v300, 0.0
  %v308 = vsel %vm276, %v302, 0.0
  %v309 = vadd.f32 %v307, %v308
  %v310 = vrot.slane %v309, 4
  %v311 = vadd.f32 %v309, %v310
  %v312 = vrot.slane %v311, 2
  %v313 = vadd.f32 %v311, %v312
  %v314 = vrot.slane %v313, 1
  %v315 = vadd.f32 %v313, %v314
  %v316 = vsel %vm276, %v304, 0.0
  %v317 = vsel %vm276, %v306, 0.0
  %v318 = vadd.f32 %v316, %v317
  %v319 = vrot.slane %v318, 4
  %v320 = vadd.f32 %v318, %v319
  %v321 = vrot.slane %v320, 2
  %v322 = vadd.f32 %v320, %v321
  %v323 = vrot.slane %v322, 1
  %v324 = vadd.f32 %v322, %v323
  %v325 = vrcp.pop %v315
  %v326 = vrcp.pop %v324
  %v327 = vmul.f32 %v300, %v325
  %v328 = vmul.f32 %v302, %v325
  %v329 = vmul.f32 %v304, %v326
  %v330 = vmul.f32 %v306, %v326
  %v332 = vsel %vm276, %v54, 0
  %v335 = vsel %vm276, %v55, 0
  %337 = vmatprep.subr.mxu0 0.0
  %338 = vmatpush1.msra.mxu0 0.0
  %339 = vmatprep.subr.mxu0 0.0
  %340 = vmatpush1.msra.mxu0 0.0
  %341 = vmatprep.subr.mxu0 0.0
  %342 = vmatpush1.msra.mxu0 0.0
  %343 = vmatprep.subr.mxu0 0.0
  %344 = vmatpush1.msra.mxu0 0.0
  %345 = vmatprep.subr.mxu0 0.0
  %346 = vmatpush1.msra.mxu0 0.0
  %347 = vmatprep.subr.mxu0 0.0
  %348 = vmatpush1.msra.mxu0 0.0
  %349 = vmatprep.subr.mxu0 0.0
  %350 = vmatpush1.msra.mxu0 0.0
  %351 = vmatprep.subr.mxu0 0.0
  %352 = vmatpush1.msra.mxu0 0.0
  %353 = vmatprep.subr.mxu0 0.0
  %354 = vmatpush1.msra.mxu0 0.0
  %355 = vmatprep.subr.mxu0 0.0
  %356 = vmatpush1.msra.mxu0 0.0
  %357 = vmatprep.subr.mxu0 0.0
  %358 = vmatpush1.msra.mxu0 0.0
  %359 = vmatprep.subr.mxu0 0.0
  %360 = vmatpush1.msra.mxu0 0.0
  %361 = vmatprep.subr.mxu0 0.0
  %362 = vmatpush1.msra.mxu0 0.0
  %363 = vmatprep.subr.mxu0 0.0
  %364 = vmatpush1.msra.mxu0 0.0
  %365 = vmatprep.subr.mxu0 0.0
  %366 = vmatpush1.msra.mxu0 %v328
  %367 = vmatprep.subr.mxu0 0.0
  %368 = vmatpush1.msra.mxu0 %v327
  %369 = vmatprep.subr.mxu0 0.0
  %370 = vmatpush2.msra.mxu0 0.0
  %371 = vmatprep.subr.mxu0 0.0
  %372 = vmatpush2.msra.mxu0 0.0
  %373 = vmatprep.subr.mxu0 0.0
  %374 = vmatpush2.msra.mxu0 0.0
  %375 = vmatprep.subr.mxu0 0.0
  %376 = vmatpush2.msra.mxu0 0.0
  %377 = vmatprep.subr.mxu0 0.0
  %378 = vmatpush2.msra.mxu0 0.0
  %379 = vmatprep.subr.mxu0 0.0
  %380 = vmatpush2.msra.mxu0 0.0
  %381 = vmatprep.subr.mxu0 0.0
  %382 = vmatpush2.msra.mxu0 0.0
  %383 = vmatprep.subr.mxu0 0.0
  %384 = vmatpush2.msra.mxu0 0.0
  %385 = vmatprep.subr.mxu0 0.0
  %386 = vmatpush2.msra.mxu0 0.0
  %387 = vmatprep.subr.mxu0 0.0
  %388 = vmatpush2.msra.mxu0 0.0
  %389 = vmatprep.subr.mxu0 0.0
  %390 = vmatpush2.msra.mxu0 0.0
  %391 = vmatprep.subr.mxu0 0.0
  %392 = vmatpush2.msra.mxu0 0.0
  %393 = vmatprep.subr.mxu0 0.0
  %394 = vmatpush2.msra.mxu0 0.0
  %395 = vmatprep.subr.mxu0 0.0
  %396 = vmatpush2.msra.mxu0 0.0
  %397 = vmatprep.subr.mxu0 0.0
  %398 = vmatpush2.msra.mxu0 0.0
  %399 = vmatprep.subr.mxu0 0.0
  %400 = vmatpush2.msra.mxu0 0.0
  %401 = vmatprep.mubr.f32.mxu0 0.0
  %402 = vmatmul.mubr.f32.gmra.mxu0 %v332
  %v403 = vpop.f32.mrf.mxu0
  %v404 = vadd.f32 0.0, %v403
  %v405 = vpop.f32.mrf.mxu0
  %406 = vmatprep.mubr.f32.mxu0 0.0
  %407 = vmatmul.mubr.f32.gmra.mxu0 %v335
  %v408 = vpop.f32.mrf.mxu0
  %v409 = vadd.f32 0.0, %v408
  %v410 = vpop.f32.mrf.mxu0
  %411 = vdwg.mxu0
  %412 = vmatprep.subr.mxu0 0.0
  %413 = vmatpush1.msra.mxu0 0.0
  %414 = vmatprep.subr.mxu0 0.0
  %415 = vmatpush1.msra.mxu0 0.0
  %416 = vmatprep.subr.mxu0 0.0
  %417 = vmatpush1.msra.mxu0 0.0
  %418 = vmatprep.subr.mxu0 0.0
  %419 = vmatpush1.msra.mxu0 0.0
  %420 = vmatprep.subr.mxu0 0.0
  %421 = vmatpush1.msra.mxu0 0.0
  %422 = vmatprep.subr.mxu0 0.0
  %423 = vmatpush1.msra.mxu0 0.0
  %424 = vmatprep.subr.mxu0 0.0
  %425 = vmatpush1.msra.mxu0 0.0
  %426 = vmatprep.subr.mxu0 0.0
  %427 = vmatpush1.msra.mxu0 0.0
  %428 = vmatprep.subr.mxu0 0.0
  %429 = vmatpush1.msra.mxu0 0.0
  %430 = vmatprep.subr.mxu0 0.0
  %431 = vmatpush1.msra.mxu0 0.0
  %432 = vmatprep.subr.mxu0 0.0
  %433 = vmatpush1.msra.mxu0 0.0
  %434 = vmatprep.subr.mxu0 0.0
  %435 = vmatpush1.msra.mxu0 0.0
  %436 = vmatprep.subr.mxu0 0.0
  %437 = vmatpush1.msra.mxu0 0.0
  %438 = vmatprep.subr.mxu0 0.0
  %439 = vmatpush1.msra.mxu0 0.0
  %440 = vmatprep.subr.mxu0 0.0
  %441 = vmatpush1.msra.mxu0 %v330
  %442 = vmatprep.subr.mxu0 0.0
  %443 = vmatpush1.msra.mxu0 %v329
  %444 = vmatprep.subr.mxu0 0.0
  %445 = vmatpush2.msra.mxu0 0.0
  %446 = vmatprep.subr.mxu0 0.0
  %447 = vmatpush2.msra.mxu0 0.0
  %448 = vmatprep.subr.mxu0 0.0
  %449 = vmatpush2.msra.mxu0 0.0
  %450 = vmatprep.subr.mxu0 0.0
  %451 = vmatpush2.msra.mxu0 0.0
  %452 = vmatprep.subr.mxu0 0.0
  %453 = vmatpush2.msra.mxu0 0.0
  %454 = vmatprep.subr.mxu0 0.0
  %455 = vmatpush2.msra.mxu0 0.0
  %456 = vmatprep.subr.mxu0 0.0
  %457 = vmatpush2.msra.mxu0 0.0
  %458 = vmatprep.subr.mxu0 0.0
  %459 = vmatpush2.msra.mxu0 0.0
  %460 = vmatprep.subr.mxu0 0.0
  %461 = vmatpush2.msra.mxu0 0.0
  %462 = vmatprep.subr.mxu0 0.0
  %463 = vmatpush2.msra.mxu0 0.0
  %464 = vmatprep.subr.mxu0 0.0
  %465 = vmatpush2.msra.mxu0 0.0
  %466 = vmatprep.subr.mxu0 0.0
  %467 = vmatpush2.msra.mxu0 0.0
  %468 = vmatprep.subr.mxu0 0.0
  %469 = vmatpush2.msra.mxu0 0.0
  %470 = vmatprep.subr.mxu0 0.0
  %471 = vmatpush2.msra.mxu0 0.0
  %472 = vmatprep.subr.mxu0 0.0
  %473 = vmatpush2.msra.mxu0 0.0
  %474 = vmatprep.subr.mxu0 0.0
  %475 = vmatpush2.msra.mxu0 0.0
  %476 = vmatprep.mubr.f32.mxu0 0.0
  %477 = vmatmul.mubr.f32.gmra.mxu0 %v332
  %v478 = vpop.f32.mrf.mxu0
  %v479 = vadd.f32 0.0, %v478
  %v480 = vpop.f32.mrf.mxu0
  %481 = vmatprep.mubr.f32.mxu0 0.0
  %482 = vmatmul.mubr.f32.gmra.mxu0 %v335
  %v483 = vpop.f32.mrf.mxu0
  %v484 = vadd.f32 0.0, %v483
  %v485 = vpop.f32.mrf.mxu0
  %486 = vdwg.mxu0
  %v487 = vsel %vm276, %v404, -inf
  %v488 = vsel %vm276, %v409, -inf
  %v489 = vmax.f32 %v487, %v488
  %v490 = vrot.slane %v489, 4
  %v491 = vmax.f32 %v489, %v490
  %v492 = vrot.slane %v491, 2
  %v493 = vmax.f32 %v491, %v492
  %v494 = vrot.slane %v493, 1
  %v495 = vmax.f32 %v493, %v494
  %v496 = vsel %vm276, %v479, -inf
  %v497 = vsel %vm276, %v484, -inf
  %v498 = vmax.f32 %v496, %v497
  %v499 = vrot.slane %v498, 4
  %v500 = vmax.f32 %v498, %v499
  %v501 = vrot.slane %v500, 2
  %v502 = vmax.f32 %v500, %v501
  %v503 = vrot.slane %v502, 1
  %v504 = vmax.f32 %v502, %v503
  %v505 = vsub.f32 %v404, %v495
  %v506 = vsub.f32 %v409, %v495
  %v507 = vsub.f32 %v479, %v504
  %v508 = vsub.f32 %v484, %v504
  %v509 = vmul.f32 %v505, 1.442695
  %v510 = vpow.pop %v509
  %v511 = vmul.f32 %v506, 1.442695
  %v512 = vpow.pop %v511
  %v513 = vmul.f32 %v507, 1.442695
  %v514 = vpow.pop %v513
  %v515 = vmul.f32 %v508, 1.442695
  %v516 = vpow.pop %v515
  %v517 = vsel %vm276, %v510, 0.0
  %v518 = vsel %vm276, %v512, 0.0
  %v519 = vadd.f32 %v517, %v518
  %v520 = vrot.slane %v519, 4
  %v521 = vadd.f32 %v519, %v520
  %v522 = vrot.slane %v521, 2
  %v523 = vadd.f32 %v521, %v522
  %v524 = vrot.slane %v523, 1
  %v525 = vadd.f32 %v523, %v524
  %v526 = vsel %vm276, %v514, 0.0
  %v527 = vsel %vm276, %v516, 0.0
  %v528 = vadd.f32 %v526, %v527
  %v529 = vrot.slane %v528, 4
  %v530 = vadd.f32 %v528, %v529
  %v531 = vrot.slane %v530, 2
  %v532 = vadd.f32 %v530, %v531
  %v533 = vrot.slane %v532, 1
  %v534 = vadd.f32 %v532, %v533
  %v535 = vrcp.pop %v525
  %v536 = vrcp.pop %v534
  %v537 = vmul.f32 %v510, %v535
  %v538 = vmul.f32 %v512, %v535
  %v539 = vmul.f32 %v514, %v536
  %v540 = vmul.f32 %v516, %v536
  %v541 = vmul.f32 %v51, %v537
  %v542 = vmul.f32 %v52, %v538
  %v543 = vmul.f32 %v51, %v539
  %v544 = vmul.f32 %v52, %v540
  %v545 = vsel %vm276, %v541, 0.0
  %546 = vadd.xlane.f32.xlu0 %v545
  %v547 = vpop.xlane.xlu0 %546
  %v548 = vsel %vm276, %v542, 0.0
  %549 = vadd.xlane.f32.xlu0 %v548
  %v550 = vpop.xlane.xlu0 %549
  %v551 = vsel %vm276, %v543, 0.0
  %552 = vadd.xlane.f32.xlu0 %v551
  %v553 = vpop.xlane.xlu0 %552
  %v554 = vsel %vm276, %v544, 0.0
  %555 = vadd.xlane.f32.xlu0 %v554
  %v556 = vpop.xlane.xlu0 %555
  %vm557 = vcmp.gt.f32.partialorder %v547, 0.0
  %vm558 = vcmp.gt.f32.partialorder %v550, 0.0
  %vm559 = vcmp.gt.f32.partialorder %v553, 0.0
  %vm560 = vcmp.gt.f32.partialorder %v556, 0.0
  %v561 = vrsqrt.pop %v547
  %v562 = vrsqrt.pop %v550
  %v563 = vrsqrt.pop %v553
  %v564 = vrsqrt.pop %v556
  %v565 = vsel %vm557, %v561, 0.0
  %v566 = vsel %vm558, %v562, 0.0
  %v567 = vsel %vm559, %v563, 0.0
  %v568 = vsel %vm560, %v564, 0.0
  %v569 = vmul.f32 %v565, %v47
  %v570 = vmul.f32 %v566, %v48
  %v571 = vmul.f32 %v567, %v49
  %v572 = vmul.f32 %v568, %v50
  %v574 = vsel %vm276, %v541, 0
  %v577 = vsel %vm276, %v542, 0
  %579 = vmatprep.subr.mxu0 0.0
  %580 = vmatpush1.msra.mxu0 0.0
  %581 = vmatprep.subr.mxu0 0.0
  %582 = vmatpush1.msra.mxu0 0.0
  %583 = vmatprep.subr.mxu0 0.0
  %584 = vmatpush1.msra.mxu0 0.0
  %585 = vmatprep.subr.mxu0 0.0
  %586 = vmatpush1.msra.mxu0 0.0
  %587 = vmatprep.subr.mxu0 0.0
  %588 = vmatpush1.msra.mxu0 0.0
  %589 = vmatprep.subr.mxu0 0.0
  %590 = vmatpush1.msra.mxu0 0.0
  %591 = vmatprep.subr.mxu0 0.0
  %592 = vmatpush1.msra.mxu0 0.0
  %593 = vmatprep.subr.mxu0 0.0
  %594 = vmatpush1.msra.mxu0 0.0
  %595 = vmatprep.subr.mxu0 0.0
  %596 = vmatpush1.msra.mxu0 0.0
  %597 = vmatprep.subr.mxu0 0.0
  %598 = vmatpush1.msra.mxu0 0.0
  %599 = vmatprep.subr.mxu0 0.0
  %600 = vmatpush1.msra.mxu0 0.0
  %601 = vmatprep.subr.mxu0 0.0
  %602 = vmatpush1.msra.mxu0 0.0
  %603 = vmatprep.subr.mxu0 0.0
  %604 = vmatpush1.msra.mxu0 0.0
  %605 = vmatprep.subr.mxu0 0.0
  %606 = vmatpush1.msra.mxu0 0.0
  %607 = vmatprep.subr.mxu0 0.0
  %608 = vmatpush1.msra.mxu0 %v570
  %609 = vmatprep.subr.mxu0 0.0
  %610 = vmatpush1.msra.mxu0 %v569
  %611 = vmatprep.subr.mxu0 0.0
  %612 = vmatpush2.msra.mxu0 0.0
  %613 = vmatprep.subr.mxu0 0.0
  %614 = vmatpush2.msra.mxu0 0.0
  %615 = vmatprep.subr.mxu0 0.0
  %616 = vmatpush2.msra.mxu0 0.0
  %617 = vmatprep.subr.mxu0 0.0
  %618 = vmatpush2.msra.mxu0 0.0
  %619 = vmatprep.subr.mxu0 0.0
  %620 = vmatpush2.msra.mxu0 0.0
  %621 = vmatprep.subr.mxu0 0.0
  %622 = vmatpush2.msra.mxu0 0.0
  %623 = vmatprep.subr.mxu0 0.0
  %624 = vmatpush2.msra.mxu0 0.0
  %625 = vmatprep.subr.mxu0 0.0
  %626 = vmatpush2.msra.mxu0 0.0
  %627 = vmatprep.subr.mxu0 0.0
  %628 = vmatpush2.msra.mxu0 0.0
  %629 = vmatprep.subr.mxu0 0.0
  %630 = vmatpush2.msra.mxu0 0.0
  %631 = vmatprep.subr.mxu0 0.0
  %632 = vmatpush2.msra.mxu0 0.0
  %633 = vmatprep.subr.mxu0 0.0
  %634 = vmatpush2.msra.mxu0 0.0
  %635 = vmatprep.subr.mxu0 0.0
  %636 = vmatpush2.msra.mxu0 0.0
  %637 = vmatprep.subr.mxu0 0.0
  %638 = vmatpush2.msra.mxu0 0.0
  %639 = vmatprep.subr.mxu0 0.0
  %640 = vmatpush2.msra.mxu0 0.0
  %641 = vmatprep.subr.mxu0 0.0
  %642 = vmatpush2.msra.mxu0 0.0
  %643 = vmatprep.mubr.f32.mxu0 0.0
  %644 = vmatmul.mubr.f32.gmra.mxu0 %v574
  %v645 = vpop.f32.mrf.mxu0
  %v646 = vadd.f32 0.0, %v645
  %v647 = vpop.f32.mrf.mxu0
  %648 = vmatprep.mubr.f32.mxu0 0.0
  %649 = vmatmul.mubr.f32.gmra.mxu0 %v577
  %v650 = vpop.f32.mrf.mxu0
  %v651 = vadd.f32 0.0, %v650
  %v652 = vpop.f32.mrf.mxu0
  %653 = vdwg.mxu0
  %v655 = vsel %vm276, %v543, 0
  %v658 = vsel %vm276, %v544, 0
  %660 = vmatprep.subr.mxu0 0.0
  %661 = vmatpush1.msra.mxu0 0.0
  %662 = vmatprep.subr.mxu0 0.0
  %663 = vmatpush1.msra.mxu0 0.0
  %664 = vmatprep.subr.mxu0 0.0
  %665 = vmatpush1.msra.mxu0 0.0
  %666 = vmatprep.subr.mxu0 0.0
  %667 = vmatpush1.msra.mxu0 0.0
  %668 = vmatprep.subr.mxu0 0.0
  %669 = vmatpush1.msra.mxu0 0.0
  %670 = vmatprep.subr.mxu0 0.0
  %671 = vmatpush1.msra.mxu0 0.0
  %672 = vmatprep.subr.mxu0 0.0
  %673 = vmatpush1.msra.mxu0 0.0
  %674 = vmatprep.subr.mxu0 0.0
  %675 = vmatpush1.msra.mxu0 0.0
  %676 = vmatprep.subr.mxu0 0.0
  %677 = vmatpush1.msra.mxu0 0.0
  %678 = vmatprep.subr.mxu0 0.0
  %679 = vmatpush1.msra.mxu0 0.0
  %680 = vmatprep.subr.mxu0 0.0
  %681 = vmatpush1.msra.mxu0 0.0
  %682 = vmatprep.subr.mxu0 0.0
  %683 = vmatpush1.msra.mxu0 0.0
  %684 = vmatprep.subr.mxu0 0.0
  %685 = vmatpush1.msra.mxu0 0.0
  %686 = vmatprep.subr.mxu0 0.0
  %687 = vmatpush1.msra.mxu0 0.0
  %688 = vmatprep.subr.mxu0 0.0
  %689 = vmatpush1.msra.mxu0 %v572
  %690 = vmatprep.subr.mxu0 0.0
  %691 = vmatpush1.msra.mxu0 %v571
  %692 = vmatprep.subr.mxu0 0.0
  %693 = vmatpush2.msra.mxu0 0.0
  %694 = vmatprep.subr.mxu0 0.0
  %695 = vmatpush2.msra.mxu0 0.0
  %696 = vmatprep.subr.mxu0 0.0
  %697 = vmatpush2.msra.mxu0 0.0
  %698 = vmatprep.subr.mxu0 0.0
  %699 = vmatpush2.msra.mxu0 0.0
  %700 = vmatprep.subr.mxu0 0.0
  %701 = vmatpush2.msra.mxu0 0.0
  %702 = vmatprep.subr.mxu0 0.0
  %703 = vmatpush2.msra.mxu0 0.0
  %704 = vmatprep.subr.mxu0 0.0
  %705 = vmatpush2.msra.mxu0 0.0
  %706 = vmatprep.subr.mxu0 0.0
  %707 = vmatpush2.msra.mxu0 0.0
  %708 = vmatprep.subr.mxu0 0.0
  %709 = vmatpush2.msra.mxu0 0.0
  %710 = vmatprep.subr.mxu0 0.0
  %711 = vmatpush2.msra.mxu0 0.0
  %712 = vmatprep.subr.mxu0 0.0
  %713 = vmatpush2.msra.mxu0 0.0
  %714 = vmatprep.subr.mxu0 0.0
  %715 = vmatpush2.msra.mxu0 0.0
  %716 = vmatprep.subr.mxu0 0.0
  %717 = vmatpush2.msra.mxu0 0.0
  %718 = vmatprep.subr.mxu0 0.0
  %719 = vmatpush2.msra.mxu0 0.0
  %720 = vmatprep.subr.mxu0 0.0
  %721 = vmatpush2.msra.mxu0 0.0
  %722 = vmatprep.subr.mxu0 0.0
  %723 = vmatpush2.msra.mxu0 0.0
  %724 = vmatprep.mubr.f32.mxu0 0.0
  %725 = vmatmul.mubr.f32.gmra.mxu0 %v655
  %v726 = vpop.f32.mrf.mxu0
  %v727 = vadd.f32 0.0, %v726
  %v728 = vpop.f32.mrf.mxu0
  %729 = vmatprep.mubr.f32.mxu0 0.0
  %730 = vmatmul.mubr.f32.gmra.mxu0 %v658
  %v731 = vpop.f32.mrf.mxu0
  %v732 = vadd.f32 0.0, %v731
  %v733 = vpop.f32.mrf.mxu0
  %734 = vdwg.mxu0
  %v735 = vmul.f32 %v565, %v646
  %v736 = vmul.f32 %v566, %v651
  %v737 = vmul.f32 %v567, %v727
  %v738 = vmul.f32 %v568, %v732
  %v739 = vsub.f32 0.0, %v735
  %v740 = vsub.f32 0.0, %v736
  %v741 = vsub.f32 0.0, %v737
  %v742 = vsub.f32 0.0, %v738
  %v743 = vmul.f32 %v565, %v739
  %v744 = vmul.f32 %v566, %v740
  %v745 = vmul.f32 %v567, %v741
  %v746 = vmul.f32 %v568, %v742
  %747 = vmatprep.subr.mxu0 0.0
  %748 = vmatpush1.msra.mxu0 0.0
  %749 = vmatprep.subr.mxu0 0.0
  %750 = vmatpush1.msra.mxu0 0.0
  %751 = vmatprep.subr.mxu0 0.0
  %752 = vmatpush1.msra.mxu0 0.0
  %753 = vmatprep.subr.mxu0 0.0
  %754 = vmatpush1.msra.mxu0 0.0
  %755 = vmatprep.subr.mxu0 0.0
  %756 = vmatpush1.msra.mxu0 0.0
  %757 = vmatprep.subr.mxu0 0.0
  %758 = vmatpush1.msra.mxu0 0.0
  %759 = vmatprep.subr.mxu0 0.0
  %760 = vmatpush1.msra.mxu0 0.0
  %761 = vmatprep.subr.mxu0 0.0
  %762 = vmatpush1.msra.mxu0 0.0
  %763 = vmatprep.subr.mxu0 0.0
  %764 = vmatpush1.msra.mxu0 0.0
  %765 = vmatprep.subr.mxu0 0.0
  %766 = vmatpush1.msra.mxu0 0.0
  %767 = vmatprep.subr.mxu0 0.0
  %768 = vmatpush1.msra.mxu0 0.0
  %769 = vmatprep.subr.mxu0 0.0
  %770 = vmatpush1.msra.mxu0 0.0
  %771 = vmatprep.subr.mxu0 0.0
  %772 = vmatpush1.msra.mxu0 0.0
  %773 = vmatprep.subr.mxu0 0.0
  %774 = vmatpush1.msra.mxu0 0.0
  %775 = vmatprep.subr.mxu0 0.0
  %776 = vmatpush1.msra.mxu0 %v744
  %777 = vmatprep.subr.mxu0 0.0
  %778 = vmatpush1.msra.mxu0 %v743
  %779 = vmatprep.subr.mxu0 0.0
  %780 = vmatpush2.msra.mxu0 0.0
  %781 = vmatprep.subr.mxu0 0.0
  %782 = vmatpush2.msra.mxu0 0.0
  %783 = vmatprep.subr.mxu0 0.0
  %784 = vmatpush2.msra.mxu0 0.0
  %785 = vmatprep.subr.mxu0 0.0
  %786 = vmatpush2.msra.mxu0 0.0
  %787 = vmatprep.subr.mxu0 0.0
  %788 = vmatpush2.msra.mxu0 0.0
  %789 = vmatprep.subr.mxu0 0.0
  %790 = vmatpush2.msra.mxu0 0.0
  %791 = vmatprep.subr.mxu0 0.0
  %792 = vmatpush2.msra.mxu0 0.0
  %793 = vmatprep.subr.mxu0 0.0
  %794 = vmatpush2.msra.mxu0 0.0
  %795 = vmatprep.subr.mxu0 0.0
  %796 = vmatpush2.msra.mxu0 0.0
  %797 = vmatprep.subr.mxu0 0.0
  %798 = vmatpush2.msra.mxu0 0.0
  %799 = vmatprep.subr.mxu0 0.0
  %800 = vmatpush2.msra.mxu0 0.0
  %801 = vmatprep.subr.mxu0 0.0
  %802 = vmatpush2.msra.mxu0 0.0
  %803 = vmatprep.subr.mxu0 0.0
  %804 = vmatpush2.msra.mxu0 0.0
  %805 = vmatprep.subr.mxu0 0.0
  %806 = vmatpush2.msra.mxu0 0.0
  %807 = vmatprep.subr.mxu0 0.0
  %808 = vmatpush2.msra.mxu0 0.0
  %809 = vmatprep.subr.mxu0 0.0
  %810 = vmatpush2.msra.mxu0 0.0
  %811 = vmatprep.mubr.f32.mxu0 0.0
  %812 = vmatmul.mubr.f32.gmra.mxu0 %v574
  %v813 = vpop.f32.mrf.mxu0
  %v814 = vadd.f32 0.0, %v813
  %v815 = vpop.f32.mrf.mxu0
  %816 = vmatprep.mubr.f32.mxu0 0.0
  %817 = vmatmul.mubr.f32.gmra.mxu0 %v577
  %v818 = vpop.f32.mrf.mxu0
  %v819 = vadd.f32 0.0, %v818
  %v820 = vpop.f32.mrf.mxu0
  %821 = vdwg.mxu0
  %822 = vmatprep.subr.mxu0 0.0
  %823 = vmatpush1.msra.mxu0 0.0
  %824 = vmatprep.subr.mxu0 0.0
  %825 = vmatpush1.msra.mxu0 0.0
  %826 = vmatprep.subr.mxu0 0.0
  %827 = vmatpush1.msra.mxu0 0.0
  %828 = vmatprep.subr.mxu0 0.0
  %829 = vmatpush1.msra.mxu0 0.0
  %830 = vmatprep.subr.mxu0 0.0
  %831 = vmatpush1.msra.mxu0 0.0
  %832 = vmatprep.subr.mxu0 0.0
  %833 = vmatpush1.msra.mxu0 0.0
  %834 = vmatprep.subr.mxu0 0.0
  %835 = vmatpush1.msra.mxu0 0.0
  %836 = vmatprep.subr.mxu0 0.0
  %837 = vmatpush1.msra.mxu0 0.0
  %838 = vmatprep.subr.mxu0 0.0
  %839 = vmatpush1.msra.mxu0 0.0
  %840 = vmatprep.subr.mxu0 0.0
  %841 = vmatpush1.msra.mxu0 0.0
  %842 = vmatprep.subr.mxu0 0.0
  %843 = vmatpush1.msra.mxu0 0.0
  %844 = vmatprep.subr.mxu0 0.0
  %845 = vmatpush1.msra.mxu0 0.0
  %846 = vmatprep.subr.mxu0 0.0
  %847 = vmatpush1.msra.mxu0 0.0
  %848 = vmatprep.subr.mxu0 0.0
  %849 = vmatpush1.msra.mxu0 0.0
  %850 = vmatprep.subr.mxu0 0.0
  %851 = vmatpush1.msra.mxu0 %v746
  %852 = vmatprep.subr.mxu0 0.0
  %853 = vmatpush1.msra.mxu0 %v745
  %854 = vmatprep.subr.mxu0 0.0
  %855 = vmatpush2.msra.mxu0 0.0
  %856 = vmatprep.subr.mxu0 0.0
  %857 = vmatpush2.msra.mxu0 0.0
  %858 = vmatprep.subr.mxu0 0.0
  %859 = vmatpush2.msra.mxu0 0.0
  %860 = vmatprep.subr.mxu0 0.0
  %861 = vmatpush2.msra.mxu0 0.0
  %862 = vmatprep.subr.mxu0 0.0
  %863 = vmatpush2.msra.mxu0 0.0
  %864 = vmatprep.subr.mxu0 0.0
  %865 = vmatpush2.msra.mxu0 0.0
  %866 = vmatprep.subr.mxu0 0.0
  %867 = vmatpush2.msra.mxu0 0.0
  %868 = vmatprep.subr.mxu0 0.0
  %869 = vmatpush2.msra.mxu0 0.0
  %870 = vmatprep.subr.mxu0 0.0
  %871 = vmatpush2.msra.mxu0 0.0
  %872 = vmatprep.subr.mxu0 0.0
  %873 = vmatpush2.msra.mxu0 0.0
  %874 = vmatprep.subr.mxu0 0.0
  %875 = vmatpush2.msra.mxu0 0.0
  %876 = vmatprep.subr.mxu0 0.0
  %877 = vmatpush2.msra.mxu0 0.0
  %878 = vmatprep.subr.mxu0 0.0
  %879 = vmatpush2.msra.mxu0 0.0
  %880 = vmatprep.subr.mxu0 0.0
  %881 = vmatpush2.msra.mxu0 0.0
  %882 = vmatprep.subr.mxu0 0.0
  %883 = vmatpush2.msra.mxu0 0.0
  %884 = vmatprep.subr.mxu0 0.0
  %885 = vmatpush2.msra.mxu0 0.0
  %886 = vmatprep.mubr.f32.mxu0 0.0
  %887 = vmatmul.mubr.f32.gmra.mxu0 %v655
  %v888 = vpop.f32.mrf.mxu0
  %v889 = vadd.f32 0.0, %v888
  %v890 = vpop.f32.mrf.mxu0
  %891 = vmatprep.mubr.f32.mxu0 0.0
  %892 = vmatmul.mubr.f32.gmra.mxu0 %v658
  %v893 = vpop.f32.mrf.mxu0
  %v894 = vadd.f32 0.0, %v893
  %v895 = vpop.f32.mrf.mxu0
  %896 = vdwg.mxu0
  %v897 = vmul.f32 %v565, %v814
  %v898 = vmul.f32 %v566, %v819
  %v899 = vmul.f32 %v567, %v889
  %v900 = vmul.f32 %v568, %v894
  %v901 = vsub.f32 0.0, %v897
  %v902 = vsub.f32 0.0, %v898
  %v903 = vsub.f32 0.0, %v899
  %v904 = vsub.f32 0.0, %v900
  %v905 = vmul.f32 %v901, 2.0
  %v906 = vmul.f32 %v902, 2.0
  %v907 = vmul.f32 %v903, 2.0
  %v908 = vmul.f32 %v904, 2.0
  %v909 = vsub.f32 %v905, %v47
  %v910 = vsub.f32 %v906, %v48
  %v911 = vsub.f32 %v907, %v49
  %v912 = vsub.f32 %v908, %v50
  %v914 = vsel %vm81, %v739, 0
  %v917 = vsel %vm81, %v740, 0
  %v920 = vsel %vm81, %v741, 0
  %v923 = vsel %vm81, %v742, 0
  %vm925 = vcmask 1043456
  %v927 = vsel %vm925, %v61, 0
  %929 = vmatprep.subr.mxu0 0.0
  %930 = vmatpush1.msra.mxu0 0.0
  %931 = vmatprep.subr.mxu0 0.0
  %932 = vmatpush1.msra.mxu0 0.0
  %933 = vmatprep.subr.mxu0 0.0
  %934 = vmatpush1.msra.mxu0 0.0
  %935 = vmatprep.subr.mxu0 0.0
  %936 = vmatpush1.msra.mxu0 0.0
  %937 = vmatprep.subr.mxu0 0.0
  %938 = vmatpush1.msra.mxu0 0.0
  %939 = vmatprep.subr.mxu0 0.0
  %940 = vmatpush1.msra.mxu0 0.0
  %941 = vmatprep.subr.mxu0 0.0
  %942 = vmatpush1.msra.mxu0 0.0
  %943 = vmatprep.subr.mxu0 0.0
  %944 = vmatpush1.msra.mxu0 0.0
  %945 = vmatprep.subr.mxu0 0.0
  %946 = vmatpush1.msra.mxu0 0.0
  %947 = vmatprep.subr.mxu0 0.0
  %948 = vmatpush1.msra.mxu0 0.0
  %949 = vmatprep.subr.mxu0 0.0
  %950 = vmatpush1.msra.mxu0 0.0
  %951 = vmatprep.subr.mxu0 0.0
  %952 = vmatpush1.msra.mxu0 0.0
  %953 = vmatprep.subr.mxu0 0.0
  %954 = vmatpush1.msra.mxu0 0.0
  %955 = vmatprep.subr.mxu0 0.0
  %956 = vmatpush1.msra.mxu0 0.0
  %957 = vmatprep.subr.mxu0 0.0
  %958 = vmatpush1.msra.mxu0 %v927
  %959 = vmatprep.subr.mxu0 0.0
  %960 = vmatpush1.msra.mxu0 %v60
  %961 = vmatprep.subr.mxu0 0.0
  %962 = vmatpush2.msra.mxu0 0.0
  %963 = vmatprep.subr.mxu0 0.0
  %964 = vmatpush2.msra.mxu0 0.0
  %965 = vmatprep.subr.mxu0 0.0
  %966 = vmatpush2.msra.mxu0 0.0
  %967 = vmatprep.subr.mxu0 0.0
  %968 = vmatpush2.msra.mxu0 0.0
  %969 = vmatprep.subr.mxu0 0.0
  %970 = vmatpush2.msra.mxu0 0.0
  %971 = vmatprep.subr.mxu0 0.0
  %972 = vmatpush2.msra.mxu0 0.0
  %973 = vmatprep.subr.mxu0 0.0
  %974 = vmatpush2.msra.mxu0 0.0
  %975 = vmatprep.subr.mxu0 0.0
  %976 = vmatpush2.msra.mxu0 0.0
  %977 = vmatprep.subr.mxu0 0.0
  %978 = vmatpush2.msra.mxu0 0.0
  %979 = vmatprep.subr.mxu0 0.0
  %980 = vmatpush2.msra.mxu0 0.0
  %981 = vmatprep.subr.mxu0 0.0
  %982 = vmatpush2.msra.mxu0 0.0
  %983 = vmatprep.subr.mxu0 0.0
  %984 = vmatpush2.msra.mxu0 0.0
  %985 = vmatprep.subr.mxu0 0.0
  %986 = vmatpush2.msra.mxu0 0.0
  %987 = vmatprep.subr.mxu0 0.0
  %988 = vmatpush2.msra.mxu0 0.0
  %989 = vmatprep.subr.mxu0 0.0
  %990 = vmatpush2.msra.mxu0 0.0
  %991 = vmatprep.subr.mxu0 0.0
  %992 = vmatpush2.msra.mxu0 0.0
  %993 = vmatprep.mubr.f32.mxu0 0.0
  %994 = vmatmul.mubr.f32.gmra.mxu0 %v914
  %v995 = vpop.f32.mrf.mxu0
  %v996 = vadd.f32 0.0, %v995
  %v997 = vpop.f32.mrf.mxu0
  %998 = vmatprep.mubr.f32.mxu0 0.0
  %999 = vmatmul.mubr.f32.gmra.mxu0 %v917
  %v1000 = vpop.f32.mrf.mxu0
  %v1001 = vadd.f32 0.0, %v1000
  %v1002 = vpop.f32.mrf.mxu0
  %1003 = vmatprep.mubr.f32.mxu0 0.0
  %1004 = vmatmul.mubr.f32.gmra.mxu0 %v920
  %v1005 = vpop.f32.mrf.mxu0
  %v1006 = vadd.f32 0.0, %v1005
  %v1007 = vpop.f32.mrf.mxu0
  %1008 = vmatprep.mubr.f32.mxu0 0.0
  %1009 = vmatmul.mubr.f32.gmra.mxu0 %v923
  %v1010 = vpop.f32.mrf.mxu0
  %v1011 = vadd.f32 0.0, %v1010
  %v1012 = vpop.f32.mrf.mxu0
  %1013 = vdwg.mxu0
  %v1015 = vsel %vm925, %v59, 0
  %1017 = vmatprep.subr.mxu0 0.0
  %1018 = vmatpush1.msra.mxu0 0.0
  %1019 = vmatprep.subr.mxu0 0.0
  %1020 = vmatpush1.msra.mxu0 0.0
  %1021 = vmatprep.subr.mxu0 0.0
  %1022 = vmatpush1.msra.mxu0 0.0
  %1023 = vmatprep.subr.mxu0 0.0
  %1024 = vmatpush1.msra.mxu0 0.0
  %1025 = vmatprep.subr.mxu0 0.0
  %1026 = vmatpush1.msra.mxu0 0.0
  %1027 = vmatprep.subr.mxu0 0.0
  %1028 = vmatpush1.msra.mxu0 0.0
  %1029 = vmatprep.subr.mxu0 0.0
  %1030 = vmatpush1.msra.mxu0 0.0
  %1031 = vmatprep.subr.mxu0 0.0
  %1032 = vmatpush1.msra.mxu0 0.0
  %1033 = vmatprep.subr.mxu0 0.0
  %1034 = vmatpush1.msra.mxu0 0.0
  %1035 = vmatprep.subr.mxu0 0.0
  %1036 = vmatpush1.msra.mxu0 0.0
  %1037 = vmatprep.subr.mxu0 0.0
  %1038 = vmatpush1.msra.mxu0 0.0
  %1039 = vmatprep.subr.mxu0 0.0
  %1040 = vmatpush1.msra.mxu0 0.0
  %1041 = vmatprep.subr.mxu0 0.0
  %1042 = vmatpush1.msra.mxu0 0.0
  %1043 = vmatprep.subr.mxu0 0.0
  %1044 = vmatpush1.msra.mxu0 0.0
  %1045 = vmatprep.subr.mxu0 0.0
  %1046 = vmatpush1.msra.mxu0 %v1015
  %1047 = vmatprep.subr.mxu0 0.0
  %1048 = vmatpush1.msra.mxu0 %v58
  %1049 = vmatprep.subr.mxu0 0.0
  %1050 = vmatpush2.msra.mxu0 0.0
  %1051 = vmatprep.subr.mxu0 0.0
  %1052 = vmatpush2.msra.mxu0 0.0
  %1053 = vmatprep.subr.mxu0 0.0
  %1054 = vmatpush2.msra.mxu0 0.0
  %1055 = vmatprep.subr.mxu0 0.0
  %1056 = vmatpush2.msra.mxu0 0.0
  %1057 = vmatprep.subr.mxu0 0.0
  %1058 = vmatpush2.msra.mxu0 0.0
  %1059 = vmatprep.subr.mxu0 0.0
  %1060 = vmatpush2.msra.mxu0 0.0
  %1061 = vmatprep.subr.mxu0 0.0
  %1062 = vmatpush2.msra.mxu0 0.0
  %1063 = vmatprep.subr.mxu0 0.0
  %1064 = vmatpush2.msra.mxu0 0.0
  %1065 = vmatprep.subr.mxu0 0.0
  %1066 = vmatpush2.msra.mxu0 0.0
  %1067 = vmatprep.subr.mxu0 0.0
  %1068 = vmatpush2.msra.mxu0 0.0
  %1069 = vmatprep.subr.mxu0 0.0
  %1070 = vmatpush2.msra.mxu0 0.0
  %1071 = vmatprep.subr.mxu0 0.0
  %1072 = vmatpush2.msra.mxu0 0.0
  %1073 = vmatprep.subr.mxu0 0.0
  %1074 = vmatpush2.msra.mxu0 0.0
  %1075 = vmatprep.subr.mxu0 0.0
  %1076 = vmatpush2.msra.mxu0 0.0
  %1077 = vmatprep.subr.mxu0 0.0
  %1078 = vmatpush2.msra.mxu0 0.0
  %1079 = vmatprep.subr.mxu0 0.0
  %1080 = vmatpush2.msra.mxu0 0.0
  %1081 = vmatprep.mubr.f32.mxu0 0.0
  %1082 = vmatmul.mubr.f32.gmra.mxu0 %v109
  %v1083 = vpop.f32.mrf.mxu0
  %v1084 = vadd.f32 %v996, %v1083
  %v1085 = vpop.f32.mrf.mxu0
  %1086 = vmatprep.mubr.f32.mxu0 0.0
  %1087 = vmatmul.mubr.f32.gmra.mxu0 %v112
  %v1088 = vpop.f32.mrf.mxu0
  %v1089 = vadd.f32 %v1001, %v1088
  %v1090 = vpop.f32.mrf.mxu0
  %1091 = vmatprep.mubr.f32.mxu0 0.0
  %1092 = vmatmul.mubr.f32.gmra.mxu0 %v196
  %v1093 = vpop.f32.mrf.mxu0
  %v1094 = vadd.f32 %v1006, %v1093
  %v1095 = vpop.f32.mrf.mxu0
  %1096 = vmatprep.mubr.f32.mxu0 0.0
  %1097 = vmatmul.mubr.f32.gmra.mxu0 %v199
  %v1098 = vpop.f32.mrf.mxu0
  %v1099 = vadd.f32 %v1011, %v1098
  %v1100 = vpop.f32.mrf.mxu0
  %1101 = vdwg.mxu0
  %v1103 = vsel %vm81, %v909, 0
  %v1106 = vsel %vm81, %v910, 0
  %v1109 = vsel %vm81, %v911, 0
  %v1112 = vsel %vm81, %v912, 0
  %v1115 = vsel %vm925, %v63, 0
  %1117 = vmatprep.subr.mxu0 0.0
  %1118 = vmatpush1.msra.mxu0 0.0
  %1119 = vmatprep.subr.mxu0 0.0
  %1120 = vmatpush1.msra.mxu0 0.0
  %1121 = vmatprep.subr.mxu0 0.0
  %1122 = vmatpush1.msra.mxu0 0.0
  %1123 = vmatprep.subr.mxu0 0.0
  %1124 = vmatpush1.msra.mxu0 0.0
  %1125 = vmatprep.subr.mxu0 0.0
  %1126 = vmatpush1.msra.mxu0 0.0
  %1127 = vmatprep.subr.mxu0 0.0
  %1128 = vmatpush1.msra.mxu0 0.0
  %1129 = vmatprep.subr.mxu0 0.0
  %1130 = vmatpush1.msra.mxu0 0.0
  %1131 = vmatprep.subr.mxu0 0.0
  %1132 = vmatpush1.msra.mxu0 0.0
  %1133 = vmatprep.subr.mxu0 0.0
  %1134 = vmatpush1.msra.mxu0 0.0
  %1135 = vmatprep.subr.mxu0 0.0
  %1136 = vmatpush1.msra.mxu0 0.0
  %1137 = vmatprep.subr.mxu0 0.0
  %1138 = vmatpush1.msra.mxu0 0.0
  %1139 = vmatprep.subr.mxu0 0.0
  %1140 = vmatpush1.msra.mxu0 0.0
  %1141 = vmatprep.subr.mxu0 0.0
  %1142 = vmatpush1.msra.mxu0 0.0
  %1143 = vmatprep.subr.mxu0 0.0
  %1144 = vmatpush1.msra.mxu0 0.0
  %1145 = vmatprep.subr.mxu0 0.0
  %1146 = vmatpush1.msra.mxu0 %v1115
  %1147 = vmatprep.subr.mxu0 0.0
  %1148 = vmatpush1.msra.mxu0 %v62
  %1149 = vmatprep.subr.mxu0 0.0
  %1150 = vmatpush2.msra.mxu0 0.0
  %1151 = vmatprep.subr.mxu0 0.0
  %1152 = vmatpush2.msra.mxu0 0.0
  %1153 = vmatprep.subr.mxu0 0.0
  %1154 = vmatpush2.msra.mxu0 0.0
  %1155 = vmatprep.subr.mxu0 0.0
  %1156 = vmatpush2.msra.mxu0 0.0
  %1157 = vmatprep.subr.mxu0 0.0
  %1158 = vmatpush2.msra.mxu0 0.0
  %1159 = vmatprep.subr.mxu0 0.0
  %1160 = vmatpush2.msra.mxu0 0.0
  %1161 = vmatprep.subr.mxu0 0.0
  %1162 = vmatpush2.msra.mxu0 0.0
  %1163 = vmatprep.subr.mxu0 0.0
  %1164 = vmatpush2.msra.mxu0 0.0
  %1165 = vmatprep.subr.mxu0 0.0
  %1166 = vmatpush2.msra.mxu0 0.0
  %1167 = vmatprep.subr.mxu0 0.0
  %1168 = vmatpush2.msra.mxu0 0.0
  %1169 = vmatprep.subr.mxu0 0.0
  %1170 = vmatpush2.msra.mxu0 0.0
  %1171 = vmatprep.subr.mxu0 0.0
  %1172 = vmatpush2.msra.mxu0 0.0
  %1173 = vmatprep.subr.mxu0 0.0
  %1174 = vmatpush2.msra.mxu0 0.0
  %1175 = vmatprep.subr.mxu0 0.0
  %1176 = vmatpush2.msra.mxu0 0.0
  %1177 = vmatprep.subr.mxu0 0.0
  %1178 = vmatpush2.msra.mxu0 0.0
  %1179 = vmatprep.subr.mxu0 0.0
  %1180 = vmatpush2.msra.mxu0 0.0
  %1181 = vmatprep.mubr.f32.mxu0 0.0
  %1182 = vmatmul.mubr.f32.gmra.mxu0 %v1103
  %v1183 = vpop.f32.mrf.mxu0
  %v1184 = vadd.f32 0.0, %v1183
  %v1185 = vpop.f32.mrf.mxu0
  %1186 = vmatprep.mubr.f32.mxu0 0.0
  %1187 = vmatmul.mubr.f32.gmra.mxu0 %v1106
  %v1188 = vpop.f32.mrf.mxu0
  %v1189 = vadd.f32 0.0, %v1188
  %v1190 = vpop.f32.mrf.mxu0
  %1191 = vmatprep.mubr.f32.mxu0 0.0
  %1192 = vmatmul.mubr.f32.gmra.mxu0 %v1109
  %v1193 = vpop.f32.mrf.mxu0
  %v1194 = vadd.f32 0.0, %v1193
  %v1195 = vpop.f32.mrf.mxu0
  %1196 = vmatprep.mubr.f32.mxu0 0.0
  %1197 = vmatmul.mubr.f32.gmra.mxu0 %v1112
  %v1198 = vpop.f32.mrf.mxu0
  %v1199 = vadd.f32 0.0, %v1198
  %v1200 = vpop.f32.mrf.mxu0
  %1201 = vdwg.mxu0
  %v1202 = vadd.f32 %v1084, %v1184
  %v1203 = vadd.f32 %v1089, %v1189
  %v1204 = vadd.f32 %v1094, %v1194
  %v1205 = vadd.f32 %v1099, %v1199
  %v1206 = vlaneseq
  %v1207 = vshrl.u32 %v1206, 7
  %v1208 = vsub.s32 0, %v1207
  %v1209 = vrot.slane %v72, %v1208
  %v1210 = vadd.f32 %v1202, %v1209
  %v1211 = vadd.f32 %v1203, %v1209
  %v1212 = vadd.f32 %v1204, %v1209
  %v1213 = vadd.f32 %v1205, %v1209
  %v1214 = vmax.f32 %v1210, 0.0
  %v1215 = vmax.f32 %v1211, 0.0
  %v1216 = vmax.f32 %v1212, 0.0
  %v1217 = vmax.f32 %v1213, 0.0
  %v1218 = vlaneseq
  %v1219 = vshrl.u32 %v1218, 7
  %v1220 = vsub.s32 1, %v1219
  %v1221 = vrot.slane %v72, %v1220
  %vm1222 = vcmask 523264
  %v1224 = vsel %vm1222, %v1214, 0
  %v1227 = vsel %vm1222, %v1215, 0
  %v1230 = vsel %vm1222, %v1216, 0
  %v1233 = vsel %vm1222, %v1217, 0
  %1235 = vmatprep.subr.mxu0 0.0
  %1236 = vmatpush1.msra.mxu0 0.0
  %1237 = vmatprep.subr.mxu0 0.0
  %1238 = vmatpush1.msra.mxu0 0.0
  %1239 = vmatprep.subr.mxu0 0.0
  %1240 = vmatpush1.msra.mxu0 0.0
  %1241 = vmatprep.subr.mxu0 0.0
  %1242 = vmatpush1.msra.mxu0 0.0
  %1243 = vmatprep.subr.mxu0 0.0
  %1244 = vmatpush1.msra.mxu0 0.0
  %1245 = vmatprep.subr.mxu0 0.0
  %1246 = vmatpush1.msra.mxu0 0.0
  %1247 = vmatprep.subr.mxu0 0.0
  %1248 = vmatpush1.msra.mxu0 0.0
  %1249 = vmatprep.subr.mxu0 0.0
  %1250 = vmatpush1.msra.mxu0 0.0
  %1251 = vmatprep.subr.mxu0 0.0
  %1252 = vmatpush1.msra.mxu0 %v71
  %1253 = vmatprep.subr.mxu0 0.0
  %1254 = vmatpush1.msra.mxu0 %v70
  %1255 = vmatprep.subr.mxu0 0.0
  %1256 = vmatpush1.msra.mxu0 %v69
  %1257 = vmatprep.subr.mxu0 0.0
  %1258 = vmatpush1.msra.mxu0 %v68
  %1259 = vmatprep.subr.mxu0 0.0
  %1260 = vmatpush1.msra.mxu0 %v67
  %1261 = vmatprep.subr.mxu0 0.0
  %1262 = vmatpush1.msra.mxu0 %v66
  %1263 = vmatprep.subr.mxu0 0.0
  %1264 = vmatpush1.msra.mxu0 %v65
  %1265 = vmatprep.subr.mxu0 0.0
  %1266 = vmatpush1.msra.mxu0 %v64
  %1267 = vmatprep.subr.mxu0 0.0
  %1268 = vmatpush2.msra.mxu0 0.0
  %1269 = vmatprep.subr.mxu0 0.0
  %1270 = vmatpush2.msra.mxu0 0.0
  %1271 = vmatprep.subr.mxu0 0.0
  %1272 = vmatpush2.msra.mxu0 0.0
  %1273 = vmatprep.subr.mxu0 0.0
  %1274 = vmatpush2.msra.mxu0 0.0
  %1275 = vmatprep.subr.mxu0 0.0
  %1276 = vmatpush2.msra.mxu0 0.0
  %1277 = vmatprep.subr.mxu0 0.0
  %1278 = vmatpush2.msra.mxu0 0.0
  %1279 = vmatprep.subr.mxu0 0.0
  %1280 = vmatpush2.msra.mxu0 0.0
  %1281 = vmatprep.subr.mxu0 0.0
  %1282 = vmatpush2.msra.mxu0 0.0
  %1283 = vmatprep.subr.mxu0 0.0
  %1284 = vmatpush2.msra.mxu0 0.0
  %1285 = vmatprep.subr.mxu0 0.0
  %1286 = vmatpush2.msra.mxu0 0.0
  %1287 = vmatprep.subr.mxu0 0.0
  %1288 = vmatpush2.msra.mxu0 0.0
  %1289 = vmatprep.subr.mxu0 0.0
  %1290 = vmatpush2.msra.mxu0 0.0
  %1291 = vmatprep.subr.mxu0 0.0
  %1292 = vmatpush2.msra.mxu0 0.0
  %1293 = vmatprep.subr.mxu0 0.0
  %1294 = vmatpush2.msra.mxu0 0.0
  %1295 = vmatprep.subr.mxu0 0.0
  %1296 = vmatpush2.msra.mxu0 0.0
  %1297 = vmatprep.subr.mxu0 0.0
  %1298 = vmatpush2.msra.mxu0 0.0
  %1299 = vmatprep.mubr.f32.mxu0 0.0
  %1300 = vmatmul.mubr.f32.gmra.mxu0 %v1224
  %v1301 = vpop.f32.mrf.mxu0
  %v1302 = vadd.f32 %v1221, %v1301
  %v1303 = vpop.f32.mrf.mxu0
  %1304 = vmatprep.mubr.f32.mxu0 0.0
  %1305 = vmatmul.mubr.f32.gmra.mxu0 %v1227
  %v1306 = vpop.f32.mrf.mxu0
  %v1307 = vadd.f32 %v1221, %v1306
  %v1308 = vpop.f32.mrf.mxu0
  %1309 = vmatprep.mubr.f32.mxu0 0.0
  %1310 = vmatmul.mubr.f32.gmra.mxu0 %v1230
  %v1311 = vpop.f32.mrf.mxu0
  %v1312 = vadd.f32 %v1221, %v1311
  %v1313 = vpop.f32.mrf.mxu0
  %1314 = vmatprep.mubr.f32.mxu0 0.0
  %1315 = vmatmul.mubr.f32.gmra.mxu0 %v1233
  %v1316 = vpop.f32.mrf.mxu0
  %v1317 = vadd.f32 %v1221, %v1316
  %v1318 = vpop.f32.mrf.mxu0
  %1319 = vdwg.mxu0
  %v1320 = vmax.f32 %v1302, 0.0
  %v1321 = vmax.f32 %v1307, 0.0
  %v1322 = vmax.f32 %v1312, 0.0
  %v1323 = vmax.f32 %v1317, 0.0
  %v1324 = vld [vmem:[%s7] sm:$0x3]
  %v1325 = vld [vmem:[%s8] sm:$0xff]
  %v1326 = vld [vmem:[%s8 + $0x8] sm:$0xff]
  %v1327 = vld [vmem:[%s8 + $0x10] sm:$0xff]
  %v1328 = vld [vmem:[%s8 + $0x18] sm:$0xff]
  %v1329 = vld [vmem:[%s9] sm:$0xff]
  %v1330 = vld [vmem:[%s9 + $0x8] sm:$0xff]
  %v1331 = vld [vmem:[%s9 + $0x10] sm:$0xff]
  %v1332 = vld [vmem:[%s9 + $0x18] sm:$0xff]
  %v1333 = vld [vmem:[%s9 + $0x20] sm:$0xff]
  %v1334 = vld [vmem:[%s9 + $0x28] sm:$0xff]
  %v1335 = vld [vmem:[%s9 + $0x30] sm:$0xff]
  %v1336 = vld [vmem:[%s9 + $0x38] sm:$0xff]
  %v1337 = vld [vmem:[%s9 + $0x40] sm:$0xff]
  %v1338 = vld [vmem:[%s9 + $0x48] sm:$0xff]
  %v1339 = vld [vmem:[%s9 + $0x50] sm:$0xff]
  %v1340 = vld [vmem:[%s9 + $0x58] sm:$0xff]
  %v1341 = vld [vmem:[%s9 + $0x60] sm:$0xff]
  %v1342 = vld [vmem:[%s9 + $0x68] sm:$0xff]
  %v1343 = vld [vmem:[%s9 + $0x70] sm:$0xff]
  %v1344 = vld [vmem:[%s9 + $0x78] sm:$0xff]
  %v1345 = vld [vmem:[%s9 + $0x80] sm:$0xff]
  %v1346 = vld [vmem:[%s9 + $0x88] sm:$0xff]
  %v1347 = vld [vmem:[%s9 + $0x90] sm:$0xff]
  %v1348 = vld [vmem:[%s9 + $0x98] sm:$0xff]
  %v1349 = vld [vmem:[%s9 + $0xa0] sm:$0xff]
  %v1350 = vld [vmem:[%s9 + $0xa8] sm:$0xff]
  %v1351 = vld [vmem:[%s9 + $0xb0] sm:$0xff]
  %v1352 = vld [vmem:[%s9 + $0xb8] sm:$0xff]
  %v1353 = vld [vmem:[%s10] sm:$0xff]
  %v1354 = vld [vmem:[%s10 + $0x8] sm:$0xff]
  %v1355 = vld [vmem:[%s10 + $0x10] sm:$0xff]
  %v1356 = vld [vmem:[%s10 + $0x18] sm:$0xff]
  %v1357 = vld [vmem:[%s11] sm:$0x3]
  %v1358 = vlaneseq
  %v1359 = vshrl.u32 %v1358, 7
  %v1360 = vsub.s32 0, %v1359
  %v1361 = vrot.slane %v1324, %v1360
  %v1362 = vmul.f32 %v1320, %v1361
  %v1363 = vmul.f32 %v1321, %v1361
  %v1364 = vmul.f32 %v1322, %v1361
  %v1365 = vmul.f32 %v1323, %v1361
  %v1366 = vsel %vm1222, %v1362, 0.0
  %1367 = vadd.xlane.f32.xlu0 %v1366
  %v1368 = vpop.xlane.xlu0 %1367
  %v1369 = vsel %vm1222, %v1363, 0.0
  %1370 = vadd.xlane.f32.xlu0 %v1369
  %v1371 = vpop.xlane.xlu0 %1370
  %v1372 = vsel %vm1222, %v1364, 0.0
  %1373 = vadd.xlane.f32.xlu0 %v1372
  %v1374 = vpop.xlane.xlu0 %1373
  %v1375 = vsel %vm1222, %v1365, 0.0
  %1376 = vadd.xlane.f32.xlu0 %v1375
  %v1377 = vpop.xlane.xlu0 %1376
  %v1378 = vlaneseq
  %v1379 = vshrl.u32 %v1378, 7
  %v1380 = vsub.s32 1, %v1379
  %v1381 = vrot.slane %v1324, %v1380
  %v1382 = vmul.f32 %v1368, %v1381
  %v1383 = vmul.f32 %v1371, %v1381
  %v1384 = vmul.f32 %v1374, %v1381
  %v1385 = vmul.f32 %v1377, %v1381
  %v1387 = vsel %vm1222, %v1382, 0
  %v1390 = vsel %vm1222, %v1383, 0
  %v1393 = vsel %vm1222, %v1320, 0
  %v1396 = vsel %vm1222, %v1321, 0
  %1398 = vmatprep.subr.mxu0 0.0
  %1399 = vmatpush1.xpose.msra.mxu0 0.0
  %1400 = vmatprep.subr.mxu0 0.0
  %1401 = vmatpush1.xpose.msra.mxu0 0.0
  %1402 = vmatprep.subr.mxu0 0.0
  %1403 = vmatpush1.xpose.msra.mxu0 0.0
  %1404 = vmatprep.subr.mxu0 0.0
  %1405 = vmatpush1.xpose.msra.mxu0 0.0
  %1406 = vmatprep.subr.mxu0 0.0
  %1407 = vmatpush1.xpose.msra.mxu0 0.0
  %1408 = vmatprep.subr.mxu0 0.0
  %1409 = vmatpush1.xpose.msra.mxu0 0.0
  %1410 = vmatprep.subr.mxu0 0.0
  %1411 = vmatpush1.xpose.msra.mxu0 0.0
  %1412 = vmatprep.subr.mxu0 0.0
  %1413 = vmatpush1.xpose.msra.mxu0 0.0
  %1414 = vmatprep.subr.mxu0 0.0
  %1415 = vmatpush1.xpose.msra.mxu0 0.0
  %1416 = vmatprep.subr.mxu0 0.0
  %1417 = vmatpush1.xpose.msra.mxu0 0.0
  %1418 = vmatprep.subr.mxu0 0.0
  %1419 = vmatpush1.xpose.msra.mxu0 0.0
  %1420 = vmatprep.subr.mxu0 0.0
  %1421 = vmatpush1.xpose.msra.mxu0 0.0
  %1422 = vmatprep.subr.mxu0 0.0
  %1423 = vmatpush1.xpose.msra.mxu0 0.0
  %1424 = vmatprep.subr.mxu0 0.0
  %1425 = vmatpush1.xpose.msra.mxu0 0.0
  %1426 = vmatprep.subr.mxu0 0.0
  %1427 = vmatpush1.xpose.msra.mxu0 %v1396
  %1428 = vmatprep.subr.mxu0 0.0
  %1429 = vmatpush1.xpose.msra.mxu0 %v1393
  %1430 = vmatprep.subr.mxu0 0.0
  %1431 = vmatpush2.xpose.msra.mxu0 0.0
  %1432 = vmatprep.subr.mxu0 0.0
  %1433 = vmatpush2.xpose.msra.mxu0 0.0
  %1434 = vmatprep.subr.mxu0 0.0
  %1435 = vmatpush2.xpose.msra.mxu0 0.0
  %1436 = vmatprep.subr.mxu0 0.0
  %1437 = vmatpush2.xpose.msra.mxu0 0.0
  %1438 = vmatprep.subr.mxu0 0.0
  %1439 = vmatpush2.xpose.msra.mxu0 0.0
  %1440 = vmatprep.subr.mxu0 0.0
  %1441 = vmatpush2.xpose.msra.mxu0 0.0
  %1442 = vmatprep.subr.mxu0 0.0
  %1443 = vmatpush2.xpose.msra.mxu0 0.0
  %1444 = vmatprep.subr.mxu0 0.0
  %1445 = vmatpush2.xpose.msra.mxu0 0.0
  %1446 = vmatprep.subr.mxu0 0.0
  %1447 = vmatpush2.xpose.msra.mxu0 0.0
  %1448 = vmatprep.subr.mxu0 0.0
  %1449 = vmatpush2.xpose.msra.mxu0 0.0
  %1450 = vmatprep.subr.mxu0 0.0
  %1451 = vmatpush2.xpose.msra.mxu0 0.0
  %1452 = vmatprep.subr.mxu0 0.0
  %1453 = vmatpush2.xpose.msra.mxu0 0.0
  %1454 = vmatprep.subr.mxu0 0.0
  %1455 = vmatpush2.xpose.msra.mxu0 0.0
  %1456 = vmatprep.subr.mxu0 0.0
  %1457 = vmatpush2.xpose.msra.mxu0 0.0
  %1458 = vmatprep.subr.mxu0 0.0
  %1459 = vmatpush2.xpose.msra.mxu0 0.0
  %1460 = vmatprep.subr.mxu0 0.0
  %1461 = vmatpush2.xpose.msra.mxu0 0.0
  %1462 = vmatprep.mubr.f32.mxu0 0.0
  %1463 = vmatmul.mubr.f32.gmra.mxu0 %v1387
  %v1464 = vpop.f32.mrf.mxu0
  %v1465 = vadd.f32 %v1327, %v1464
  %v1466 = vpop.f32.mrf.mxu0
  %1467 = vmatprep.mubr.f32.mxu0 0.0
  %1468 = vmatmul.mubr.f32.gmra.mxu0 %v1390
  %v1469 = vpop.f32.mrf.mxu0
  %v1470 = vadd.f32 %v1328, %v1469
  %v1471 = vpop.f32.mrf.mxu0
  %1472 = vdwg.mxu0
  %v1474 = vsel %vm1222, %v1384, 0
  %v1477 = vsel %vm1222, %v1385, 0
  %v1480 = vsel %vm1222, %v1322, 0
  %v1483 = vsel %vm1222, %v1323, 0
  %1485 = vmatprep.subr.mxu0 0.0
  %1486 = vmatpush1.xpose.msra.mxu0 0.0
  %1487 = vmatprep.subr.mxu0 0.0
  %1488 = vmatpush1.xpose.msra.mxu0 0.0
  %1489 = vmatprep.subr.mxu0 0.0
  %1490 = vmatpush1.xpose.msra.mxu0 0.0
  %1491 = vmatprep.subr.mxu0 0.0
  %1492 = vmatpush1.xpose.msra.mxu0 0.0
  %1493 = vmatprep.subr.mxu0 0.0
  %1494 = vmatpush1.xpose.msra.mxu0 0.0
  %1495 = vmatprep.subr.mxu0 0.0
  %1496 = vmatpush1.xpose.msra.mxu0 0.0
  %1497 = vmatprep.subr.mxu0 0.0
  %1498 = vmatpush1.xpose.msra.mxu0 0.0
  %1499 = vmatprep.subr.mxu0 0.0
  %1500 = vmatpush1.xpose.msra.mxu0 0.0
  %1501 = vmatprep.subr.mxu0 0.0
  %1502 = vmatpush1.xpose.msra.mxu0 0.0
  %1503 = vmatprep.subr.mxu0 0.0
  %1504 = vmatpush1.xpose.msra.mxu0 0.0
  %1505 = vmatprep.subr.mxu0 0.0
  %1506 = vmatpush1.xpose.msra.mxu0 0.0
  %1507 = vmatprep.subr.mxu0 0.0
  %1508 = vmatpush1.xpose.msra.mxu0 0.0
  %1509 = vmatprep.subr.mxu0 0.0
  %1510 = vmatpush1.xpose.msra.mxu0 0.0
  %1511 = vmatprep.subr.mxu0 0.0
  %1512 = vmatpush1.xpose.msra.mxu0 0.0
  %1513 = vmatprep.subr.mxu0 0.0
  %1514 = vmatpush1.xpose.msra.mxu0 %v1483
  %1515 = vmatprep.subr.mxu0 0.0
  %1516 = vmatpush1.xpose.msra.mxu0 %v1480
  %1517 = vmatprep.subr.mxu0 0.0
  %1518 = vmatpush2.xpose.msra.mxu0 0.0
  %1519 = vmatprep.subr.mxu0 0.0
  %1520 = vmatpush2.xpose.msra.mxu0 0.0
  %1521 = vmatprep.subr.mxu0 0.0
  %1522 = vmatpush2.xpose.msra.mxu0 0.0
  %1523 = vmatprep.subr.mxu0 0.0
  %1524 = vmatpush2.xpose.msra.mxu0 0.0
  %1525 = vmatprep.subr.mxu0 0.0
  %1526 = vmatpush2.xpose.msra.mxu0 0.0
  %1527 = vmatprep.subr.mxu0 0.0
  %1528 = vmatpush2.xpose.msra.mxu0 0.0
  %1529 = vmatprep.subr.mxu0 0.0
  %1530 = vmatpush2.xpose.msra.mxu0 0.0
  %1531 = vmatprep.subr.mxu0 0.0
  %1532 = vmatpush2.xpose.msra.mxu0 0.0
  %1533 = vmatprep.subr.mxu0 0.0
  %1534 = vmatpush2.xpose.msra.mxu0 0.0
  %1535 = vmatprep.subr.mxu0 0.0
  %1536 = vmatpush2.xpose.msra.mxu0 0.0
  %1537 = vmatprep.subr.mxu0 0.0
  %1538 = vmatpush2.xpose.msra.mxu0 0.0
  %1539 = vmatprep.subr.mxu0 0.0
  %1540 = vmatpush2.xpose.msra.mxu0 0.0
  %1541 = vmatprep.subr.mxu0 0.0
  %1542 = vmatpush2.xpose.msra.mxu0 0.0
  %1543 = vmatprep.subr.mxu0 0.0
  %1544 = vmatpush2.xpose.msra.mxu0 0.0
  %1545 = vmatprep.subr.mxu0 0.0
  %1546 = vmatpush2.xpose.msra.mxu0 0.0
  %1547 = vmatprep.subr.mxu0 0.0
  %1548 = vmatpush2.xpose.msra.mxu0 0.0
  %1549 = vmatprep.mubr.f32.mxu0 0.0
  %1550 = vmatmul.mubr.f32.gmra.mxu0 %v1474
  %v1551 = vpop.f32.mrf.mxu0
  %v1552 = vadd.f32 %v1327, %v1551
  %v1553 = vpop.f32.mrf.mxu0
  %1554 = vmatprep.mubr.f32.mxu0 0.0
  %1555 = vmatmul.mubr.f32.gmra.mxu0 %v1477
  %v1556 = vpop.f32.mrf.mxu0
  %v1557 = vadd.f32 %v1328, %v1556
  %v1558 = vpop.f32.mrf.mxu0
  %1559 = vdwg.mxu0
  %v1560 = vsel %vm276, %v1465, -inf
  %v1561 = vsel %vm276, %v1470, -inf
  %v1562 = vmax.f32 %v1560, %v1561
  %v1563 = vrot.slane %v1562, 4
  %v1564 = vmax.f32 %v1562, %v1563
  %v1565 = vrot.slane %v1564, 2
  %v1566 = vmax.f32 %v1564, %v1565
  %v1567 = vrot.slane %v1566, 1
  %v1568 = vmax.f32 %v1566, %v1567
  %v1569 = vsel %vm276, %v1552, -inf
  %v1570 = vsel %vm276, %v1557, -inf
  %v1571 = vmax.f32 %v1569, %v1570
  %v1572 = vrot.slane %v1571, 4
  %v1573 = vmax.f32 %v1571, %v1572
  %v1574 = vrot.slane %v1573, 2
  %v1575 = vmax.f32 %v1573, %v1574
  %v1576 = vrot.slane %v1575, 1
  %v1577 = vmax.f32 %v1575, %v1576
  %v1578 = vsub.f32 %v1465, %v1568
  %v1579 = vsub.f32 %v1470, %v1568
  %v1580 = vsub.f32 %v1552, %v1577
  %v1581 = vsub.f32 %v1557, %v1577
  %v1582 = vmul.f32 %v1578, 1.442695
  %v1583 = vpow.pop %v1582
  %v1584 = vmul.f32 %v1579, 1.442695
  %v1585 = vpow.pop %v1584
  %v1586 = vmul.f32 %v1580, 1.442695
  %v1587 = vpow.pop %v1586
  %v1588 = vmul.f32 %v1581, 1.442695
  %v1589 = vpow.pop %v1588
  %v1590 = vsel %vm276, %v1583, 0.0
  %v1591 = vsel %vm276, %v1585, 0.0
  %v1592 = vadd.f32 %v1590, %v1591
  %v1593 = vrot.slane %v1592, 4
  %v1594 = vadd.f32 %v1592, %v1593
  %v1595 = vrot.slane %v1594, 2
  %v1596 = vadd.f32 %v1594, %v1595
  %v1597 = vrot.slane %v1596, 1
  %v1598 = vadd.f32 %v1596, %v1597
  %v1599 = vsel %vm276, %v1587, 0.0
  %v1600 = vsel %vm276, %v1589, 0.0
  %v1601 = vadd.f32 %v1599, %v1600
  %v1602 = vrot.slane %v1601, 4
  %v1603 = vadd.f32 %v1601, %v1602
  %v1604 = vrot.slane %v1603, 2
  %v1605 = vadd.f32 %v1603, %v1604
  %v1606 = vrot.slane %v1605, 1
  %v1607 = vadd.f32 %v1605, %v1606
  %v1608 = vrcp.pop %v1598
  %v1609 = vrcp.pop %v1607
  %v1610 = vmul.f32 %v1583, %v1608
  %v1611 = vmul.f32 %v1585, %v1608
  %v1612 = vmul.f32 %v1587, %v1609
  %v1613 = vmul.f32 %v1589, %v1609
  %v1615 = vsel %vm276, %v1325, 0
  %v1618 = vsel %vm276, %v1326, 0
  %1620 = vmatprep.subr.mxu0 0.0
  %1621 = vmatpush1.msra.mxu0 0.0
  %1622 = vmatprep.subr.mxu0 0.0
  %1623 = vmatpush1.msra.mxu0 0.0
  %1624 = vmatprep.subr.mxu0 0.0
  %1625 = vmatpush1.msra.mxu0 0.0
  %1626 = vmatprep.subr.mxu0 0.0
  %1627 = vmatpush1.msra.mxu0 0.0
  %1628 = vmatprep.subr.mxu0 0.0
  %1629 = vmatpush1.msra.mxu0 0.0
  %1630 = vmatprep.subr.mxu0 0.0
  %1631 = vmatpush1.msra.mxu0 0.0
  %1632 = vmatprep.subr.mxu0 0.0
  %1633 = vmatpush1.msra.mxu0 0.0
  %1634 = vmatprep.subr.mxu0 0.0
  %1635 = vmatpush1.msra.mxu0 0.0
  %1636 = vmatprep.subr.mxu0 0.0
  %1637 = vmatpush1.msra.mxu0 0.0
  %1638 = vmatprep.subr.mxu0 0.0
  %1639 = vmatpush1.msra.mxu0 0.0
  %1640 = vmatprep.subr.mxu0 0.0
  %1641 = vmatpush1.msra.mxu0 0.0
  %1642 = vmatprep.subr.mxu0 0.0
  %1643 = vmatpush1.msra.mxu0 0.0
  %1644 = vmatprep.subr.mxu0 0.0
  %1645 = vmatpush1.msra.mxu0 0.0
  %1646 = vmatprep.subr.mxu0 0.0
  %1647 = vmatpush1.msra.mxu0 0.0
  %1648 = vmatprep.subr.mxu0 0.0
  %1649 = vmatpush1.msra.mxu0 %v1611
  %1650 = vmatprep.subr.mxu0 0.0
  %1651 = vmatpush1.msra.mxu0 %v1610
  %1652 = vmatprep.subr.mxu0 0.0
  %1653 = vmatpush2.msra.mxu0 0.0
  %1654 = vmatprep.subr.mxu0 0.0
  %1655 = vmatpush2.msra.mxu0 0.0
  %1656 = vmatprep.subr.mxu0 0.0
  %1657 = vmatpush2.msra.mxu0 0.0
  %1658 = vmatprep.subr.mxu0 0.0
  %1659 = vmatpush2.msra.mxu0 0.0
  %1660 = vmatprep.subr.mxu0 0.0
  %1661 = vmatpush2.msra.mxu0 0.0
  %1662 = vmatprep.subr.mxu0 0.0
  %1663 = vmatpush2.msra.mxu0 0.0
  %1664 = vmatprep.subr.mxu0 0.0
  %1665 = vmatpush2.msra.mxu0 0.0
  %1666 = vmatprep.subr.mxu0 0.0
  %1667 = vmatpush2.msra.mxu0 0.0
  %1668 = vmatprep.subr.mxu0 0.0
  %1669 = vmatpush2.msra.mxu0 0.0
  %1670 = vmatprep.subr.mxu0 0.0
  %1671 = vmatpush2.msra.mxu0 0.0
  %1672 = vmatprep.subr.mxu0 0.0
  %1673 = vmatpush2.msra.mxu0 0.0
  %1674 = vmatprep.subr.mxu0 0.0
  %1675 = vmatpush2.msra.mxu0 0.0
  %1676 = vmatprep.subr.mxu0 0.0
  %1677 = vmatpush2.msra.mxu0 0.0
  %1678 = vmatprep.subr.mxu0 0.0
  %1679 = vmatpush2.msra.mxu0 0.0
  %1680 = vmatprep.subr.mxu0 0.0
  %1681 = vmatpush2.msra.mxu0 0.0
  %1682 = vmatprep.subr.mxu0 0.0
  %1683 = vmatpush2.msra.mxu0 0.0
  %1684 = vmatprep.mubr.f32.mxu0 0.0
  %1685 = vmatmul.mubr.f32.gmra.mxu0 %v1615
  %v1686 = vpop.f32.mrf.mxu0
  %v1687 = vadd.f32 0.0, %v1686
  %v1688 = vpop.f32.mrf.mxu0
  %1689 = vmatprep.mubr.f32.mxu0 0.0
  %1690 = vmatmul.mubr.f32.gmra.mxu0 %v1618
  %v1691 = vpop.f32.mrf.mxu0
  %v1692 = vadd.f32 0.0, %v1691
  %v1693 = vpop.f32.mrf.mxu0
  %1694 = vdwg.mxu0
  %1695 = vmatprep.subr.mxu0 0.0
  %1696 = vmatpush1.msra.mxu0 0.0
  %1697 = vmatprep.subr.mxu0 0.0
  %1698 = vmatpush1.msra.mxu0 0.0
  %1699 = vmatprep.subr.mxu0 0.0
  %1700 = vmatpush1.msra.mxu0 0.0
  %1701 = vmatprep.subr.mxu0 0.0
  %1702 = vmatpush1.msra.mxu0 0.0
  %1703 = vmatprep.subr.mxu0 0.0
  %1704 = vmatpush1.msra.mxu0 0.0
  %1705 = vmatprep.subr.mxu0 0.0
  %1706 = vmatpush1.msra.mxu0 0.0
  %1707 = vmatprep.subr.mxu0 0.0
  %1708 = vmatpush1.msra.mxu0 0.0
  %1709 = vmatprep.subr.mxu0 0.0
  %1710 = vmatpush1.msra.mxu0 0.0
  %1711 = vmatprep.subr.mxu0 0.0
  %1712 = vmatpush1.msra.mxu0 0.0
  %1713 = vmatprep.subr.mxu0 0.0
  %1714 = vmatpush1.msra.mxu0 0.0
  %1715 = vmatprep.subr.mxu0 0.0
  %1716 = vmatpush1.msra.mxu0 0.0
  %1717 = vmatprep.subr.mxu0 0.0
  %1718 = vmatpush1.msra.mxu0 0.0
  %1719 = vmatprep.subr.mxu0 0.0
  %1720 = vmatpush1.msra.mxu0 0.0
  %1721 = vmatprep.subr.mxu0 0.0
  %1722 = vmatpush1.msra.mxu0 0.0
  %1723 = vmatprep.subr.mxu0 0.0
  %1724 = vmatpush1.msra.mxu0 %v1613
  %1725 = vmatprep.subr.mxu0 0.0
  %1726 = vmatpush1.msra.mxu0 %v1612
  %1727 = vmatprep.subr.mxu0 0.0
  %1728 = vmatpush2.msra.mxu0 0.0
  %1729 = vmatprep.subr.mxu0 0.0
  %1730 = vmatpush2.msra.mxu0 0.0
  %1731 = vmatprep.subr.mxu0 0.0
  %1732 = vmatpush2.msra.mxu0 0.0
  %1733 = vmatprep.subr.mxu0 0.0
  %1734 = vmatpush2.msra.mxu0 0.0
  %1735 = vmatprep.subr.mxu0 0.0
  %1736 = vmatpush2.msra.mxu0 0.0
  %1737 = vmatprep.subr.mxu0 0.0
  %1738 = vmatpush2.msra.mxu0 0.0
  %1739 = vmatprep.subr.mxu0 0.0
  %1740 = vmatpush2.msra.mxu0 0.0
  %1741 = vmatprep.subr.mxu0 0.0
  %1742 = vmatpush2.msra.mxu0 0.0
  %1743 = vmatprep.subr.mxu0 0.0
  %1744 = vmatpush2.msra.mxu0 0.0
  %1745 = vmatprep.subr.mxu0 0.0
  %1746 = vmatpush2.msra.mxu0 0.0
  %1747 = vmatprep.subr.mxu0 0.0
  %1748 = vmatpush2.msra.mxu0 0.0
  %1749 = vmatprep.subr.mxu0 0.0
  %1750 = vmatpush2.msra.mxu0 0.0
  %1751 = vmatprep.subr.mxu0 0.0
  %1752 = vmatpush2.msra.mxu0 0.0
  %1753 = vmatprep.subr.mxu0 0.0
  %1754 = vmatpush2.msra.mxu0 0.0
  %1755 = vmatprep.subr.mxu0 0.0
  %1756 = vmatpush2.msra.mxu0 0.0
  %1757 = vmatprep.subr.mxu0 0.0
  %1758 = vmatpush2.msra.mxu0 0.0
  %1759 = vmatprep.mubr.f32.mxu0 0.0
  %1760 = vmatmul.mubr.f32.gmra.mxu0 %v1615
  %v1761 = vpop.f32.mrf.mxu0
  %v1762 = vadd.f32 0.0, %v1761
  %v1763 = vpop.f32.mrf.mxu0
  %1764 = vmatprep.mubr.f32.mxu0 0.0
  %1765 = vmatmul.mubr.f32.gmra.mxu0 %v1618
  %v1766 = vpop.f32.mrf.mxu0
  %v1767 = vadd.f32 0.0, %v1766
  %v1768 = vpop.f32.mrf.mxu0
  %1769 = vdwg.mxu0
  %v1770 = vsel %vm276, %v1687, -inf
  %v1771 = vsel %vm276, %v1692, -inf
  %v1772 = vmax.f32 %v1770, %v1771
  %v1773 = vrot.slane %v1772, 4
  %v1774 = vmax.f32 %v1772, %v1773
  %v1775 = vrot.slane %v1774, 2
  %v1776 = vmax.f32 %v1774, %v1775
  %v1777 = vrot.slane %v1776, 1
  %v1778 = vmax.f32 %v1776, %v1777
  %v1779 = vsel %vm276, %v1762, -inf
  %v1780 = vsel %vm276, %v1767, -inf
  %v1781 = vmax.f32 %v1779, %v1780
  %v1782 = vrot.slane %v1781, 4
  %v1783 = vmax.f32 %v1781, %v1782
  %v1784 = vrot.slane %v1783, 2
  %v1785 = vmax.f32 %v1783, %v1784
  %v1786 = vrot.slane %v1785, 1
  %v1787 = vmax.f32 %v1785, %v1786
  %v1788 = vsub.f32 %v1687, %v1778
  %v1789 = vsub.f32 %v1692, %v1778
  %v1790 = vsub.f32 %v1762, %v1787
  %v1791 = vsub.f32 %v1767, %v1787
  %v1792 = vmul.f32 %v1788, 1.442695
  %v1793 = vpow.pop %v1792
  %v1794 = vmul.f32 %v1789, 1.442695
  %v1795 = vpow.pop %v1794
  %v1796 = vmul.f32 %v1790, 1.442695
  %v1797 = vpow.pop %v1796
  %v1798 = vmul.f32 %v1791, 1.442695
  %v1799 = vpow.pop %v1798
  %v1800 = vsel %vm276, %v1793, 0.0
  %v1801 = vsel %vm276, %v1795, 0.0
  %v1802 = vadd.f32 %v1800, %v1801
  %v1803 = vrot.slane %v1802, 4
  %v1804 = vadd.f32 %v1802, %v1803
  %v1805 = vrot.slane %v1804, 2
  %v1806 = vadd.f32 %v1804, %v1805
  %v1807 = vrot.slane %v1806, 1
  %v1808 = vadd.f32 %v1806, %v1807
  %v1809 = vsel %vm276, %v1797, 0.0
  %v1810 = vsel %vm276, %v1799, 0.0
  %v1811 = vadd.f32 %v1809, %v1810
  %v1812 = vrot.slane %v1811, 4
  %v1813 = vadd.f32 %v1811, %v1812
  %v1814 = vrot.slane %v1813, 2
  %v1815 = vadd.f32 %v1813, %v1814
  %v1816 = vrot.slane %v1815, 1
  %v1817 = vadd.f32 %v1815, %v1816
  %v1818 = vrcp.pop %v1808
  %v1819 = vrcp.pop %v1817
  %v1820 = vmul.f32 %v1793, %v1818
  %v1821 = vmul.f32 %v1795, %v1818
  %v1822 = vmul.f32 %v1797, %v1819
  %v1823 = vmul.f32 %v1799, %v1819
  %v1824 = vmul.f32 %v51, %v1820
  %v1825 = vmul.f32 %v52, %v1821
  %v1826 = vmul.f32 %v51, %v1822
  %v1827 = vmul.f32 %v52, %v1823
  %v1828 = vsel %vm276, %v1824, 0.0
  %1829 = vadd.xlane.f32.xlu0 %v1828
  %v1830 = vpop.xlane.xlu0 %1829
  %v1831 = vsel %vm276, %v1825, 0.0
  %1832 = vadd.xlane.f32.xlu0 %v1831
  %v1833 = vpop.xlane.xlu0 %1832
  %v1834 = vsel %vm276, %v1826, 0.0
  %1835 = vadd.xlane.f32.xlu0 %v1834
  %v1836 = vpop.xlane.xlu0 %1835
  %v1837 = vsel %vm276, %v1827, 0.0
  %1838 = vadd.xlane.f32.xlu0 %v1837
  %v1839 = vpop.xlane.xlu0 %1838
  %vm1840 = vcmp.gt.f32.partialorder %v1830, 0.0
  %vm1841 = vcmp.gt.f32.partialorder %v1833, 0.0
  %vm1842 = vcmp.gt.f32.partialorder %v1836, 0.0
  %vm1843 = vcmp.gt.f32.partialorder %v1839, 0.0
  %v1844 = vrsqrt.pop %v1830
  %v1845 = vrsqrt.pop %v1833
  %v1846 = vrsqrt.pop %v1836
  %v1847 = vrsqrt.pop %v1839
  %v1848 = vsel %vm1840, %v1844, 0.0
  %v1849 = vsel %vm1841, %v1845, 0.0
  %v1850 = vsel %vm1842, %v1846, 0.0
  %v1851 = vsel %vm1843, %v1847, 0.0
  %v1852 = vmul.f32 %v1848, %v1320
  %v1853 = vmul.f32 %v1849, %v1321
  %v1854 = vmul.f32 %v1850, %v1322
  %v1855 = vmul.f32 %v1851, %v1323
  %v1857 = vsel %vm276, %v1824, 0
  %v1860 = vsel %vm276, %v1825, 0
  %1862 = vmatprep.subr.mxu0 0.0
  %1863 = vmatpush1.msra.mxu0 0.0
  %1864 = vmatprep.subr.mxu0 0.0
  %1865 = vmatpush1.msra.mxu0 0.0
  %1866 = vmatprep.subr.mxu0 0.0
  %1867 = vmatpush1.msra.mxu0 0.0
  %1868 = vmatprep.subr.mxu0 0.0
  %1869 = vmatpush1.msra.mxu0 0.0
  %1870 = vmatprep.subr.mxu0 0.0
  %1871 = vmatpush1.msra.mxu0 0.0
  %1872 = vmatprep.subr.mxu0 0.0
  %1873 = vmatpush1.msra.mxu0 0.0
  %1874 = vmatprep.subr.mxu0 0.0
  %1875 = vmatpush1.msra.mxu0 0.0
  %1876 = vmatprep.subr.mxu0 0.0
  %1877 = vmatpush1.msra.mxu0 0.0
  %1878 = vmatprep.subr.mxu0 0.0
  %1879 = vmatpush1.msra.mxu0 0.0
  %1880 = vmatprep.subr.mxu0 0.0
  %1881 = vmatpush1.msra.mxu0 0.0
  %1882 = vmatprep.subr.mxu0 0.0
  %1883 = vmatpush1.msra.mxu0 0.0
  %1884 = vmatprep.subr.mxu0 0.0
  %1885 = vmatpush1.msra.mxu0 0.0
  %1886 = vmatprep.subr.mxu0 0.0
  %1887 = vmatpush1.msra.mxu0 0.0
  %1888 = vmatprep.subr.mxu0 0.0
  %1889 = vmatpush1.msra.mxu0 0.0
  %1890 = vmatprep.subr.mxu0 0.0
  %1891 = vmatpush1.msra.mxu0 %v1853
  %1892 = vmatprep.subr.mxu0 0.0
  %1893 = vmatpush1.msra.mxu0 %v1852
  %1894 = vmatprep.subr.mxu0 0.0
  %1895 = vmatpush2.msra.mxu0 0.0
  %1896 = vmatprep.subr.mxu0 0.0
  %1897 = vmatpush2.msra.mxu0 0.0
  %1898 = vmatprep.subr.mxu0 0.0
  %1899 = vmatpush2.msra.mxu0 0.0
  %1900 = vmatprep.subr.mxu0 0.0
  %1901 = vmatpush2.msra.mxu0 0.0
  %1902 = vmatprep.subr.mxu0 0.0
  %1903 = vmatpush2.msra.mxu0 0.0
  %1904 = vmatprep.subr.mxu0 0.0
  %1905 = vmatpush2.msra.mxu0 0.0
  %1906 = vmatprep.subr.mxu0 0.0
  %1907 = vmatpush2.msra.mxu0 0.0
  %1908 = vmatprep.subr.mxu0 0.0
  %1909 = vmatpush2.msra.mxu0 0.0
  %1910 = vmatprep.subr.mxu0 0.0
  %1911 = vmatpush2.msra.mxu0 0.0
  %1912 = vmatprep.subr.mxu0 0.0
  %1913 = vmatpush2.msra.mxu0 0.0
  %1914 = vmatprep.subr.mxu0 0.0
  %1915 = vmatpush2.msra.mxu0 0.0
  %1916 = vmatprep.subr.mxu0 0.0
  %1917 = vmatpush2.msra.mxu0 0.0
  %1918 = vmatprep.subr.mxu0 0.0
  %1919 = vmatpush2.msra.mxu0 0.0
  %1920 = vmatprep.subr.mxu0 0.0
  %1921 = vmatpush2.msra.mxu0 0.0
  %1922 = vmatprep.subr.mxu0 0.0
  %1923 = vmatpush2.msra.mxu0 0.0
  %1924 = vmatprep.subr.mxu0 0.0
  %1925 = vmatpush2.msra.mxu0 0.0
  %1926 = vmatprep.mubr.f32.mxu0 0.0
  %1927 = vmatmul.mubr.f32.gmra.mxu0 %v1857
  %v1928 = vpop.f32.mrf.mxu0
  %v1929 = vadd.f32 0.0, %v1928
  %v1930 = vpop.f32.mrf.mxu0
  %1931 = vmatprep.mubr.f32.mxu0 0.0
  %1932 = vmatmul.mubr.f32.gmra.mxu0 %v1860
  %v1933 = vpop.f32.mrf.mxu0
  %v1934 = vadd.f32 0.0, %v1933
  %v1935 = vpop.f32.mrf.mxu0
  %1936 = vdwg.mxu0
  %v1938 = vsel %vm276, %v1826, 0
  %v1941 = vsel %vm276, %v1827, 0
  %1943 = vmatprep.subr.mxu0 0.0
  %1944 = vmatpush1.msra.mxu0 0.0
  %1945 = vmatprep.subr.mxu0 0.0
  %1946 = vmatpush1.msra.mxu0 0.0
  %1947 = vmatprep.subr.mxu0 0.0
  %1948 = vmatpush1.msra.mxu0 0.0
  %1949 = vmatprep.subr.mxu0 0.0
  %1950 = vmatpush1.msra.mxu0 0.0
  %1951 = vmatprep.subr.mxu0 0.0
  %1952 = vmatpush1.msra.mxu0 0.0
  %1953 = vmatprep.subr.mxu0 0.0
  %1954 = vmatpush1.msra.mxu0 0.0
  %1955 = vmatprep.subr.mxu0 0.0
  %1956 = vmatpush1.msra.mxu0 0.0
  %1957 = vmatprep.subr.mxu0 0.0
  %1958 = vmatpush1.msra.mxu0 0.0
  %1959 = vmatprep.subr.mxu0 0.0
  %1960 = vmatpush1.msra.mxu0 0.0
  %1961 = vmatprep.subr.mxu0 0.0
  %1962 = vmatpush1.msra.mxu0 0.0
  %1963 = vmatprep.subr.mxu0 0.0
  %1964 = vmatpush1.msra.mxu0 0.0
  %1965 = vmatprep.subr.mxu0 0.0
  %1966 = vmatpush1.msra.mxu0 0.0
  %1967 = vmatprep.subr.mxu0 0.0
  %1968 = vmatpush1.msra.mxu0 0.0
  %1969 = vmatprep.subr.mxu0 0.0
  %1970 = vmatpush1.msra.mxu0 0.0
  %1971 = vmatprep.subr.mxu0 0.0
  %1972 = vmatpush1.msra.mxu0 %v1855
  %1973 = vmatprep.subr.mxu0 0.0
  %1974 = vmatpush1.msra.mxu0 %v1854
  %1975 = vmatprep.subr.mxu0 0.0
  %1976 = vmatpush2.msra.mxu0 0.0
  %1977 = vmatprep.subr.mxu0 0.0
  %1978 = vmatpush2.msra.mxu0 0.0
  %1979 = vmatprep.subr.mxu0 0.0
  %1980 = vmatpush2.msra.mxu0 0.0
  %1981 = vmatprep.subr.mxu0 0.0
  %1982 = vmatpush2.msra.mxu0 0.0
  %1983 = vmatprep.subr.mxu0 0.0
  %1984 = vmatpush2.msra.mxu0 0.0
  %1985 = vmatprep.subr.mxu0 0.0
  %1986 = vmatpush2.msra.mxu0 0.0
  %1987 = vmatprep.subr.mxu0 0.0
  %1988 = vmatpush2.msra.mxu0 0.0
  %1989 = vmatprep.subr.mxu0 0.0
  %1990 = vmatpush2.msra.mxu0 0.0
  %1991 = vmatprep.subr.mxu0 0.0
  %1992 = vmatpush2.msra.mxu0 0.0
  %1993 = vmatprep.subr.mxu0 0.0
  %1994 = vmatpush2.msra.mxu0 0.0
  %1995 = vmatprep.subr.mxu0 0.0
  %1996 = vmatpush2.msra.mxu0 0.0
  %1997 = vmatprep.subr.mxu0 0.0
  %1998 = vmatpush2.msra.mxu0 0.0
  %1999 = vmatprep.subr.mxu0 0.0
  %2000 = vmatpush2.msra.mxu0 0.0
  %2001 = vmatprep.subr.mxu0 0.0
  %2002 = vmatpush2.msra.mxu0 0.0
  %2003 = vmatprep.subr.mxu0 0.0
  %2004 = vmatpush2.msra.mxu0 0.0
  %2005 = vmatprep.subr.mxu0 0.0
  %2006 = vmatpush2.msra.mxu0 0.0
  %2007 = vmatprep.mubr.f32.mxu0 0.0
  %2008 = vmatmul.mubr.f32.gmra.mxu0 %v1938
  %v2009 = vpop.f32.mrf.mxu0
  %v2010 = vadd.f32 0.0, %v2009
  %v2011 = vpop.f32.mrf.mxu0
  %2012 = vmatprep.mubr.f32.mxu0 0.0
  %2013 = vmatmul.mubr.f32.gmra.mxu0 %v1941
  %v2014 = vpop.f32.mrf.mxu0
  %v2015 = vadd.f32 0.0, %v2014
  %v2016 = vpop.f32.mrf.mxu0
  %2017 = vdwg.mxu0
  %v2018 = vmul.f32 %v1848, %v1929
  %v2019 = vmul.f32 %v1849, %v1934
  %v2020 = vmul.f32 %v1850, %v2010
  %v2021 = vmul.f32 %v1851, %v2015
  %v2022 = vsub.f32 0.0, %v2018
  %v2023 = vsub.f32 0.0, %v2019
  %v2024 = vsub.f32 0.0, %v2020
  %v2025 = vsub.f32 0.0, %v2021
  %v2026 = vmul.f32 %v1848, %v2022
  %v2027 = vmul.f32 %v1849, %v2023
  %v2028 = vmul.f32 %v1850, %v2024
  %v2029 = vmul.f32 %v1851, %v2025
  %2030 = vmatprep.subr.mxu0 0.0
  %2031 = vmatpush1.msra.mxu0 0.0
  %2032 = vmatprep.subr.mxu0 0.0
  %2033 = vmatpush1.msra.mxu0 0.0
  %2034 = vmatprep.subr.mxu0 0.0
  %2035 = vmatpush1.msra.mxu0 0.0
  %2036 = vmatprep.subr.mxu0 0.0
  %2037 = vmatpush1.msra.mxu0 0.0
  %2038 = vmatprep.subr.mxu0 0.0
  %2039 = vmatpush1.msra.mxu0 0.0
  %2040 = vmatprep.subr.mxu0 0.0
  %2041 = vmatpush1.msra.mxu0 0.0
  %2042 = vmatprep.subr.mxu0 0.0
  %2043 = vmatpush1.msra.mxu0 0.0
  %2044 = vmatprep.subr.mxu0 0.0
  %2045 = vmatpush1.msra.mxu0 0.0
  %2046 = vmatprep.subr.mxu0 0.0
  %2047 = vmatpush1.msra.mxu0 0.0
  %2048 = vmatprep.subr.mxu0 0.0
  %2049 = vmatpush1.msra.mxu0 0.0
  %2050 = vmatprep.subr.mxu0 0.0
  %2051 = vmatpush1.msra.mxu0 0.0
  %2052 = vmatprep.subr.mxu0 0.0
  %2053 = vmatpush1.msra.mxu0 0.0
  %2054 = vmatprep.subr.mxu0 0.0
  %2055 = vmatpush1.msra.mxu0 0.0
  %2056 = vmatprep.subr.mxu0 0.0
  %2057 = vmatpush1.msra.mxu0 0.0
  %2058 = vmatprep.subr.mxu0 0.0
  %2059 = vmatpush1.msra.mxu0 %v2027
  %2060 = vmatprep.subr.mxu0 0.0
  %2061 = vmatpush1.msra.mxu0 %v2026
  %2062 = vmatprep.subr.mxu0 0.0
  %2063 = vmatpush2.msra.mxu0 0.0
  %2064 = vmatprep.subr.mxu0 0.0
  %2065 = vmatpush2.msra.mxu0 0.0
  %2066 = vmatprep.subr.mxu0 0.0
  %2067 = vmatpush2.msra.mxu0 0.0
  %2068 = vmatprep.subr.mxu0 0.0
  %2069 = vmatpush2.msra.mxu0 0.0
  %2070 = vmatprep.subr.mxu0 0.0
  %2071 = vmatpush2.msra.mxu0 0.0
  %2072 = vmatprep.subr.mxu0 0.0
  %2073 = vmatpush2.msra.mxu0 0.0
  %2074 = vmatprep.subr.mxu0 0.0
  %2075 = vmatpush2.msra.mxu0 0.0
  %2076 = vmatprep.subr.mxu0 0.0
  %2077 = vmatpush2.msra.mxu0 0.0
  %2078 = vmatprep.subr.mxu0 0.0
  %2079 = vmatpush2.msra.mxu0 0.0
  %2080 = vmatprep.subr.mxu0 0.0
  %2081 = vmatpush2.msra.mxu0 0.0
  %2082 = vmatprep.subr.mxu0 0.0
  %2083 = vmatpush2.msra.mxu0 0.0
  %2084 = vmatprep.subr.mxu0 0.0
  %2085 = vmatpush2.msra.mxu0 0.0
  %2086 = vmatprep.subr.mxu0 0.0
  %2087 = vmatpush2.msra.mxu0 0.0
  %2088 = vmatprep.subr.mxu0 0.0
  %2089 = vmatpush2.msra.mxu0 0.0
  %2090 = vmatprep.subr.mxu0 0.0
  %2091 = vmatpush2.msra.mxu0 0.0
  %2092 = vmatprep.subr.mxu0 0.0
  %2093 = vmatpush2.msra.mxu0 0.0
  %2094 = vmatprep.mubr.f32.mxu0 0.0
  %2095 = vmatmul.mubr.f32.gmra.mxu0 %v1857
  %v2096 = vpop.f32.mrf.mxu0
  %v2097 = vadd.f32 0.0, %v2096
  %v2098 = vpop.f32.mrf.mxu0
  %2099 = vmatprep.mubr.f32.mxu0 0.0
  %2100 = vmatmul.mubr.f32.gmra.mxu0 %v1860
  %v2101 = vpop.f32.mrf.mxu0
  %v2102 = vadd.f32 0.0, %v2101
  %v2103 = vpop.f32.mrf.mxu0
  %2104 = vdwg.mxu0
  %2105 = vmatprep.subr.mxu0 0.0
  %2106 = vmatpush1.msra.mxu0 0.0
  %2107 = vmatprep.subr.mxu0 0.0
  %2108 = vmatpush1.msra.mxu0 0.0
  %2109 = vmatprep.subr.mxu0 0.0
  %2110 = vmatpush1.msra.mxu0 0.0
  %2111 = vmatprep.subr.mxu0 0.0
  %2112 = vmatpush1.msra.mxu0 0.0
  %2113 = vmatprep.subr.mxu0 0.0
  %2114 = vmatpush1.msra.mxu0 0.0
  %2115 = vmatprep.subr.mxu0 0.0
  %2116 = vmatpush1.msra.mxu0 0.0
  %2117 = vmatprep.subr.mxu0 0.0
  %2118 = vmatpush1.msra.mxu0 0.0
  %2119 = vmatprep.subr.mxu0 0.0
  %2120 = vmatpush1.msra.mxu0 0.0
  %2121 = vmatprep.subr.mxu0 0.0
  %2122 = vmatpush1.msra.mxu0 0.0
  %2123 = vmatprep.subr.mxu0 0.0
  %2124 = vmatpush1.msra.mxu0 0.0
  %2125 = vmatprep.subr.mxu0 0.0
  %2126 = vmatpush1.msra.mxu0 0.0
  %2127 = vmatprep.subr.mxu0 0.0
  %2128 = vmatpush1.msra.mxu0 0.0
  %2129 = vmatprep.subr.mxu0 0.0
  %2130 = vmatpush1.msra.mxu0 0.0
  %2131 = vmatprep.subr.mxu0 0.0
  %2132 = vmatpush1.msra.mxu0 0.0
  %2133 = vmatprep.subr.mxu0 0.0
  %2134 = vmatpush1.msra.mxu0 %v2029
  %2135 = vmatprep.subr.mxu0 0.0
  %2136 = vmatpush1.msra.mxu0 %v2028
  %2137 = vmatprep.subr.mxu0 0.0
  %2138 = vmatpush2.msra.mxu0 0.0
  %2139 = vmatprep.subr.mxu0 0.0
  %2140 = vmatpush2.msra.mxu0 0.0
  %2141 = vmatprep.subr.mxu0 0.0
  %2142 = vmatpush2.msra.mxu0 0.0
  %2143 = vmatprep.subr.mxu0 0.0
  %2144 = vmatpush2.msra.mxu0 0.0
  %2145 = vmatprep.subr.mxu0 0.0
  %2146 = vmatpush2.msra.mxu0 0.0
  %2147 = vmatprep.subr.mxu0 0.0
  %2148 = vmatpush2.msra.mxu0 0.0
  %2149 = vmatprep.subr.mxu0 0.0
  %2150 = vmatpush2.msra.mxu0 0.0
  %2151 = vmatprep.subr.mxu0 0.0
  %2152 = vmatpush2.msra.mxu0 0.0
  %2153 = vmatprep.subr.mxu0 0.0
  %2154 = vmatpush2.msra.mxu0 0.0
  %2155 = vmatprep.subr.mxu0 0.0
  %2156 = vmatpush2.msra.mxu0 0.0
  %2157 = vmatprep.subr.mxu0 0.0
  %2158 = vmatpush2.msra.mxu0 0.0
  %2159 = vmatprep.subr.mxu0 0.0
  %2160 = vmatpush2.msra.mxu0 0.0
  %2161 = vmatprep.subr.mxu0 0.0
  %2162 = vmatpush2.msra.mxu0 0.0
  %2163 = vmatprep.subr.mxu0 0.0
  %2164 = vmatpush2.msra.mxu0 0.0
  %2165 = vmatprep.subr.mxu0 0.0
  %2166 = vmatpush2.msra.mxu0 0.0
  %2167 = vmatprep.subr.mxu0 0.0
  %2168 = vmatpush2.msra.mxu0 0.0
  %2169 = vmatprep.mubr.f32.mxu0 0.0
  %2170 = vmatmul.mubr.f32.gmra.mxu0 %v1938
  %v2171 = vpop.f32.mrf.mxu0
  %v2172 = vadd.f32 0.0, %v2171
  %v2173 = vpop.f32.mrf.mxu0
  %2174 = vmatprep.mubr.f32.mxu0 0.0
  %2175 = vmatmul.mubr.f32.gmra.mxu0 %v1941
  %v2176 = vpop.f32.mrf.mxu0
  %v2177 = vadd.f32 0.0, %v2176
  %v2178 = vpop.f32.mrf.mxu0
  %2179 = vdwg.mxu0
  %v2180 = vmul.f32 %v1848, %v2097
  %v2181 = vmul.f32 %v1849, %v2102
  %v2182 = vmul.f32 %v1850, %v2172
  %v2183 = vmul.f32 %v1851, %v2177
  %v2184 = vsub.f32 0.0, %v2180
  %v2185 = vsub.f32 0.0, %v2181
  %v2186 = vsub.f32 0.0, %v2182
  %v2187 = vsub.f32 0.0, %v2183
  %v2188 = vmul.f32 %v2184, 2.0
  %v2189 = vmul.f32 %v2185, 2.0
  %v2190 = vmul.f32 %v2186, 2.0
  %v2191 = vmul.f32 %v2187, 2.0
  %v2192 = vsub.f32 %v2188, %v1320
  %v2193 = vsub.f32 %v2189, %v1321
  %v2194 = vsub.f32 %v2190, %v1322
  %v2195 = vsub.f32 %v2191, %v1323
  %v2197 = vsel %vm1222, %v2022, 0
  %v2200 = vsel %vm1222, %v2023, 0
  %v2203 = vsel %vm1222, %v2024, 0
  %v2206 = vsel %vm1222, %v2025, 0
  %2208 = vmatprep.subr.mxu0 0.0
  %2209 = vmatpush1.msra.mxu0 0.0
  %2210 = vmatprep.subr.mxu0 0.0
  %2211 = vmatpush1.msra.mxu0 0.0
  %2212 = vmatprep.subr.mxu0 0.0
  %2213 = vmatpush1.msra.mxu0 0.0
  %2214 = vmatprep.subr.mxu0 0.0
  %2215 = vmatpush1.msra.mxu0 0.0
  %2216 = vmatprep.subr.mxu0 0.0
  %2217 = vmatpush1.msra.mxu0 0.0
  %2218 = vmatprep.subr.mxu0 0.0
  %2219 = vmatpush1.msra.mxu0 0.0
  %2220 = vmatprep.subr.mxu0 0.0
  %2221 = vmatpush1.msra.mxu0 0.0
  %2222 = vmatprep.subr.mxu0 0.0
  %2223 = vmatpush1.msra.mxu0 0.0
  %2224 = vmatprep.subr.mxu0 0.0
  %2225 = vmatpush1.msra.mxu0 %v1344
  %2226 = vmatprep.subr.mxu0 0.0
  %2227 = vmatpush1.msra.mxu0 %v1343
  %2228 = vmatprep.subr.mxu0 0.0
  %2229 = vmatpush1.msra.mxu0 %v1342
  %2230 = vmatprep.subr.mxu0 0.0
  %2231 = vmatpush1.msra.mxu0 %v1341
  %2232 = vmatprep.subr.mxu0 0.0
  %2233 = vmatpush1.msra.mxu0 %v1340
  %2234 = vmatprep.subr.mxu0 0.0
  %2235 = vmatpush1.msra.mxu0 %v1339
  %2236 = vmatprep.subr.mxu0 0.0
  %2237 = vmatpush1.msra.mxu0 %v1338
  %2238 = vmatprep.subr.mxu0 0.0
  %2239 = vmatpush1.msra.mxu0 %v1337
  %2240 = vmatprep.subr.mxu0 0.0
  %2241 = vmatpush2.msra.mxu0 0.0
  %2242 = vmatprep.subr.mxu0 0.0
  %2243 = vmatpush2.msra.mxu0 0.0
  %2244 = vmatprep.subr.mxu0 0.0
  %2245 = vmatpush2.msra.mxu0 0.0
  %2246 = vmatprep.subr.mxu0 0.0
  %2247 = vmatpush2.msra.mxu0 0.0
  %2248 = vmatprep.subr.mxu0 0.0
  %2249 = vmatpush2.msra.mxu0 0.0
  %2250 = vmatprep.subr.mxu0 0.0
  %2251 = vmatpush2.msra.mxu0 0.0
  %2252 = vmatprep.subr.mxu0 0.0
  %2253 = vmatpush2.msra.mxu0 0.0
  %2254 = vmatprep.subr.mxu0 0.0
  %2255 = vmatpush2.msra.mxu0 0.0
  %2256 = vmatprep.subr.mxu0 0.0
  %2257 = vmatpush2.msra.mxu0 0.0
  %2258 = vmatprep.subr.mxu0 0.0
  %2259 = vmatpush2.msra.mxu0 0.0
  %2260 = vmatprep.subr.mxu0 0.0
  %2261 = vmatpush2.msra.mxu0 0.0
  %2262 = vmatprep.subr.mxu0 0.0
  %2263 = vmatpush2.msra.mxu0 0.0
  %2264 = vmatprep.subr.mxu0 0.0
  %2265 = vmatpush2.msra.mxu0 0.0
  %2266 = vmatprep.subr.mxu0 0.0
  %2267 = vmatpush2.msra.mxu0 0.0
  %2268 = vmatprep.subr.mxu0 0.0
  %2269 = vmatpush2.msra.mxu0 0.0
  %2270 = vmatprep.subr.mxu0 0.0
  %2271 = vmatpush2.msra.mxu0 0.0
  %2272 = vmatprep.mubr.f32.mxu0 0.0
  %2273 = vmatmul.mubr.f32.gmra.mxu0 %v2197
  %v2274 = vpop.f32.mrf.mxu0
  %v2275 = vadd.f32 0.0, %v2274
  %v2276 = vpop.f32.mrf.mxu0
  %2277 = vmatprep.mubr.f32.mxu0 0.0
  %2278 = vmatmul.mubr.f32.gmra.mxu0 %v2200
  %v2279 = vpop.f32.mrf.mxu0
  %v2280 = vadd.f32 0.0, %v2279
  %v2281 = vpop.f32.mrf.mxu0
  %2282 = vmatprep.mubr.f32.mxu0 0.0
  %2283 = vmatmul.mubr.f32.gmra.mxu0 %v2203
  %v2284 = vpop.f32.mrf.mxu0
  %v2285 = vadd.f32 0.0, %v2284
  %v2286 = vpop.f32.mrf.mxu0
  %2287 = vmatprep.mubr.f32.mxu0 0.0
  %2288 = vmatmul.mubr.f32.gmra.mxu0 %v2206
  %v2289 = vpop.f32.mrf.mxu0
  %v2290 = vadd.f32 0.0, %v2289
  %v2291 = vpop.f32.mrf.mxu0
  %2292 = vdwg.mxu0
  %2293 = vmatprep.subr.mxu0 0.0
  %2294 = vmatpush1.msra.mxu0 0.0
  %2295 = vmatprep.subr.mxu0 0.0
  %2296 = vmatpush1.msra.mxu0 0.0
  %2297 = vmatprep.subr.mxu0 0.0
  %2298 = vmatpush1.msra.mxu0 0.0
  %2299 = vmatprep.subr.mxu0 0.0
  %2300 = vmatpush1.msra.mxu0 0.0
  %2301 = vmatprep.subr.mxu0 0.0
  %2302 = vmatpush1.msra.mxu0 0.0
  %2303 = vmatprep.subr.mxu0 0.0
  %2304 = vmatpush1.msra.mxu0 0.0
  %2305 = vmatprep.subr.mxu0 0.0
  %2306 = vmatpush1.msra.mxu0 0.0
  %2307 = vmatprep.subr.mxu0 0.0
  %2308 = vmatpush1.msra.mxu0 0.0
  %2309 = vmatprep.subr.mxu0 0.0
  %2310 = vmatpush1.msra.mxu0 %v1336
  %2311 = vmatprep.subr.mxu0 0.0
  %2312 = vmatpush1.msra.mxu0 %v1335
  %2313 = vmatprep.subr.mxu0 0.0
  %2314 = vmatpush1.msra.mxu0 %v1334
  %2315 = vmatprep.subr.mxu0 0.0
  %2316 = vmatpush1.msra.mxu0 %v1333
  %2317 = vmatprep.subr.mxu0 0.0
  %2318 = vmatpush1.msra.mxu0 %v1332
  %2319 = vmatprep.subr.mxu0 0.0
  %2320 = vmatpush1.msra.mxu0 %v1331
  %2321 = vmatprep.subr.mxu0 0.0
  %2322 = vmatpush1.msra.mxu0 %v1330
  %2323 = vmatprep.subr.mxu0 0.0
  %2324 = vmatpush1.msra.mxu0 %v1329
  %2325 = vmatprep.subr.mxu0 0.0
  %2326 = vmatpush2.msra.mxu0 0.0
  %2327 = vmatprep.subr.mxu0 0.0
  %2328 = vmatpush2.msra.mxu0 0.0
  %2329 = vmatprep.subr.mxu0 0.0
  %2330 = vmatpush2.msra.mxu0 0.0
  %2331 = vmatprep.subr.mxu0 0.0
  %2332 = vmatpush2.msra.mxu0 0.0
  %2333 = vmatprep.subr.mxu0 0.0
  %2334 = vmatpush2.msra.mxu0 0.0
  %2335 = vmatprep.subr.mxu0 0.0
  %2336 = vmatpush2.msra.mxu0 0.0
  %2337 = vmatprep.subr.mxu0 0.0
  %2338 = vmatpush2.msra.mxu0 0.0
  %2339 = vmatprep.subr.mxu0 0.0
  %2340 = vmatpush2.msra.mxu0 0.0
  %2341 = vmatprep.subr.mxu0 0.0
  %2342 = vmatpush2.msra.mxu0 0.0
  %2343 = vmatprep.subr.mxu0 0.0
  %2344 = vmatpush2.msra.mxu0 0.0
  %2345 = vmatprep.subr.mxu0 0.0
  %2346 = vmatpush2.msra.mxu0 0.0
  %2347 = vmatprep.subr.mxu0 0.0
  %2348 = vmatpush2.msra.mxu0 0.0
  %2349 = vmatprep.subr.mxu0 0.0
  %2350 = vmatpush2.msra.mxu0 0.0
  %2351 = vmatprep.subr.mxu0 0.0
  %2352 = vmatpush2.msra.mxu0 0.0
  %2353 = vmatprep.subr.mxu0 0.0
  %2354 = vmatpush2.msra.mxu0 0.0
  %2355 = vmatprep.subr.mxu0 0.0
  %2356 = vmatpush2.msra.mxu0 0.0
  %2357 = vmatprep.mubr.f32.mxu0 0.0
  %2358 = vmatmul.mubr.f32.gmra.mxu0 %v1393
  %v2359 = vpop.f32.mrf.mxu0
  %v2360 = vadd.f32 %v2275, %v2359
  %v2361 = vpop.f32.mrf.mxu0
  %2362 = vmatprep.mubr.f32.mxu0 0.0
  %2363 = vmatmul.mubr.f32.gmra.mxu0 %v1396
  %v2364 = vpop.f32.mrf.mxu0
  %v2365 = vadd.f32 %v2280, %v2364
  %v2366 = vpop.f32.mrf.mxu0
  %2367 = vmatprep.mubr.f32.mxu0 0.0
  %2368 = vmatmul.mubr.f32.gmra.mxu0 %v1480
  %v2369 = vpop.f32.mrf.mxu0
  %v2370 = vadd.f32 %v2285, %v2369
  %v2371 = vpop.f32.mrf.mxu0
  %2372 = vmatprep.mubr.f32.mxu0 0.0
  %2373 = vmatmul.mubr.f32.gmra.mxu0 %v1483
  %v2374 = vpop.f32.mrf.mxu0
  %v2375 = vadd.f32 %v2290, %v2374
  %v2376 = vpop.f32.mrf.mxu0
  %2377 = vdwg.mxu0
  %v2379 = vsel %vm1222, %v2192, 0
  %v2382 = vsel %vm1222, %v2193, 0
  %v2385 = vsel %vm1222, %v2194, 0
  %v2388 = vsel %vm1222, %v2195, 0
  %2390 = vmatprep.subr.mxu0 0.0
  %2391 = vmatpush1.msra.mxu0 0.0
  %2392 = vmatprep.subr.mxu0 0.0
  %2393 = vmatpush1.msra.mxu0 0.0
  %2394 = vmatprep.subr.mxu0 0.0
  %2395 = vmatpush1.msra.mxu0 0.0
  %2396 = vmatprep.subr.mxu0 0.0
  %2397 = vmatpush1.msra.mxu0 0.0
  %2398 = vmatprep.subr.mxu0 0.0
  %2399 = vmatpush1.msra.mxu0 0.0
  %2400 = vmatprep.subr.mxu0 0.0
  %2401 = vmatpush1.msra.mxu0 0.0
  %2402 = vmatprep.subr.mxu0 0.0
  %2403 = vmatpush1.msra.mxu0 0.0
  %2404 = vmatprep.subr.mxu0 0.0
  %2405 = vmatpush1.msra.mxu0 0.0
  %2406 = vmatprep.subr.mxu0 0.0
  %2407 = vmatpush1.msra.mxu0 %v1352
  %2408 = vmatprep.subr.mxu0 0.0
  %2409 = vmatpush1.msra.mxu0 %v1351
  %2410 = vmatprep.subr.mxu0 0.0
  %2411 = vmatpush1.msra.mxu0 %v1350
  %2412 = vmatprep.subr.mxu0 0.0
  %2413 = vmatpush1.msra.mxu0 %v1349
  %2414 = vmatprep.subr.mxu0 0.0
  %2415 = vmatpush1.msra.mxu0 %v1348
  %2416 = vmatprep.subr.mxu0 0.0
  %2417 = vmatpush1.msra.mxu0 %v1347
  %2418 = vmatprep.subr.mxu0 0.0
  %2419 = vmatpush1.msra.mxu0 %v1346
  %2420 = vmatprep.subr.mxu0 0.0
  %2421 = vmatpush1.msra.mxu0 %v1345
  %2422 = vmatprep.subr.mxu0 0.0
  %2423 = vmatpush2.msra.mxu0 0.0
  %2424 = vmatprep.subr.mxu0 0.0
  %2425 = vmatpush2.msra.mxu0 0.0
  %2426 = vmatprep.subr.mxu0 0.0
  %2427 = vmatpush2.msra.mxu0 0.0
  %2428 = vmatprep.subr.mxu0 0.0
  %2429 = vmatpush2.msra.mxu0 0.0
  %2430 = vmatprep.subr.mxu0 0.0
  %2431 = vmatpush2.msra.mxu0 0.0
  %2432 = vmatprep.subr.mxu0 0.0
  %2433 = vmatpush2.msra.mxu0 0.0
  %2434 = vmatprep.subr.mxu0 0.0
  %2435 = vmatpush2.msra.mxu0 0.0
  %2436 = vmatprep.subr.mxu0 0.0
  %2437 = vmatpush2.msra.mxu0 0.0
  %2438 = vmatprep.subr.mxu0 0.0
  %2439 = vmatpush2.msra.mxu0 0.0
  %2440 = vmatprep.subr.mxu0 0.0
  %2441 = vmatpush2.msra.mxu0 0.0
  %2442 = vmatprep.subr.mxu0 0.0
  %2443 = vmatpush2.msra.mxu0 0.0
  %2444 = vmatprep.subr.mxu0 0.0
  %2445 = vmatpush2.msra.mxu0 0.0
  %2446 = vmatprep.subr.mxu0 0.0
  %2447 = vmatpush2.msra.mxu0 0.0
  %2448 = vmatprep.subr.mxu0 0.0
  %2449 = vmatpush2.msra.mxu0 0.0
  %2450 = vmatprep.subr.mxu0 0.0
  %2451 = vmatpush2.msra.mxu0 0.0
  %2452 = vmatprep.subr.mxu0 0.0
  %2453 = vmatpush2.msra.mxu0 0.0
  %2454 = vmatprep.mubr.f32.mxu0 0.0
  %2455 = vmatmul.mubr.f32.gmra.mxu0 %v2379
  %v2456 = vpop.f32.mrf.mxu0
  %v2457 = vadd.f32 0.0, %v2456
  %v2458 = vpop.f32.mrf.mxu0
  %2459 = vmatprep.mubr.f32.mxu0 0.0
  %2460 = vmatmul.mubr.f32.gmra.mxu0 %v2382
  %v2461 = vpop.f32.mrf.mxu0
  %v2462 = vadd.f32 0.0, %v2461
  %v2463 = vpop.f32.mrf.mxu0
  %2464 = vmatprep.mubr.f32.mxu0 0.0
  %2465 = vmatmul.mubr.f32.gmra.mxu0 %v2385
  %v2466 = vpop.f32.mrf.mxu0
  %v2467 = vadd.f32 0.0, %v2466
  %v2468 = vpop.f32.mrf.mxu0
  %2469 = vmatprep.mubr.f32.mxu0 0.0
  %2470 = vmatmul.mubr.f32.gmra.mxu0 %v2388
  %v2471 = vpop.f32.mrf.mxu0
  %v2472 = vadd.f32 0.0, %v2471
  %v2473 = vpop.f32.mrf.mxu0
  %2474 = vdwg.mxu0
  %v2475 = vadd.f32 %v2360, %v2457
  %v2476 = vadd.f32 %v2365, %v2462
  %v2477 = vadd.f32 %v2370, %v2467
  %v2478 = vadd.f32 %v2375, %v2472
  %v2479 = vlaneseq
  %v2480 = vshrl.u32 %v2479, 7
  %v2481 = vsub.s32 0, %v2480
  %v2482 = vrot.slane %v1357, %v2481
  %v2483 = vadd.f32 %v2475, %v2482
  %v2484 = vadd.f32 %v2476, %v2482
  %v2485 = vadd.f32 %v2477, %v2482
  %v2486 = vadd.f32 %v2478, %v2482
  %v2487 = vmax.f32 %v2483, 0.0
  %v2488 = vmax.f32 %v2484, 0.0
  %v2489 = vmax.f32 %v2485, 0.0
  %v2490 = vmax.f32 %v2486, 0.0
  %v2491 = vlaneseq
  %v2492 = vshrl.u32 %v2491, 7
  %v2493 = vsub.s32 1, %v2492
  %v2494 = vrot.slane %v1357, %v2493
  %vm2495 = vcmask 261120
  %v2497 = vsel %vm2495, %v2487, 0
  %v2500 = vsel %vm2495, %v2488, 0
  %v2503 = vsel %vm2495, %v2489, 0
  %v2506 = vsel %vm2495, %v2490, 0
  %2508 = vmatprep.subr.mxu0 0.0
  %2509 = vmatpush1.msra.mxu0 0.0
  %2510 = vmatprep.subr.mxu0 0.0
  %2511 = vmatpush1.msra.mxu0 0.0
  %2512 = vmatprep.subr.mxu0 0.0
  %2513 = vmatpush1.msra.mxu0 0.0
  %2514 = vmatprep.subr.mxu0 0.0
  %2515 = vmatpush1.msra.mxu0 0.0
  %2516 = vmatprep.subr.mxu0 0.0
  %2517 = vmatpush1.msra.mxu0 0.0
  %2518 = vmatprep.subr.mxu0 0.0
  %2519 = vmatpush1.msra.mxu0 0.0
  %2520 = vmatprep.subr.mxu0 0.0
  %2521 = vmatpush1.msra.mxu0 0.0
  %2522 = vmatprep.subr.mxu0 0.0
  %2523 = vmatpush1.msra.mxu0 0.0
  %2524 = vmatprep.subr.mxu0 0.0
  %2525 = vmatpush1.msra.mxu0 0.0
  %2526 = vmatprep.subr.mxu0 0.0
  %2527 = vmatpush1.msra.mxu0 0.0
  %2528 = vmatprep.subr.mxu0 0.0
  %2529 = vmatpush1.msra.mxu0 0.0
  %2530 = vmatprep.subr.mxu0 0.0
  %2531 = vmatpush1.msra.mxu0 0.0
  %2532 = vmatprep.subr.mxu0 0.0
  %2533 = vmatpush1.msra.mxu0 %v1356
  %2534 = vmatprep.subr.mxu0 0.0
  %2535 = vmatpush1.msra.mxu0 %v1355
  %2536 = vmatprep.subr.mxu0 0.0
  %2537 = vmatpush1.msra.mxu0 %v1354
  %2538 = vmatprep.subr.mxu0 0.0
  %2539 = vmatpush1.msra.mxu0 %v1353
  %2540 = vmatprep.subr.mxu0 0.0
  %2541 = vmatpush2.msra.mxu0 0.0
  %2542 = vmatprep.subr.mxu0 0.0
  %2543 = vmatpush2.msra.mxu0 0.0
  %2544 = vmatprep.subr.mxu0 0.0
  %2545 = vmatpush2.msra.mxu0 0.0
  %2546 = vmatprep.subr.mxu0 0.0
  %2547 = vmatpush2.msra.mxu0 0.0
  %2548 = vmatprep.subr.mxu0 0.0
  %2549 = vmatpush2.msra.mxu0 0.0
  %2550 = vmatprep.subr.mxu0 0.0
  %2551 = vmatpush2.msra.mxu0 0.0
  %2552 = vmatprep.subr.mxu0 0.0
  %2553 = vmatpush2.msra.mxu0 0.0
  %2554 = vmatprep.subr.mxu0 0.0
  %2555 = vmatpush2.msra.mxu0 0.0
  %2556 = vmatprep.subr.mxu0 0.0
  %2557 = vmatpush2.msra.mxu0 0.0
  %2558 = vmatprep.subr.mxu0 0.0
  %2559 = vmatpush2.msra.mxu0 0.0
  %2560 = vmatprep.subr.mxu0 0.0
  %2561 = vmatpush2.msra.mxu0 0.0
  %2562 = vmatprep.subr.mxu0 0.0
  %2563 = vmatpush2.msra.mxu0 0.0
  %2564 = vmatprep.subr.mxu0 0.0
  %2565 = vmatpush2.msra.mxu0 0.0
  %2566 = vmatprep.subr.mxu0 0.0
  %2567 = vmatpush2.msra.mxu0 0.0
  %2568 = vmatprep.subr.mxu0 0.0
  %2569 = vmatpush2.msra.mxu0 0.0
  %2570 = vmatprep.subr.mxu0 0.0
  %2571 = vmatpush2.msra.mxu0 0.0
  %2572 = vmatprep.mubr.f32.mxu0 0.0
  %2573 = vmatmul.mubr.f32.gmra.mxu0 %v2497
  %v2574 = vpop.f32.mrf.mxu0
  %v2575 = vadd.f32 %v2494, %v2574
  %v2576 = vpop.f32.mrf.mxu0
  %2577 = vmatprep.mubr.f32.mxu0 0.0
  %2578 = vmatmul.mubr.f32.gmra.mxu0 %v2500
  %v2579 = vpop.f32.mrf.mxu0
  %v2580 = vadd.f32 %v2494, %v2579
  %v2581 = vpop.f32.mrf.mxu0
  %2582 = vmatprep.mubr.f32.mxu0 0.0
  %2583 = vmatmul.mubr.f32.gmra.mxu0 %v2503
  %v2584 = vpop.f32.mrf.mxu0
  %v2585 = vadd.f32 %v2494, %v2584
  %v2586 = vpop.f32.mrf.mxu0
  %2587 = vmatprep.mubr.f32.mxu0 0.0
  %2588 = vmatmul.mubr.f32.gmra.mxu0 %v2506
  %v2589 = vpop.f32.mrf.mxu0
  %v2590 = vadd.f32 %v2494, %v2589
  %v2591 = vpop.f32.mrf.mxu0
  %2592 = vdwg.mxu0
  %v2593 = vmax.f32 %v2575, 0.0
  %v2594 = vmax.f32 %v2580, 0.0
  %v2595 = vmax.f32 %v2585, 0.0
  %v2596 = vmax.f32 %v2590, 0.0
  %v2597 = vld [vmem:[%s13] sm:$0x3]
  %v2598 = vld [vmem:[%s12] sm:$0xff]
  %v2599 = vld [vmem:[%s12 + $0x8] sm:$0xff]
  %v2600 = vld [vmem:[%s12 + $0x10] sm:$0xff]
  %v2601 = vld [vmem:[%s12 + $0x18] sm:$0xff]
  %v2602 = vlaneseq
  %v2603 = vshrl.u32 %v2602, 7
  %v2604 = vsub.s32 0, %v2603
  %v2605 = vrot.slane %v2597, %v2604
  %v2607 = vsel %vm2495, %v2593, 0
  %v2610 = vsel %vm2495, %v2594, 0
  %v2613 = vsel %vm2495, %v2595, 0
  %v2616 = vsel %vm2495, %v2596, 0
  %2618 = vmatprep.subr.mxu0 0.0
  %2619 = vmatpush1.msra.mxu0 0.0
  %2620 = vmatprep.subr.mxu0 0.0
  %2621 = vmatpush1.msra.mxu0 0.0
  %2622 = vmatprep.subr.mxu0 0.0
  %2623 = vmatpush1.msra.mxu0 0.0
  %2624 = vmatprep.subr.mxu0 0.0
  %2625 = vmatpush1.msra.mxu0 0.0
  %2626 = vmatprep.subr.mxu0 0.0
  %2627 = vmatpush1.msra.mxu0 0.0
  %2628 = vmatprep.subr.mxu0 0.0
  %2629 = vmatpush1.msra.mxu0 0.0
  %2630 = vmatprep.subr.mxu0 0.0
  %2631 = vmatpush1.msra.mxu0 0.0
  %2632 = vmatprep.subr.mxu0 0.0
  %2633 = vmatpush1.msra.mxu0 0.0
  %2634 = vmatprep.subr.mxu0 0.0
  %2635 = vmatpush1.msra.mxu0 0.0
  %2636 = vmatprep.subr.mxu0 0.0
  %2637 = vmatpush1.msra.mxu0 0.0
  %2638 = vmatprep.subr.mxu0 0.0
  %2639 = vmatpush1.msra.mxu0 0.0
  %2640 = vmatprep.subr.mxu0 0.0
  %2641 = vmatpush1.msra.mxu0 0.0
  %2642 = vmatprep.subr.mxu0 0.0
  %2643 = vmatpush1.msra.mxu0 %v2601
  %2644 = vmatprep.subr.mxu0 0.0
  %2645 = vmatpush1.msra.mxu0 %v2600
  %2646 = vmatprep.subr.mxu0 0.0
  %2647 = vmatpush1.msra.mxu0 %v2599
  %2648 = vmatprep.subr.mxu0 0.0
  %2649 = vmatpush1.msra.mxu0 %v2598
  %2650 = vmatprep.subr.mxu0 0.0
  %2651 = vmatpush2.msra.mxu0 0.0
  %2652 = vmatprep.subr.mxu0 0.0
  %2653 = vmatpush2.msra.mxu0 0.0
  %2654 = vmatprep.subr.mxu0 0.0
  %2655 = vmatpush2.msra.mxu0 0.0
  %2656 = vmatprep.subr.mxu0 0.0
  %2657 = vmatpush2.msra.mxu0 0.0
  %2658 = vmatprep.subr.mxu0 0.0
  %2659 = vmatpush2.msra.mxu0 0.0
  %2660 = vmatprep.subr.mxu0 0.0
  %2661 = vmatpush2.msra.mxu0 0.0
  %2662 = vmatprep.subr.mxu0 0.0
  %2663 = vmatpush2.msra.mxu0 0.0
  %2664 = vmatprep.subr.mxu0 0.0
  %2665 = vmatpush2.msra.mxu0 0.0
  %2666 = vmatprep.subr.mxu0 0.0
  %2667 = vmatpush2.msra.mxu0 0.0
  %2668 = vmatprep.subr.mxu0 0.0
  %2669 = vmatpush2.msra.mxu0 0.0
  %2670 = vmatprep.subr.mxu0 0.0
  %2671 = vmatpush2.msra.mxu0 0.0
  %2672 = vmatprep.subr.mxu0 0.0
  %2673 = vmatpush2.msra.mxu0 0.0
  %2674 = vmatprep.subr.mxu0 0.0
  %2675 = vmatpush2.msra.mxu0 0.0
  %2676 = vmatprep.subr.mxu0 0.0
  %2677 = vmatpush2.msra.mxu0 0.0
  %2678 = vmatprep.subr.mxu0 0.0
  %2679 = vmatpush2.msra.mxu0 0.0
  %2680 = vmatprep.subr.mxu0 0.0
  %2681 = vmatpush2.msra.mxu0 0.0
  %2682 = vmatprep.mubr.f32.mxu0 0.0
  %2683 = vmatmul.mubr.f32.gmra.mxu0 %v2607
  %v2684 = vpop.f32.mrf.mxu0
  %v2685 = vadd.f32 %v2605, %v2684
  %v2686 = vpop.f32.mrf.mxu0
  %2687 = vmatprep.mubr.f32.mxu0 0.0
  %2688 = vmatmul.mubr.f32.gmra.mxu0 %v2610
  %v2689 = vpop.f32.mrf.mxu0
  %v2690 = vadd.f32 %v2605, %v2689
  %v2691 = vpop.f32.mrf.mxu0
  %2692 = vmatprep.mubr.f32.mxu0 0.0
  %2693 = vmatmul.mubr.f32.gmra.mxu0 %v2613
  %v2694 = vpop.f32.mrf.mxu0
  %v2695 = vadd.f32 %v2605, %v2694
  %v2696 = vpop.f32.mrf.mxu0
  %2697 = vmatprep.mubr.f32.mxu0 0.0
  %2698 = vmatmul.mubr.f32.gmra.mxu0 %v2616
  %v2699 = vpop.f32.mrf.mxu0
  %v2700 = vadd.f32 %v2605, %v2699
  %v2701 = vpop.f32.mrf.mxu0
  %2702 = vdwg.mxu0
  %v2703 = vmax.f32 %v2685, 0.0
  %v2704 = vmax.f32 %v2690, 0.0
  %v2705 = vmax.f32 %v2695, 0.0
  %v2706 = vmax.f32 %v2700, 0.0
  %v2707 = vlaneseq
  %v2708 = vshrl.u32 %v2707, 7
  %v2709 = vsub.s32 1, %v2708
  %v2710 = vrot.slane %v2597, %v2709
  %v2711 = vmul.f32 %v2710, %v2703
  %v2712 = vmul.f32 %v2710, %v2704
  %v2713 = vmul.f32 %v2710, %v2705
  %v2714 = vmul.f32 %v2710, %v2706
  %vm2715 = vcmask 31744
  %2716 = vst.msk [vmem:[%s14] sm:$0xff] %vm2715, %v2711
  %2717 = vst.msk [vmem:[%s14 + $0x8] sm:$0xff] %vm2715, %v2712
  %2718 = vst.msk [vmem:[%s14 + $0x10] sm:$0xff] %vm2715, %v2713
  %2719 = vst.msk [vmem:[%s14 + $0x18] sm:$0xff] %vm2715, %v2714
  // Predicated region
  $region58: #{astgcn_nodaily.1} parent=0 // pred_check
    _
  $region59: #{astgcn_nodaily.1} parent=0 // pred_check_branch
    %2721 = sbr.rel (0) target = $region61
  $region60: #{astgcn_nodaily.1} parent=0 // pred_region
    _
  $region61: #{astgcn_nodaily.1} parent=0 // pred_fallthru
    _
  // Predicated region
  $region62: #{astgcn_nodaily.1} parent=0 // pred_check
    _
  $region63: #{astgcn_nodaily.1} parent=0 // pred_check_branch
    %2723 = sbr.rel (0) target = $region65
  $region64: #{astgcn_nodaily.1} parent=0 // pred_region
    _
  $region65: #{astgcn_nodaily.1} parent=0 // pred_fallthru
    _

</llo_original>
